<compile_context>
chip_gen: v7x
topology: tpu7x:2x2x1
jax: 0.10.0
libtpu: 0.0.40
codegen_flags: <defaults>
</compile_context>

<pallas_src>
import functools

import jax
import jax.numpy as jnp
import numpy as np
from jax.experimental import pallas as pl
from jax.experimental.pallas import tpu as pltpu


def _round_up(n, m):
    return (n + m - 1) // m * m


# ---------------------------------------------------------------------------
# Fused post-attention kernel:
#   add + LayerNorm1 + CausalConv1d(k) + act + Conv1x1 + GatedFeedback + add + LayerNorm2
# ---------------------------------------------------------------------------
def _encoder_post_attn_kernel(x_ref, nx_ref, g1_ref, b1_ref,
                              w1_ref, c1b_ref, w2_ref, c2b_ref,
                              wzy_ref, wzx_ref, bz_ref, wr_ref, br_ref,
                              g2_ref, b2_ref, o_ref, carry_ref, *,
                              k_size, dilation, pad, halo, activation, eps,
                              compute_dtype):
    f32 = jnp.float32
    tl_rows = o_ref.shape[1]

    # ---- residual add + LayerNorm1 -> x1 (rows of this sequence tile) ----
    s = x_ref[0].astype(f32) + nx_ref[0].astype(f32)                 # (TL, D)
    mu = jnp.mean(s, axis=-1, keepdims=True)
    sc = s - mu
    var = jnp.mean(sc * sc, axis=-1, keepdims=True)
    x1 = sc * jax.lax.rsqrt(var + eps) * g1_ref[...].astype(f32) \
        + b1_ref[...].astype(f32)                                     # (TL, D)

    # ---- causal halo: last `halo` x1 rows of the previous tile of this batch element ----
    if pad > 0:
        @pl.when(pl.program_id(1) == 0)
        def _():                                  # first tile: causal left context is zeros
            carry_ref[...] = jnp.zeros_like(carry_ref)
        window = jnp.concatenate([carry_ref[...], x1], axis=0)        # (halo + TL, D)
        carry_ref[...] = x1[tl_rows - halo:, :]                       # halo for the next tile
        base = halo - pad
    else:
        window = x1
        base = 0

    # ---- causal conv1 (K statically shifted sublane views, one MXU matmul each, summed)
    #      + activation + 1x1 conv2, all kept in VMEM ----
    h = c1b_ref[...].astype(f32)                                      # (1, F) -> broadcast
    for k in range(k_size):
        tap = window[base + k * dilation: base + k * dilation + tl_rows, :]
        h = h + jnp.dot(tap.astype(compute_dtype),
                        w1_ref[k].astype(compute_dtype),
                        preferred_element_type=f32)                   # (TL, F)
    if activation == "relu":
        h = jnp.maximum(h, 0.0)
    else:
        h = jax.nn.gelu(h)          # tanh approximation of GELU (activation='gelu' path)
    y = jnp.dot(h.astype(compute_dtype), w2_ref[...].astype(compute_dtype),
                preferred_element_type=f32) + c2b_ref[...].astype(f32)   # (TL, D)

    # ---- GatedFeedback(y, x1): z = sig(Wz(cat[y, x1])), r = tanh(Wr(y)), h = z*x1+(1-z)*r ----
    z = jax.nn.sigmoid(
        jnp.dot(y.astype(compute_dtype), wzy_ref[...].astype(compute_dtype),
                preferred_element_type=f32)
        + jnp.dot(x1.astype(compute_dtype), wzx_ref[...].astype(compute_dtype),
                  preferred_element_type=f32)
        + bz_ref[...].astype(f32))
    r = jnp.tanh(jnp.dot(y.astype(compute_dtype), wr_ref[...].astype(compute_dtype),
                         preferred_element_type=f32) + br_ref[...].astype(f32))
    hg = z * x1 + (1.0 - z) * r

    # ---- residual + LayerNorm2 ----
    s2 = hg + y
    mu2 = jnp.mean(s2, axis=-1, keepdims=True)
    s2c = s2 - mu2
    var2 = jnp.mean(s2c * s2c, axis=-1, keepdims=True)
    out = s2c * jax.lax.rsqrt(var2 + eps) * g2_ref[...].astype(f32) \
        + b2_ref[...].astype(f32)
    o_ref[0] = out.astype(o_ref.dtype)


def encoder_post_attention(x, new_x, p, *, activation="relu", eps=1e-5,
                           seq_tile=256, compute_dtype=None):
    """Everything after attention, fused. x, new_x: (B, L, D) -> (B, L, D)."""
    bsz, seq_len, d = x.shape
    w1 = p["w1"]                                   # (F, D, K)
    d_ff, d_in, k_size = w1.shape
    assert d_in == d
    dilation = 1                                   # CausalConv1d default in EncoderLayer
    pad = (k_size - 1) * dilation
    halo = max(8, _round_up(pad, 8))
    assert pad <= halo, "causal context larger than carried halo"

    # Row (sequence) tiling: multiple of 8 sublanes; sequence right-padded to a tile multiple.
    tl = max(8, (min(seq_tile, _round_up(seq_len, 8)) // 8) * 8)
    tl = max(tl, halo)
    l_pad = _round_up(seq_len, tl)
    n_tiles = l_pad // tl
    if l_pad != seq_len:                           # right-pad only; causal pad handled in-kernel
        x = jnp.pad(x, ((0, 0), (0, l_pad - seq_len), (0, 0)))
        new_x = jnp.pad(new_x, ((0, 0), (0, l_pad - seq_len), (0, 0)))

    # Pre-fold weights so every in-kernel matmul is `rows @ W`.
    w1t = jnp.transpose(w1, (2, 1, 0))             # (K, D, F): w1t[k, ci, co] = w1[co, ci, k]
    w2t = p["w2"][:, :, 0].T                       # (F, D)
    wzy = p["Wz"][:, :d].T                         # acts on y   (first half of cat([y, x1]))
    wzx = p["Wz"][:, d:].T                         # acts on x1  (second half)
    wrt = p["Wr"].T
    cdt = jnp.dtype(compute_dtype) if compute_dtype is not None else jnp.float32

    kernel = functools.partial(
        _encoder_post_attn_kernel, k_size=k_size, dilation=dilation, pad=pad,
        halo=halo, activation=activation, eps=eps, compute_dtype=cdt)

    def row_spec():
        return pl.BlockSpec((1, tl, d), lambda b, j: (b, j, 0))

    def const_spec(shape):
        return pl.BlockSpec(shape, lambda b, j: tuple(0 for _ in shape))

    out = pl.pallas_call(
        kernel,
        out_shape=jax.ShapeDtypeStruct((bsz, l_pad, d), x.dtype),
        grid_spec=pltpu.PrefetchScalarGridSpec(
            num_scalar_prefetch=0,
            grid=(bsz, n_tiles),
            in_specs=[
                row_spec(), row_spec(),                                # x, new_x
                const_spec((1, d)), const_spec((1, d)),                # g1, b1
                const_spec((k_size, d, d_ff)), const_spec((1, d_ff)),  # conv1 W, b
                const_spec((d_ff, d)), const_spec((1, d)),             # conv2 W, b
                const_spec((d, d)), const_spec((d, d)), const_spec((1, d)),  # WzY, WzX, bz
                const_spec((d, d)), const_spec((1, d)),                # Wr, br
                const_spec((1, d)), const_spec((1, d)),                # g2, b2
            ],
            out_specs=pl.BlockSpec((1, tl, d), lambda b, j: (b, j, 0)),
            scratch_shapes=[pltpu.VMEM((halo, d), jnp.float32)],       # causal x1 halo
        ),
        compiler_params=pltpu.CompilerParams(
            # batch -> megacore; sequence axis is sequential (it carries the causal halo)
            dimension_semantics=("parallel", "arbitrary"),
            vmem_limit_bytes=48 * 1024 * 1024,
        ),
    )(x, new_x,
      p["g1"].reshape(1, d), p["b1"].reshape(1, d),
      w1t, p["c1b"].reshape(1, d_ff),
      w2t, p["c2b"].reshape(1, d),
      wzy, wzx, p["bz"].reshape(1, d),
      wrt, p["br"].reshape(1, d),
      p["g2"].reshape(1, d), p["b2"].reshape(1, d))
    if l_pad != seq_len:
        out = out[:, :seq_len]
    return out


# ---------------------------------------------------------------------------
# Full EncoderLayer forward (dropout = identity / eval mode)
# ---------------------------------------------------------------------------
def simple_self_attention(x):
    # TODO(synk): `attention` is a constructor-injected module (not defined in the spec);
    # modeled here as plain-JAX single-head scaled dot-product self-attention (no mask).
    d = x.shape[-1]
    scores = jnp.einsum("bqd,bkd->bqk", x, x) / jnp.sqrt(jnp.float32(d))
    attn = jax.nn.softmax(scores, axis=-1)
    return jnp.einsum("bqk,bkd->bqd", attn, x), attn


def encoder_layer_forward(x, p, *, activation="relu", eps=1e-5, seq_tile=256,
                          compute_dtype=None):
    new_x, attn = simple_self_attention(x)
    out = encoder_post_attention(x, new_x, p, activation=activation, eps=eps,
                                 seq_tile=seq_tile, compute_dtype=compute_dtype)
    return out, attn


# ---------------------------------------------------------------------------
# Pure-JAX reference for the self-check
# ---------------------------------------------------------------------------
def _layernorm_ref(x, g, b, eps):
    mu = jnp.mean(x, axis=-1, keepdims=True)
    var = jnp.mean((x - mu) ** 2, axis=-1, keepdims=True)
    return (x - mu) * jax.lax.rsqrt(var + eps) * g + b


def encoder_layer_reference(x, p, *, eps=1e-5):
    hp = jax.lax.Precision.HIGHEST
    new_x, attn = simple_self_attention(x)
    x1 = _layernorm_ref(x + new_x, p["g1"], p["b1"], eps)
    xt = jnp.swapaxes(x1, 1, 2)
    k = p["w1"].shape[-1]
    y1 = jax.lax.conv_general_dilated(
        xt, p["w1"], (1,), [((k - 1), 0)], rhs_dilation=(1,),
        dimension_numbers=("NCH", "OIH", "NCH"), precision=hp) + p["c1b"][None, :, None]
    y1 = jax.nn.relu(y1)
    y2 = jax.lax.conv_general_dilated(
        y1, p["w2"], (1,), [(0, 0)],
        dimension_numbers=("NCH", "OIH", "NCH"), precision=hp) + p["c2b"][None, :, None]
    y = jnp.swapaxes(y2, 1, 2)
    z = jax.nn.sigmoid(
        jnp.einsum("blf,kf->blk", jnp.concatenate([y, x1], axis=-1), p["Wz"],
                   precision=hp) + p["bz"])
    r = jnp.tanh(jnp.einsum("bld,kd->blk", y, p["Wr"], precision=hp) + p["br"])
    h = z * x1 + (1.0 - z) * r
    return _layernorm_ref(h + y, p["g2"], p["b2"], eps), attn


if __name__ == "__main__":
    key = jax.random.PRNGKey(0)
    ks = jax.random.split(key, 13)

    B, L, d_model, d_ff = 2, 160, 32, 128

    def unif(k, shape, fan_in):
        b = 1.0 / np.sqrt(fan_in)
        return jax.random.uniform(k, shape, jnp.float32, minval=-b, maxval=b)

    x = jax.random.normal(ks[0], (B, L, d_model), jnp.float32)
    p = dict(
        w1=unif(ks[1], (d_ff, d_model, 3), d_model * 3),
        c1b=unif(ks[2], (d_ff,), d_model * 3),
        w2=unif(ks[3], (d_model, d_ff, 1), d_ff),
        c2b=unif(ks[4], (d_model,), d_ff),
        Wz=unif(ks[5], (d_model, 2 * d_model), 2 * d_model),
        bz=unif(ks[6], (d_model,), 2 * d_model),
        Wr=unif(ks[7], (d_model, d_model), d_model),
        br=unif(ks[8], (d_model,), d_model),
        g1=1.0 + 0.1 * jax.random.normal(ks[9], (d_model,), jnp.float32),
        b1=0.1 * jax.random.normal(ks[10], (d_model,), jnp.float32),
        g2=1.0 + 0.1 * jax.random.normal(ks[11], (d_model,), jnp.float32),
        b2=0.1 * jax.random.normal(ks[12], (d_model,), jnp.float32),
    )

    ref, _ = encoder_layer_reference(x, p)
    ref = np.asarray(ref)

    # Single sequence tile per batch element (tl = 160 -> one tile).
    out1, attn = encoder_layer_forward(x, p)
    out1 = jax.block_until_ready(out1)
    np.testing.assert_allclose(np.asarray(out1), ref, rtol=1e-3, atol=1e-3)

    # Multi-tile path: tl = 96 -> 2 tiles; exercises the in-VMEM causal halo carry.
    out2, _ = encoder_layer_forward(x, p, seq_tile=96)
    out2 = jax.block_until_ready(out2)
    np.testing.assert_allclose(np.asarray(out2), ref, rtol=1e-3, atol=1e-3)

    print("KERNEL_OK")
</pallas_src>

<mosaic_0001>
module attributes {stable_mosaic.version = 11 : i64} {
  func.func @_encoder_post_attn_kernel(%arg0: i32, %arg1: i32, %arg2: memref<1x160x32xf32, #tpu.memory_space<vmem>>, %arg3: memref<1x160x32xf32, #tpu.memory_space<vmem>>, %arg4: memref<1x32xf32, #tpu.memory_space<vmem>>, %arg5: memref<1x32xf32, #tpu.memory_space<vmem>>, %arg6: memref<3x32x128xf32, #tpu.memory_space<vmem>>, %arg7: memref<1x128xf32, #tpu.memory_space<vmem>>, %arg8: memref<128x32xf32, #tpu.memory_space<vmem>>, %arg9: memref<1x32xf32, #tpu.memory_space<vmem>>, %arg10: memref<32x32xf32, #tpu.memory_space<vmem>>, %arg11: memref<32x32xf32, #tpu.memory_space<vmem>>, %arg12: memref<1x32xf32, #tpu.memory_space<vmem>>, %arg13: memref<32x32xf32, #tpu.memory_space<vmem>>, %arg14: memref<1x32xf32, #tpu.memory_space<vmem>>, %arg15: memref<1x32xf32, #tpu.memory_space<vmem>>, %arg16: memref<1x32xf32, #tpu.memory_space<vmem>>, %arg17: memref<1x160x32xf32, #tpu.memory_space<vmem>>, %arg18: memref<8x32xf32, #tpu.memory_space<vmem>>) attributes {dimension_semantics = [#tpu.dimension_semantics<parallel>, #tpu.dimension_semantics<arbitrary>], iteration_bounds = array<i64: 2, 1>, scalar_prefetch = 0 : i64, scratch_operands = 1 : i64, tpu.core_type = #tpu.core_type<tc>, window_params = [{transform_indices = @transform_0, window_bounds = array<i64: 1, 160, 32>}, {transform_indices = @transform_1, window_bounds = array<i64: 1, 160, 32>}, {pipeline_mode = #tpu.pipeline_mode<synchronous>, transform_indices = @transform_2, window_bounds = array<i64: 1, 32>}, {pipeline_mode = #tpu.pipeline_mode<synchronous>, transform_indices = @transform_3, window_bounds = array<i64: 1, 32>}, {pipeline_mode = #tpu.pipeline_mode<synchronous>, transform_indices = @transform_4, window_bounds = array<i64: 3, 32, 128>}, {pipeline_mode = #tpu.pipeline_mode<synchronous>, transform_indices = @transform_5, window_bounds = array<i64: 1, 128>}, {pipeline_mode = #tpu.pipeline_mode<synchronous>, transform_indices = @transform_6, window_bounds = array<i64: 128, 32>}, {pipeline_mode = #tpu.pipeline_mode<synchronous>, transform_indices = @transform_7, window_bounds = array<i64: 1, 32>}, {pipeline_mode = #tpu.pipeline_mode<synchronous>, transform_indices = @transform_8, window_bounds = array<i64: 32, 32>}, {pipeline_mode = #tpu.pipeline_mode<synchronous>, transform_indices = @transform_9, window_bounds = array<i64: 32, 32>}, {pipeline_mode = #tpu.pipeline_mode<synchronous>, transform_indices = @transform_10, window_bounds = array<i64: 1, 32>}, {pipeline_mode = #tpu.pipeline_mode<synchronous>, transform_indices = @transform_11, window_bounds = array<i64: 32, 32>}, {pipeline_mode = #tpu.pipeline_mode<synchronous>, transform_indices = @transform_12, window_bounds = array<i64: 1, 32>}, {pipeline_mode = #tpu.pipeline_mode<synchronous>, transform_indices = @transform_13, window_bounds = array<i64: 1, 32>}, {pipeline_mode = #tpu.pipeline_mode<synchronous>, transform_indices = @transform_14, window_bounds = array<i64: 1, 32>}, {transform_indices = @transform_15, window_bounds = array<i64: 1, 160, 32>}]} {
    %c0 = arith.constant 0 : index
    %c0_0 = arith.constant 0 : index
    %c0_1 = arith.constant 0 : index
    %0 = vector.load %arg2[%c0, %c0_0, %c0_1] : memref<1x160x32xf32, #tpu.memory_space<vmem>>, vector<1x160x32xf32>
    %1 = vector.shape_cast %0 : vector<1x160x32xf32> to vector<160x32xf32>
    %c0_2 = arith.constant 0 : index
    %c0_3 = arith.constant 0 : index
    %c0_4 = arith.constant 0 : index
    %2 = vector.load %arg3[%c0_2, %c0_3, %c0_4] : memref<1x160x32xf32, #tpu.memory_space<vmem>>, vector<1x160x32xf32>
    %3 = vector.shape_cast %2 : vector<1x160x32xf32> to vector<160x32xf32>
    %4 = arith.addf %1, %3 : vector<160x32xf32>
    %cst = arith.constant dense<0.000000e+00> : vector<160xf32>
    %5 = vector.multi_reduction <add>, %4, %cst [1] : vector<160x32xf32> to vector<160xf32>
    %6 = vector.shape_cast %5 : vector<160xf32> to vector<160x1xf32>
    %cst_5 = arith.constant 3.200000e+01 : f32
    %7 = vector.broadcast %cst_5 : f32 to vector<160x1xf32>
    %8 = arith.divf %6, %7 : vector<160x1xf32>
    %9 = vector.broadcast %8 : vector<160x1xf32> to vector<160x32xf32>
    %10 = arith.subf %4, %9 : vector<160x32xf32>
    %11 = arith.mulf %10, %10 : vector<160x32xf32>
    %cst_6 = arith.constant dense<0.000000e+00> : vector<160xf32>
    %12 = vector.multi_reduction <add>, %11, %cst_6 [1] : vector<160x32xf32> to vector<160xf32>
    %13 = vector.shape_cast %12 : vector<160xf32> to vector<160x1xf32>
    %cst_7 = arith.constant 3.200000e+01 : f32
    %14 = vector.broadcast %cst_7 : f32 to vector<160x1xf32>
    %15 = arith.divf %13, %14 : vector<160x1xf32>
    %cst_8 = arith.constant 9.99999974E-6 : f32
    %16 = vector.broadcast %cst_8 : f32 to vector<160x1xf32>
    %17 = arith.addf %15, %16 : vector<160x1xf32>
    %18 = math.rsqrt %17 : vector<160x1xf32>
    %19 = vector.broadcast %18 : vector<160x1xf32> to vector<160x32xf32>
    %20 = arith.mulf %10, %19 : vector<160x32xf32>
    %c0_9 = arith.constant 0 : index
    %c0_10 = arith.constant 0 : index
    %21 = vector.load %arg4[%c0_9, %c0_10] : memref<1x32xf32, #tpu.memory_space<vmem>>, vector<1x32xf32>
    %22 = vector.broadcast %21 : vector<1x32xf32> to vector<160x32xf32>
    %23 = arith.mulf %20, %22 : vector<160x32xf32>
    %c0_11 = arith.constant 0 : index
    %c0_12 = arith.constant 0 : index
    %24 = vector.load %arg5[%c0_11, %c0_12] : memref<1x32xf32, #tpu.memory_space<vmem>>, vector<1x32xf32>
    %25 = vector.broadcast %24 : vector<1x32xf32> to vector<160x32xf32>
    %26 = arith.addf %23, %25 : vector<160x32xf32>
    %c0_i32 = arith.constant 0 : i32
    %27 = arith.cmpi eq, %arg1, %c0_i32 : i32
    %28 = arith.extui %27 : i1 to i32
    %c0_i32_13 = arith.constant 0 : i32
    %29 = arith.cmpi ne, %28, %c0_i32_13 : i32
    scf.if %29 {
      %cst_63 = arith.constant 0.000000e+00 : f32
      %108 = vector.broadcast %cst_63 : f32 to vector<8x32xf32>
      %c0_64 = arith.constant 0 : index
      %c0_65 = arith.constant 0 : index
      %109 = vector.load %arg18[%c0_64, %c0_65] : memref<8x32xf32, #tpu.memory_space<vmem>>, vector<8x32xf32>
      tpu.vector_store %arg18[%c0_64, %c0_65], %108 {strides = array<i32>} : memref<8x32xf32, #tpu.memory_space<vmem>>, vector<8x32xf32>,
    } else {
    }
    %c0_14 = arith.constant 0 : index
    %c0_15 = arith.constant 0 : index
    %30 = vector.load %arg18[%c0_14, %c0_15] : memref<8x32xf32, #tpu.memory_space<vmem>>, vector<8x32xf32>
    %31 = tpu.concatenate %30, %26 in 0 : vector<8x32xf32>, vector<160x32xf32> -> vector<168x32xf32>
    %32 = vector.extract_strided_slice %26 {offsets = [152, 0], sizes = [8, 32], strides = [1, 1]} : vector<160x32xf32> to vector<8x32xf32>
    %c0_16 = arith.constant 0 : index
    %c0_17 = arith.constant 0 : index
    %33 = vector.load %arg18[%c0_16, %c0_17] : memref<8x32xf32, #tpu.memory_space<vmem>>, vector<8x32xf32>
    tpu.vector_store %arg18[%c0_16, %c0_17], %32 {strides = array<i32>} : memref<8x32xf32, #tpu.memory_space<vmem>>, vector<8x32xf32>,
    %c0_18 = arith.constant 0 : index
    %c0_19 = arith.constant 0 : index
    %34 = vector.load %arg7[%c0_18, %c0_19] : memref<1x128xf32, #tpu.memory_space<vmem>>, vector<1x128xf32>
    %35 = vector.extract_strided_slice %31 {offsets = [6, 0], sizes = [160, 32], strides = [1, 1]} : vector<168x32xf32> to vector<160x32xf32>
    %c0_20 = arith.constant 0 : index
    %c0_21 = arith.constant 0 : index
    %c0_22 = arith.constant 0 : index
    %36 = vector.load %arg6[%c0_20, %c0_21, %c0_22] : memref<3x32x128xf32, #tpu.memory_space<vmem>>, vector<1x32x128xf32>
    %37 = vector.shape_cast %36 : vector<1x32x128xf32> to vector<32x128xf32>
    %cst_23 = arith.constant dense<0.000000e+00> : vector<160x128xf32>
    %38 = tpu.matmul %35, %37, %cst_23 {dimension_numbers = #tpu.dot_dimension_numbers<[1], [0], [0], [1], [0, 0, 1, 1], [], []>} : vector<160x32xf32>, vector<32x128xf32>, vector<160x128xf32> -> vector<160x128xf32>
    %39 = vector.broadcast %34 : vector<1x128xf32> to vector<160x128xf32>
    %40 = arith.addf %39, %38 : vector<160x128xf32>
    %41 = vector.extract_strided_slice %31 {offsets = [7, 0], sizes = [160, 32], strides = [1, 1]} : vector<168x32xf32> to vector<160x32xf32>
    %c1 = arith.constant 1 : index
    %c0_24 = arith.constant 0 : index
    %c0_25 = arith.constant 0 : index
    %42 = vector.load %arg6[%c1, %c0_24, %c0_25] : memref<3x32x128xf32, #tpu.memory_space<vmem>>, vector<1x32x128xf32>
    %43 = vector.shape_cast %42 : vector<1x32x128xf32> to vector<32x128xf32>
    %cst_26 = arith.constant dense<0.000000e+00> : vector<160x128xf32>
    %44 = tpu.matmul %41, %43, %cst_26 {dimension_numbers = #tpu.dot_dimension_numbers<[1], [0], [0], [1], [0, 0, 1, 1], [], []>} : vector<160x32xf32>, vector<32x128xf32>, vector<160x128xf32> -> vector<160x128xf32>
    %45 = arith.addf %40, %44 : vector<160x128xf32>
    %46 = vector.extract_strided_slice %31 {offsets = [8, 0], sizes = [160, 32], strides = [1, 1]} : vector<168x32xf32> to vector<160x32xf32>
    %c2 = arith.constant 2 : index
    %c0_27 = arith.constant 0 : index
    %c0_28 = arith.constant 0 : index
    %47 = vector.load %arg6[%c2, %c0_27, %c0_28] : memref<3x32x128xf32, #tpu.memory_space<vmem>>, vector<1x32x128xf32>
    %48 = vector.shape_cast %47 : vector<1x32x128xf32> to vector<32x128xf32>
    %cst_29 = arith.constant dense<0.000000e+00> : vector<160x128xf32>
    %49 = tpu.matmul %46, %48, %cst_29 {dimension_numbers = #tpu.dot_dimension_numbers<[1], [0], [0], [1], [0, 0, 1, 1], [], []>} : vector<160x32xf32>, vector<32x128xf32>, vector<160x128xf32> -> vector<160x128xf32>
    %50 = arith.addf %45, %49 : vector<160x128xf32>
    %cst_30 = arith.constant 0.000000e+00 : f32
    %51 = vector.broadcast %cst_30 : f32 to vector<160x128xf32>
    %52 = arith.maximumf %50, %51 : vector<160x128xf32>
    %c0_31 = arith.constant 0 : index
    %c0_32 = arith.constant 0 : index
    %53 = vector.load %arg8[%c0_31, %c0_32] : memref<128x32xf32, #tpu.memory_space<vmem>>, vector<128x32xf32>
    %cst_33 = arith.constant dense<0.000000e+00> : vector<160x32xf32>
    %54 = tpu.matmul %52, %53, %cst_33 {dimension_numbers = #tpu.dot_dimension_numbers<[1], [0], [0], [1], [0, 0, 1, 1], [], []>} : vector<160x128xf32>, vector<128x32xf32>, vector<160x32xf32> -> vector<160x32xf32>
    %c0_34 = arith.constant 0 : index
    %c0_35 = arith.constant 0 : index
    %55 = vector.load %arg9[%c0_34, %c0_35] : memref<1x32xf32, #tpu.memory_space<vmem>>, vector<1x32xf32>
    %56 = vector.broadcast %55 : vector<1x32xf32> to vector<160x32xf32>
    %57 = arith.addf %54, %56 : vector<160x32xf32>
    %c0_36 = arith.constant 0 : index
    %c0_37 = arith.constant 0 : index
    %58 = vector.load %arg10[%c0_36, %c0_37] : memref<32x32xf32, #tpu.memory_space<vmem>>, vector<32x32xf32>
    %cst_38 = arith.constant dense<0.000000e+00> : vector<160x32xf32>
    %59 = tpu.matmul %57, %58, %cst_38 {dimension_numbers = #tpu.dot_dimension_numbers<[1], [0], [0], [1], [0, 0, 1, 1], [], []>} : vector<160x32xf32>, vector<32x32xf32>, vector<160x32xf32> -> vector<160x32xf32>
    %c0_39 = arith.constant 0 : index
    %c0_40 = arith.constant 0 : index
    %60 = vector.load %arg11[%c0_39, %c0_40] : memref<32x32xf32, #tpu.memory_space<vmem>>, vector<32x32xf32>
    %cst_41 = arith.constant dense<0.000000e+00> : vector<160x32xf32>
    %61 = tpu.matmul %26, %60, %cst_41 {dimension_numbers = #tpu.dot_dimension_numbers<[1], [0], [0], [1], [0, 0, 1, 1], [], []>} : vector<160x32xf32>, vector<32x32xf32>, vector<160x32xf32> -> vector<160x32xf32>
    %62 = arith.addf %59, %61 : vector<160x32xf32>
    %c0_42 = arith.constant 0 : index
    %c0_43 = arith.constant 0 : index
    %63 = vector.load %arg12[%c0_42, %c0_43] : memref<1x32xf32, #tpu.memory_space<vmem>>, vector<1x32xf32>
    %64 = vector.broadcast %63 : vector<1x32xf32> to vector<160x32xf32>
    %65 = arith.addf %62, %64 : vector<160x32xf32>
    %66 = arith.negf %65 : vector<160x32xf32>
    %67 = math.exp %66 : vector<160x32xf32>
    %cst_44 = arith.constant 1.000000e+00 : f32
    %68 = vector.broadcast %cst_44 : f32 to vector<160x32xf32>
    %69 = arith.addf %68, %67 : vector<160x32xf32>
    %70 = arith.divf %68, %69 : vector<160x32xf32>
    %c0_45 = arith.constant 0 : index
    %c0_46 = arith.constant 0 : index
    %71 = vector.load %arg13[%c0_45, %c0_46] : memref<32x32xf32, #tpu.memory_space<vmem>>, vector<32x32xf32>
    %cst_47 = arith.constant dense<0.000000e+00> : vector<160x32xf32>
    %72 = tpu.matmul %57, %71, %cst_47 {dimension_numbers = #tpu.dot_dimension_numbers<[1], [0], [0], [1], [0, 0, 1, 1], [], []>} : vector<160x32xf32>, vector<32x32xf32>, vector<160x32xf32> -> vector<160x32xf32>
    %c0_48 = arith.constant 0 : index
    %c0_49 = arith.constant 0 : index
    %73 = vector.load %arg14[%c0_48, %c0_49] : memref<1x32xf32, #tpu.memory_space<vmem>>, vector<1x32xf32>
    %74 = vector.broadcast %73 : vector<1x32xf32> to vector<160x32xf32>
    %75 = arith.addf %72, %74 : vector<160x32xf32>
    %76 = math.tanh %75 : vector<160x32xf32>
    %77 = arith.mulf %70, %26 : vector<160x32xf32>
    %cst_50 = arith.constant 1.000000e+00 : f32
    %78 = vector.broadcast %cst_50 : f32 to vector<160x32xf32>
    %79 = arith.subf %78, %70 : vector<160x32xf32>
    %80 = arith.mulf %79, %76 : vector<160x32xf32>
    %81 = arith.addf %77, %80 : vector<160x32xf32>
    %82 = arith.addf %81, %57 : vector<160x32xf32>
    %cst_51 = arith.constant dense<0.000000e+00> : vector<160xf32>
    %83 = vector.multi_reduction <add>, %82, %cst_51 [1] : vector<160x32xf32> to vector<160xf32>
    %84 = vector.shape_cast %83 : vector<160xf32> to vector<160x1xf32>
    %cst_52 = arith.constant 3.200000e+01 : f32
    %85 = vector.broadcast %cst_52 : f32 to vector<160x1xf32>
    %86 = arith.divf %84, %85 : vector<160x1xf32>
    %87 = vector.broadcast %86 : vector<160x1xf32> to vector<160x32xf32>
    %88 = arith.subf %82, %87 : vector<160x32xf32>
    %89 = arith.mulf %88, %88 : vector<160x32xf32>
    %cst_53 = arith.constant dense<0.000000e+00> : vector<160xf32>
    %90 = vector.multi_reduction <add>, %89, %cst_53 [1] : vector<160x32xf32> to vector<160xf32>
    %91 = vector.shape_cast %90 : vector<160xf32> to vector<160x1xf32>
    %cst_54 = arith.constant 3.200000e+01 : f32
    %92 = vector.broadcast %cst_54 : f32 to vector<160x1xf32>
    %93 = arith.divf %91, %92 : vector<160x1xf32>
    %cst_55 = arith.constant 9.99999974E-6 : f32
    %94 = vector.broadcast %cst_55 : f32 to vector<160x1xf32>
    %95 = arith.addf %93, %94 : vector<160x1xf32>
    %96 = math.rsqrt %95 : vector<160x1xf32>
    %97 = vector.broadcast %96 : vector<160x1xf32> to vector<160x32xf32>
    %98 = arith.mulf %88, %97 : vector<160x32xf32>
    %c0_56 = arith.constant 0 : index
    %c0_57 = arith.constant 0 : index
    %99 = vector.load %arg15[%c0_56, %c0_57] : memref<1x32xf32, #tpu.memory_space<vmem>>, vector<1x32xf32>
    %100 = vector.broadcast %99 : vector<1x32xf32> to vector<160x32xf32>
    %101 = arith.mulf %98, %100 : vector<160x32xf32>
    %c0_58 = arith.constant 0 : index
    %c0_59 = arith.constant 0 : index
    %102 = vector.load %arg16[%c0_58, %c0_59] : memref<1x32xf32, #tpu.memory_space<vmem>>, vector<1x32xf32>
    %103 = vector.broadcast %102 : vector<1x32xf32> to vector<160x32xf32>
    %104 = arith.addf %101, %103 : vector<160x32xf32>
    %c0_60 = arith.constant 0 : index
    %c0_61 = arith.constant 0 : index
    %c0_62 = arith.constant 0 : index
    %105 = vector.load %arg17[%c0_60, %c0_61, %c0_62] : memref<1x160x32xf32, #tpu.memory_space<vmem>>, vector<1x160x32xf32>
    %106 = vector.shape_cast %105 : vector<1x160x32xf32> to vector<160x32xf32>
    %107 = vector.shape_cast %104 : vector<160x32xf32> to vector<1x160x32xf32>
    tpu.vector_store %arg17[%c0_60, %c0_61, %c0_62], %107 {strides = array<i32>} : memref<1x160x32xf32, #tpu.memory_space<vmem>>, vector<1x160x32xf32>,
    return
  }
  func.func @transform_0(%arg0: i32, %arg1: i32) -> (i32, i32, i32) {
    %c0_i32 = arith.constant 0 : i32
    %c0_i32_0 = arith.constant 0 : i32
    return %arg0, %arg1, %c0_i32 : i32, i32, i32
  }
  func.func @transform_1(%arg0: i32, %arg1: i32) -> (i32, i32, i32) {
    %c0_i32 = arith.constant 0 : i32
    %c0_i32_0 = arith.constant 0 : i32
    return %arg0, %arg1, %c0_i32 : i32, i32, i32
  }
  func.func @transform_2(%arg0: i32, %arg1: i32) -> (i32, i32) {
    %c0_i32 = arith.constant 0 : i32
    %c0_i32_0 = arith.constant 0 : i32
    %c0_i32_1 = arith.constant 0 : i32
    return %c0_i32, %c0_i32_0 : i32, i32
  }
  func.func @transform_3(%arg0: i32, %arg1: i32) -> (i32, i32) {
    %c0_i32 = arith.constant 0 : i32
    %c0_i32_0 = arith.constant 0 : i32
    %c0_i32_1 = arith.constant 0 : i32
    return %c0_i32, %c0_i32_0 : i32, i32
  }
  func.func @transform_4(%arg0: i32, %arg1: i32) -> (i32, i32, i32) {
    %c0_i32 = arith.constant 0 : i32
    %c0_i32_0 = arith.constant 0 : i32
    %c0_i32_1 = arith.constant 0 : i32
    %c0_i32_2 = arith.constant 0 : i32
    return %c0_i32, %c0_i32_0, %c0_i32_1 : i32, i32, i32
  }
  func.func @transform_5(%arg0: i32, %arg1: i32) -> (i32, i32) {
    %c0_i32 = arith.constant 0 : i32
    %c0_i32_0 = arith.constant 0 : i32
    %c0_i32_1 = arith.constant 0 : i32
    return %c0_i32, %c0_i32_0 : i32, i32
  }
  func.func @transform_6(%arg0: i32, %arg1: i32) -> (i32, i32) {
    %c0_i32 = arith.constant 0 : i32
    %c0_i32_0 = arith.constant 0 : i32
    %c0_i32_1 = arith.constant 0 : i32
    return %c0_i32, %c0_i32_0 : i32, i32
  }
  func.func @transform_7(%arg0: i32, %arg1: i32) -> (i32, i32) {
    %c0_i32 = arith.constant 0 : i32
    %c0_i32_0 = arith.constant 0 : i32
    %c0_i32_1 = arith.constant 0 : i32
    return %c0_i32, %c0_i32_0 : i32, i32
  }
  func.func @transform_8(%arg0: i32, %arg1: i32) -> (i32, i32) {
    %c0_i32 = arith.constant 0 : i32
    %c0_i32_0 = arith.constant 0 : i32
    %c0_i32_1 = arith.constant 0 : i32
    return %c0_i32, %c0_i32_0 : i32, i32
  }
  func.func @transform_9(%arg0: i32, %arg1: i32) -> (i32, i32) {
    %c0_i32 = arith.constant 0 : i32
    %c0_i32_0 = arith.constant 0 : i32
    %c0_i32_1 = arith.constant 0 : i32
    return %c0_i32, %c0_i32_0 : i32, i32
  }
  func.func @transform_10(%arg0: i32, %arg1: i32) -> (i32, i32) {
    %c0_i32 = arith.constant 0 : i32
    %c0_i32_0 = arith.constant 0 : i32
    %c0_i32_1 = arith.constant 0 : i32
    return %c0_i32, %c0_i32_0 : i32, i32
  }
  func.func @transform_11(%arg0: i32, %arg1: i32) -> (i32, i32) {
    %c0_i32 = arith.constant 0 : i32
    %c0_i32_0 = arith.constant 0 : i32
    %c0_i32_1 = arith.constant 0 : i32
    return %c0_i32, %c0_i32_0 : i32, i32
  }
  func.func @transform_12(%arg0: i32, %arg1: i32) -> (i32, i32) {
    %c0_i32 = arith.constant 0 : i32
    %c0_i32_0 = arith.constant 0 : i32
    %c0_i32_1 = arith.constant 0 : i32
    return %c0_i32, %c0_i32_0 : i32, i32
  }
  func.func @transform_13(%arg0: i32, %arg1: i32) -> (i32, i32) {
    %c0_i32 = arith.constant 0 : i32
    %c0_i32_0 = arith.constant 0 : i32
    %c0_i32_1 = arith.constant 0 : i32
    return %c0_i32, %c0_i32_0 : i32, i32
  }
  func.func @transform_14(%arg0: i32, %arg1: i32) -> (i32, i32) {
    %c0_i32 = arith.constant 0 : i32
    %c0_i32_0 = arith.constant 0 : i32
    %c0_i32_1 = arith.constant 0 : i32
    return %c0_i32, %c0_i32_0 : i32, i32
  }
  func.func @transform_15(%arg0: i32, %arg1: i32) -> (i32, i32, i32) {
    %c0_i32 = arith.constant 0 : i32
    %c0_i32_0 = arith.constant 0 : i32
    return %arg0, %arg1, %c0_i32 : i32, i32, i32
  }
}

</mosaic_0001>

<llo_original>
// kernel: tpu_custom_call.1
$region0: #{tpu_custom_call.1}
  #allocation0 [shape = 'u32[]', space=smem, size = 0x4, offset = 0x4, fixed_abs, tag = 'smem constant byte address 0x4 - core index']
  #allocation1 [shape = 'u32[144,128]{1,0:T(1,128)}', space=vmem, size = 0x12000, scoped, tag = 'internal scratch']
  #allocation2 [shape = 'f32[8,32]{1,0:T(8,128)}', space=vmem, size = 0x1000, scoped, tag = 'scratch operand']
  %s0 = inlined_call_operand.vmem [shape: f32[2,160,32], index: 0, kind: input, shape index: {}]
  %s1 = inlined_call_operand.vmem [shape: f32[2,160,32], index: 1, kind: input, shape index: {}]
  %s2 = inlined_call_operand.vmem [shape: f32[1,32], index: 2, kind: input, shape index: {}]
  %s3 = inlined_call_operand.vmem [shape: f32[1,32], index: 3, kind: input, shape index: {}]
  %s4 = inlined_call_operand.vmem [shape: f32[3,32,128], index: 4, kind: input, shape index: {}]
  %s5 = inlined_call_operand.vmem [shape: f32[1,128], index: 5, kind: input, shape index: {}]
  %s6 = inlined_call_operand.vmem [shape: f32[128,32], index: 6, kind: input, shape index: {}]
  %s7 = inlined_call_operand.vmem [shape: f32[1,32], index: 7, kind: input, shape index: {}]
  %s8 = inlined_call_operand.vmem [shape: f32[32,32], index: 8, kind: input, shape index: {}]
  %s9 = inlined_call_operand.vmem [shape: f32[32,32], index: 9, kind: input, shape index: {}]
  %s10 = inlined_call_operand.vmem [shape: f32[1,32], index: 10, kind: input, shape index: {}]
  %s11 = inlined_call_operand.vmem [shape: f32[32,32], index: 11, kind: input, shape index: {}]
  %s12 = inlined_call_operand.vmem [shape: f32[1,32], index: 12, kind: input, shape index: {}]
  %s13 = inlined_call_operand.vmem [shape: f32[1,32], index: 13, kind: input, shape index: {}]
  %s14 = inlined_call_operand.vmem [shape: f32[1,32], index: 14, kind: input, shape index: {}]
  %s15 = inlined_call_operand.vmem [shape: f32[2,160,32], index: 15, kind: output, shape index: {}]
  %s16 = sld [smem:[#allocation0]]
  $region97: #{tpu_custom_call.1} parent=0
    _
  %s18 = ssub.s32 1, %s16
  %s19 = scalar_select 0, %s18, %s16
  loop: start=0, step=1, limit=4
  $region2: #{tpu_custom_call.1} parent=0 // loop_pre_header
    _
  $region3: #{tpu_custom_call.1} parent=0 // loop_header
    %s21 = sphi 0, %s25
    %p22 = scmp.ge.s32.totalorder %s21, 4
    %s28 = sphi 0, %s40
    %s29 = sphi 0, %s36
    %s30 = sphi 0, %s28
    %s31 = sphi 0, %s29
    %s32 = sphi 0, %s30
    %s33 = sphi 0, %s31
    %s45 = sphi 0, %s47
    %s48 = sphi 0, %s45
    %s49 = sphi 0, %s48
    %s65 = sphi 0, %s49
    %s73 = sphi 0, %s75
    %s76 = sphi 0, %s73
    %s77 = sphi 0, %s76
    %s93 = sphi 0, %s77
    %s97 = sphi 0, %s97
    %s99 = sphi 0, %s97
    %s100 = sphi 0, %s99
    %s114 = sphi 0, %s100
    %s118 = sphi 0, %s118
    %s120 = sphi 0, %s118
    %s121 = sphi 0, %s120
    %s135 = sphi 0, %s121
    %s139 = sphi 0, %s139
    %s141 = sphi 0, %s139
    %s142 = sphi 0, %s141
    %s156 = sphi 0, %s142
    %s160 = sphi 0, %s160
    %s162 = sphi 0, %s160
    %s163 = sphi 0, %s162
    %s177 = sphi 0, %s163
    %s181 = sphi 0, %s181
    %s183 = sphi 0, %s181
    %s184 = sphi 0, %s183
    %s198 = sphi 0, %s184
    %s202 = sphi 0, %s202
    %s204 = sphi 0, %s202
    %s205 = sphi 0, %s204
    %s219 = sphi 0, %s205
    %s223 = sphi 0, %s223
    %s225 = sphi 0, %s223
    %s226 = sphi 0, %s225
    %s240 = sphi 0, %s226
    %s244 = sphi 0, %s244
    %s246 = sphi 0, %s244
    %s247 = sphi 0, %s246
    %s261 = sphi 0, %s247
    %s265 = sphi 0, %s265
    %s267 = sphi 0, %s265
    %s268 = sphi 0, %s267
    %s282 = sphi 0, %s268
    %s286 = sphi 0, %s286
    %s288 = sphi 0, %s286
    %s289 = sphi 0, %s288
    %s303 = sphi 0, %s289
    %s307 = sphi 0, %s307
    %s309 = sphi 0, %s307
    %s310 = sphi 0, %s309
    %s324 = sphi 0, %s310
    %s328 = sphi 0, %s328
    %s330 = sphi 0, %s328
    %s331 = sphi 0, %s330
    %s345 = sphi 0, %s331
    %s349 = sphi 0, %s349
    %s351 = sphi 0, %s349
    %s352 = sphi 0, %s351
    %s366 = sphi 0, %s352
    %s374 = sphi 0, %s376
    %s377 = sphi 0, %s374
    %s378 = sphi 0, %s377
    %s394 = sphi 0, %s378
  $region4: #{tpu_custom_call.1} parent=0 // loop_header_branch
    %24 = sbr.rel (%p22) target = $region8
  $region5: #{tpu_custom_call.1} parent=0 // loop_body
    %s26 = ssub.s32 %s21, 1
    %s27 = ssub.s32 %s21, 2
    %s34 = sadd.s32 1, %s29
    %p35 = scmp.ge.s32.totalorder %s34, 1
    %s36 = scalar_select %p35, 0, %s34
    %s37 = sadd.s32 1, %s28
    %s38 = scalar_select %p35, %s37, %s28
    %p39 = scmp.ge.s32.totalorder %s38, 2
    %s40 = scalar_select %p39, 0, %s38
    %s41 = ssub.s32 %s28, %s40
    %s42 = ssub.s32 %s29, %s36
    %s43 = sor.u32 %s41, %s42
    %p44 = scmp.eq.s32.totalorder %s43, 0
    %s46 = sadd.s32 %s45, 1
    %s47 = scalar_select %p44, %s45, %s46
    %p50 = pneg %p44
    %p51 = scmp.eq.s32.totalorder %s21, 1
    %p52 = por %p50, %p51
    %p53 = scmp.ne.s32.totalorder %s45, %s48
    %p54 = scmp.eq.s32.totalorder %s21, 0
    %p55 = por %p53, %p54
    %p56 = scmp.ne.s32.totalorder %s45, %s48
    %p57 = scmp.eq.s32.totalorder %s26, 1
    %p58 = por %p56, %p57
    %p59 = scmp.ne.s32.totalorder %s48, %s49
    %p60 = scmp.eq.s32.totalorder %s26, 0
    %p61 = por %p59, %p60
    %p62 = scmp.ne.s32.totalorder %s48, %s49
    %p63 = scmp.eq.s32.totalorder %s27, 1
    %p64 = por %p62, %p63
    %p66 = scmp.ne.s32.totalorder %s49, %s65
    %p67 = scmp.eq.s32.totalorder %s27, 0
    %p68 = por %p66, %p67
    %s69 = ssub.s32 %s28, %s40
    %s70 = ssub.s32 %s29, %s36
    %s71 = sor.u32 %s69, %s70
    %p72 = scmp.eq.s32.totalorder %s71, 0
    %s74 = sadd.s32 %s73, 1
    %s75 = scalar_select %p72, %s73, %s74
    %p78 = pneg %p72
    %p79 = scmp.eq.s32.totalorder %s21, 1
    %p80 = por %p78, %p79
    %p81 = scmp.ne.s32.totalorder %s73, %s76
    %p82 = scmp.eq.s32.totalorder %s21, 0
    %p83 = por %p81, %p82
    %p84 = scmp.ne.s32.totalorder %s73, %s76
    %p85 = scmp.eq.s32.totalorder %s26, 1
    %p86 = por %p84, %p85
    %p87 = scmp.ne.s32.totalorder %s76, %s77
    %p88 = scmp.eq.s32.totalorder %s26, 0
    %p89 = por %p87, %p88
    %p90 = scmp.ne.s32.totalorder %s76, %s77
    %p91 = scmp.eq.s32.totalorder %s27, 1
    %p92 = por %p90, %p91
    %p94 = scmp.ne.s32.totalorder %s77, %s93
    %p95 = scmp.eq.s32.totalorder %s27, 0
    %p96 = por %p94, %p95
    %s98 = sadd.s32 %s97, 1
    %p101 = scmp.eq.s32.totalorder %s21, 1
    %p102 = scmp.ne.s32.totalorder %s97, %s99
    %p103 = scmp.eq.s32.totalorder %s21, 0
    %p104 = por %p102, %p103
    %p105 = scmp.ne.s32.totalorder %s97, %s99
    %p106 = scmp.eq.s32.totalorder %s26, 1
    %p107 = por %p105, %p106
    %p108 = scmp.ne.s32.totalorder %s99, %s100
    %p109 = scmp.eq.s32.totalorder %s26, 0
    %p110 = por %p108, %p109
    %p111 = scmp.ne.s32.totalorder %s99, %s100
    %p112 = scmp.eq.s32.totalorder %s27, 1
    %p113 = por %p111, %p112
    %p115 = scmp.ne.s32.totalorder %s100, %s114
    %p116 = scmp.eq.s32.totalorder %s27, 0
    %p117 = por %p115, %p116
    %s119 = sadd.s32 %s118, 1
    %p122 = scmp.eq.s32.totalorder %s21, 1
    %p123 = scmp.ne.s32.totalorder %s118, %s120
    %p124 = scmp.eq.s32.totalorder %s21, 0
    %p125 = por %p123, %p124
    %p126 = scmp.ne.s32.totalorder %s118, %s120
    %p127 = scmp.eq.s32.totalorder %s26, 1
    %p128 = por %p126, %p127
    %p129 = scmp.ne.s32.totalorder %s120, %s121
    %p130 = scmp.eq.s32.totalorder %s26, 0
    %p131 = por %p129, %p130
    %p132 = scmp.ne.s32.totalorder %s120, %s121
    %p133 = scmp.eq.s32.totalorder %s27, 1
    %p134 = por %p132, %p133
    %p136 = scmp.ne.s32.totalorder %s121, %s135
    %p137 = scmp.eq.s32.totalorder %s27, 0
    %p138 = por %p136, %p137
    %s140 = sadd.s32 %s139, 1
    %p143 = scmp.eq.s32.totalorder %s21, 1
    %p144 = scmp.ne.s32.totalorder %s139, %s141
    %p145 = scmp.eq.s32.totalorder %s21, 0
    %p146 = por %p144, %p145
    %p147 = scmp.ne.s32.totalorder %s139, %s141
    %p148 = scmp.eq.s32.totalorder %s26, 1
    %p149 = por %p147, %p148
    %p150 = scmp.ne.s32.totalorder %s141, %s142
    %p151 = scmp.eq.s32.totalorder %s26, 0
    %p152 = por %p150, %p151
    %p153 = scmp.ne.s32.totalorder %s141, %s142
    %p154 = scmp.eq.s32.totalorder %s27, 1
    %p155 = por %p153, %p154
    %p157 = scmp.ne.s32.totalorder %s142, %s156
    %p158 = scmp.eq.s32.totalorder %s27, 0
    %p159 = por %p157, %p158
    %s161 = sadd.s32 %s160, 1
    %p164 = scmp.eq.s32.totalorder %s21, 1
    %p165 = scmp.ne.s32.totalorder %s160, %s162
    %p166 = scmp.eq.s32.totalorder %s21, 0
    %p167 = por %p165, %p166
    %p168 = scmp.ne.s32.totalorder %s160, %s162
    %p169 = scmp.eq.s32.totalorder %s26, 1
    %p170 = por %p168, %p169
    %p171 = scmp.ne.s32.totalorder %s162, %s163
    %p172 = scmp.eq.s32.totalorder %s26, 0
    %p173 = por %p171, %p172
    %p174 = scmp.ne.s32.totalorder %s162, %s163
    %p175 = scmp.eq.s32.totalorder %s27, 1
    %p176 = por %p174, %p175
    %p178 = scmp.ne.s32.totalorder %s163, %s177
    %p179 = scmp.eq.s32.totalorder %s27, 0
    %p180 = por %p178, %p179
    %s182 = sadd.s32 %s181, 1
    %p185 = scmp.eq.s32.totalorder %s21, 1
    %p186 = scmp.ne.s32.totalorder %s181, %s183
    %p187 = scmp.eq.s32.totalorder %s21, 0
    %p188 = por %p186, %p187
    %p189 = scmp.ne.s32.totalorder %s181, %s183
    %p190 = scmp.eq.s32.totalorder %s26, 1
    %p191 = por %p189, %p190
    %p192 = scmp.ne.s32.totalorder %s183, %s184
    %p193 = scmp.eq.s32.totalorder %s26, 0
    %p194 = por %p192, %p193
    %p195 = scmp.ne.s32.totalorder %s183, %s184
    %p196 = scmp.eq.s32.totalorder %s27, 1
    %p197 = por %p195, %p196
    %p199 = scmp.ne.s32.totalorder %s184, %s198
    %p200 = scmp.eq.s32.totalorder %s27, 0
    %p201 = por %p199, %p200
    %s203 = sadd.s32 %s202, 1
    %p206 = scmp.eq.s32.totalorder %s21, 1
    %p207 = scmp.ne.s32.totalorder %s202, %s204
    %p208 = scmp.eq.s32.totalorder %s21, 0
    %p209 = por %p207, %p208
    %p210 = scmp.ne.s32.totalorder %s202, %s204
    %p211 = scmp.eq.s32.totalorder %s26, 1
    %p212 = por %p210, %p211
    %p213 = scmp.ne.s32.totalorder %s204, %s205
    %p214 = scmp.eq.s32.totalorder %s26, 0
    %p215 = por %p213, %p214
    %p216 = scmp.ne.s32.totalorder %s204, %s205
    %p217 = scmp.eq.s32.totalorder %s27, 1
    %p218 = por %p216, %p217
    %p220 = scmp.ne.s32.totalorder %s205, %s219
    %p221 = scmp.eq.s32.totalorder %s27, 0
    %p222 = por %p220, %p221
    %s224 = sadd.s32 %s223, 1
    %p227 = scmp.eq.s32.totalorder %s21, 1
    %p228 = scmp.ne.s32.totalorder %s223, %s225
    %p229 = scmp.eq.s32.totalorder %s21, 0
    %p230 = por %p228, %p229
    %p231 = scmp.ne.s32.totalorder %s223, %s225
    %p232 = scmp.eq.s32.totalorder %s26, 1
    %p233 = por %p231, %p232
    %p234 = scmp.ne.s32.totalorder %s225, %s226
    %p235 = scmp.eq.s32.totalorder %s26, 0
    %p236 = por %p234, %p235
    %p237 = scmp.ne.s32.totalorder %s225, %s226
    %p238 = scmp.eq.s32.totalorder %s27, 1
    %p239 = por %p237, %p238
    %p241 = scmp.ne.s32.totalorder %s226, %s240
    %p242 = scmp.eq.s32.totalorder %s27, 0
    %p243 = por %p241, %p242
    %s245 = sadd.s32 %s244, 1
    %p248 = scmp.eq.s32.totalorder %s21, 1
    %p249 = scmp.ne.s32.totalorder %s244, %s246
    %p250 = scmp.eq.s32.totalorder %s21, 0
    %p251 = por %p249, %p250
    %p252 = scmp.ne.s32.totalorder %s244, %s246
    %p253 = scmp.eq.s32.totalorder %s26, 1
    %p254 = por %p252, %p253
    %p255 = scmp.ne.s32.totalorder %s246, %s247
    %p256 = scmp.eq.s32.totalorder %s26, 0
    %p257 = por %p255, %p256
    %p258 = scmp.ne.s32.totalorder %s246, %s247
    %p259 = scmp.eq.s32.totalorder %s27, 1
    %p260 = por %p258, %p259
    %p262 = scmp.ne.s32.totalorder %s247, %s261
    %p263 = scmp.eq.s32.totalorder %s27, 0
    %p264 = por %p262, %p263
    %s266 = sadd.s32 %s265, 1
    %p269 = scmp.eq.s32.totalorder %s21, 1
    %p270 = scmp.ne.s32.totalorder %s265, %s267
    %p271 = scmp.eq.s32.totalorder %s21, 0
    %p272 = por %p270, %p271
    %p273 = scmp.ne.s32.totalorder %s265, %s267
    %p274 = scmp.eq.s32.totalorder %s26, 1
    %p275 = por %p273, %p274
    %p276 = scmp.ne.s32.totalorder %s267, %s268
    %p277 = scmp.eq.s32.totalorder %s26, 0
    %p278 = por %p276, %p277
    %p279 = scmp.ne.s32.totalorder %s267, %s268
    %p280 = scmp.eq.s32.totalorder %s27, 1
    %p281 = por %p279, %p280
    %p283 = scmp.ne.s32.totalorder %s268, %s282
    %p284 = scmp.eq.s32.totalorder %s27, 0
    %p285 = por %p283, %p284
    %s287 = sadd.s32 %s286, 1
    %p290 = scmp.eq.s32.totalorder %s21, 1
    %p291 = scmp.ne.s32.totalorder %s286, %s288
    %p292 = scmp.eq.s32.totalorder %s21, 0
    %p293 = por %p291, %p292
    %p294 = scmp.ne.s32.totalorder %s286, %s288
    %p295 = scmp.eq.s32.totalorder %s26, 1
    %p296 = por %p294, %p295
    %p297 = scmp.ne.s32.totalorder %s288, %s289
    %p298 = scmp.eq.s32.totalorder %s26, 0
    %p299 = por %p297, %p298
    %p300 = scmp.ne.s32.totalorder %s288, %s289
    %p301 = scmp.eq.s32.totalorder %s27, 1
    %p302 = por %p300, %p301
    %p304 = scmp.ne.s32.totalorder %s289, %s303
    %p305 = scmp.eq.s32.totalorder %s27, 0
    %p306 = por %p304, %p305
    %s308 = sadd.s32 %s307, 1
    %p311 = scmp.eq.s32.totalorder %s21, 1
    %p312 = scmp.ne.s32.totalorder %s307, %s309
    %p313 = scmp.eq.s32.totalorder %s21, 0
    %p314 = por %p312, %p313
    %p315 = scmp.ne.s32.totalorder %s307, %s309
    %p316 = scmp.eq.s32.totalorder %s26, 1
    %p317 = por %p315, %p316
    %p318 = scmp.ne.s32.totalorder %s309, %s310
    %p319 = scmp.eq.s32.totalorder %s26, 0
    %p320 = por %p318, %p319
    %p321 = scmp.ne.s32.totalorder %s309, %s310
    %p322 = scmp.eq.s32.totalorder %s27, 1
    %p323 = por %p321, %p322
    %p325 = scmp.ne.s32.totalorder %s310, %s324
    %p326 = scmp.eq.s32.totalorder %s27, 0
    %p327 = por %p325, %p326
    %s329 = sadd.s32 %s328, 1
    %p332 = scmp.eq.s32.totalorder %s21, 1
    %p333 = scmp.ne.s32.totalorder %s328, %s330
    %p334 = scmp.eq.s32.totalorder %s21, 0
    %p335 = por %p333, %p334
    %p336 = scmp.ne.s32.totalorder %s328, %s330
    %p337 = scmp.eq.s32.totalorder %s26, 1
    %p338 = por %p336, %p337
    %p339 = scmp.ne.s32.totalorder %s330, %s331
    %p340 = scmp.eq.s32.totalorder %s26, 0
    %p341 = por %p339, %p340
    %p342 = scmp.ne.s32.totalorder %s330, %s331
    %p343 = scmp.eq.s32.totalorder %s27, 1
    %p344 = por %p342, %p343
    %p346 = scmp.ne.s32.totalorder %s331, %s345
    %p347 = scmp.eq.s32.totalorder %s27, 0
    %p348 = por %p346, %p347
    %s350 = sadd.s32 %s349, 1
    %p353 = scmp.eq.s32.totalorder %s21, 1
    %p354 = scmp.ne.s32.totalorder %s349, %s351
    %p355 = scmp.eq.s32.totalorder %s21, 0
    %p356 = por %p354, %p355
    %p357 = scmp.ne.s32.totalorder %s349, %s351
    %p358 = scmp.eq.s32.totalorder %s26, 1
    %p359 = por %p357, %p358
    %p360 = scmp.ne.s32.totalorder %s351, %s352
    %p361 = scmp.eq.s32.totalorder %s26, 0
    %p362 = por %p360, %p361
    %p363 = scmp.ne.s32.totalorder %s351, %s352
    %p364 = scmp.eq.s32.totalorder %s27, 1
    %p365 = por %p363, %p364
    %p367 = scmp.ne.s32.totalorder %s352, %s366
    %p368 = scmp.eq.s32.totalorder %s27, 0
    %p369 = por %p367, %p368
    %s370 = ssub.s32 %s28, %s40
    %s371 = ssub.s32 %s29, %s36
    %s372 = sor.u32 %s370, %s371
    %p373 = scmp.eq.s32.totalorder %s372, 0
    %s375 = sadd.s32 %s374, 1
    %s376 = scalar_select %p373, %s374, %s375
    %p379 = pneg %p373
    %p380 = scmp.eq.s32.totalorder %s21, 1
    %p381 = por %p379, %p380
    %p382 = scmp.ne.s32.totalorder %s374, %s377
    %p383 = scmp.eq.s32.totalorder %s21, 0
    %p384 = por %p382, %p383
    %p385 = scmp.ne.s32.totalorder %s374, %s377
    %p386 = scmp.eq.s32.totalorder %s26, 1
    %p387 = por %p385, %p386
    %p388 = scmp.ne.s32.totalorder %s377, %s378
    %p389 = scmp.eq.s32.totalorder %s26, 0
    %p390 = por %p388, %p389
    %p391 = scmp.ne.s32.totalorder %s377, %s378
    %p392 = scmp.eq.s32.totalorder %s27, 1
    %p393 = por %p391, %p392
    %p395 = scmp.ne.s32.totalorder %s378, %s394
    %p396 = scmp.eq.s32.totalorder %s27, 0
    %p397 = por %p395, %p396
    %p398 = scmp.le.s32.totalorder 1, %s21
    %p399 = scmp.lt.s32.totalorder %s21, 3
    %p400 = pnand %p398, %p399
    %p401 = pneg %p400
    // Predicated region
    $region9: #{tpu_custom_call.1} parent=5 // pred_check
      _
    $region10: #{tpu_custom_call.1} parent=5 // pred_check_branch
      %403 = sbr.rel (%p400) target = $region12
    $region11: #{tpu_custom_call.1} parent=5 // pred_region
      %s404 = ssub.s32 %s21, 1
      // Predicated region
      $region13: #{tpu_custom_call.1} parent=11 // pred_check
        %p405 = pneg %p110
      $region14: #{tpu_custom_call.1} parent=11 // pred_check_branch
        %407 = sbr.rel (%p405) target = $region16
      $region15: #{tpu_custom_call.1} parent=11 // pred_region
        _
      $region16: #{tpu_custom_call.1} parent=11 // pred_fallthru
        _
      // Predicated region
      $region17: #{tpu_custom_call.1} parent=11 // pred_check
        %p408 = pneg %p131
      $region18: #{tpu_custom_call.1} parent=11 // pred_check_branch
        %410 = sbr.rel (%p408) target = $region20
      $region19: #{tpu_custom_call.1} parent=11 // pred_region
        _
      $region20: #{tpu_custom_call.1} parent=11 // pred_fallthru
        _
      // Predicated region
      $region21: #{tpu_custom_call.1} parent=11 // pred_check
        %p411 = pneg %p152
      $region22: #{tpu_custom_call.1} parent=11 // pred_check_branch
        %413 = sbr.rel (%p411) target = $region24
      $region23: #{tpu_custom_call.1} parent=11 // pred_region
        _
      $region24: #{tpu_custom_call.1} parent=11 // pred_fallthru
        _
      // Predicated region
      $region25: #{tpu_custom_call.1} parent=11 // pred_check
        %p414 = pneg %p173
      $region26: #{tpu_custom_call.1} parent=11 // pred_check_branch
        %416 = sbr.rel (%p414) target = $region28
      $region27: #{tpu_custom_call.1} parent=11 // pred_region
        _
      $region28: #{tpu_custom_call.1} parent=11 // pred_fallthru
        _
      // Predicated region
      $region29: #{tpu_custom_call.1} parent=11 // pred_check
        %p417 = pneg %p194
      $region30: #{tpu_custom_call.1} parent=11 // pred_check_branch
        %419 = sbr.rel (%p417) target = $region32
      $region31: #{tpu_custom_call.1} parent=11 // pred_region
        _
      $region32: #{tpu_custom_call.1} parent=11 // pred_fallthru
        _
      // Predicated region
      $region33: #{tpu_custom_call.1} parent=11 // pred_check
        %p420 = pneg %p215
      $region34: #{tpu_custom_call.1} parent=11 // pred_check_branch
        %422 = sbr.rel (%p420) target = $region36
      $region35: #{tpu_custom_call.1} parent=11 // pred_region
        _
      $region36: #{tpu_custom_call.1} parent=11 // pred_fallthru
        _
      // Predicated region
      $region37: #{tpu_custom_call.1} parent=11 // pred_check
        %p423 = pneg %p236
      $region38: #{tpu_custom_call.1} parent=11 // pred_check_branch
        %425 = sbr.rel (%p423) target = $region40
      $region39: #{tpu_custom_call.1} parent=11 // pred_region
        _
      $region40: #{tpu_custom_call.1} parent=11 // pred_fallthru
        _
      // Predicated region
      $region41: #{tpu_custom_call.1} parent=11 // pred_check
        %p426 = pneg %p257
      $region42: #{tpu_custom_call.1} parent=11 // pred_check_branch
        %428 = sbr.rel (%p426) target = $region44
      $region43: #{tpu_custom_call.1} parent=11 // pred_region
        _
      $region44: #{tpu_custom_call.1} parent=11 // pred_fallthru
        _
      // Predicated region
      $region45: #{tpu_custom_call.1} parent=11 // pred_check
        %p429 = pneg %p278
      $region46: #{tpu_custom_call.1} parent=11 // pred_check_branch
        %431 = sbr.rel (%p429) target = $region48
      $region47: #{tpu_custom_call.1} parent=11 // pred_region
        _
      $region48: #{tpu_custom_call.1} parent=11 // pred_fallthru
        _
      // Predicated region
      $region49: #{tpu_custom_call.1} parent=11 // pred_check
        %p432 = pneg %p299
      $region50: #{tpu_custom_call.1} parent=11 // pred_check_branch
        %434 = sbr.rel (%p432) target = $region52
      $region51: #{tpu_custom_call.1} parent=11 // pred_region
        _
      $region52: #{tpu_custom_call.1} parent=11 // pred_fallthru
        _
      // Predicated region
      $region53: #{tpu_custom_call.1} parent=11 // pred_check
        %p435 = pneg %p320
      $region54: #{tpu_custom_call.1} parent=11 // pred_check_branch
        %437 = sbr.rel (%p435) target = $region56
      $region55: #{tpu_custom_call.1} parent=11 // pred_region
        _
      $region56: #{tpu_custom_call.1} parent=11 // pred_fallthru
        _
      // Predicated region
      $region57: #{tpu_custom_call.1} parent=11 // pred_check
        %p438 = pneg %p341
      $region58: #{tpu_custom_call.1} parent=11 // pred_check_branch
        %440 = sbr.rel (%p438) target = $region60
      $region59: #{tpu_custom_call.1} parent=11 // pred_region
        _
      $region60: #{tpu_custom_call.1} parent=11 // pred_fallthru
        _
      // Predicated region
      $region61: #{tpu_custom_call.1} parent=11 // pred_check
        %p441 = pneg %p362
      $region62: #{tpu_custom_call.1} parent=11 // pred_check_branch
        %443 = sbr.rel (%p441) target = $region64
      $region63: #{tpu_custom_call.1} parent=11 // pred_region
        _
      $region64: #{tpu_custom_call.1} parent=11 // pred_fallthru
        _
    $region12: #{tpu_custom_call.1} parent=5 // pred_fallthru
      _
    %p444 = scmp.lt.s32.totalorder %s21, 2
    // Predicated region
    $region65: #{tpu_custom_call.1} parent=5 // pred_check
      %p445 = pneg %p444
    $region66: #{tpu_custom_call.1} parent=5 // pred_check_branch
      %447 = sbr.rel (%p445) target = $region68
    $region67: #{tpu_custom_call.1} parent=5 // pred_region
      // Predicated region
      $region69: #{tpu_custom_call.1} parent=67 // pred_check
        %p448 = pneg %p55
      $region70: #{tpu_custom_call.1} parent=67 // pred_check_branch
        %450 = sbr.rel (%p448) target = $region72
      $region71: #{tpu_custom_call.1} parent=67 // pred_region
        %s451 = smul.u32 20, %s29
        %p452 = scmp.lt.s32.totalorder %s28, 1
        %s453 = scalar_select %p452, %s28, 1
        %p454 = scmp.lt.s32.totalorder %s451, 19
        %s455 = scalar_select %p454, %s451, 19
        %s456 = smul.addr %s453, 20
        %s457 = sadd.s32 %s455, %s456
        %s458 = smul.addr %s457, 8
        %s459 = scalar_lea.vmem %s0, %s458
        %s460 = smul.u32 20, %s29
      $region72: #{tpu_custom_call.1} parent=67 // pred_fallthru
        _
      // Predicated region
      $region73: #{tpu_custom_call.1} parent=67 // pred_check
        %p461 = pneg %p83
      $region74: #{tpu_custom_call.1} parent=67 // pred_check_branch
        %463 = sbr.rel (%p461) target = $region76
      $region75: #{tpu_custom_call.1} parent=67 // pred_region
        %s464 = smul.u32 20, %s29
        %p465 = scmp.lt.s32.totalorder %s28, 1
        %s466 = scalar_select %p465, %s28, 1
        %p467 = scmp.lt.s32.totalorder %s464, 19
        %s468 = scalar_select %p467, %s464, 19
        %s469 = smul.addr %s466, 20
        %s470 = sadd.s32 %s468, %s469
        %s471 = smul.addr %s470, 8
        %s472 = scalar_lea.vmem %s1, %s471
        %s473 = smul.u32 20, %s29
      $region76: #{tpu_custom_call.1} parent=67 // pred_fallthru
        _
    $region68: #{tpu_custom_call.1} parent=5 // pred_fallthru
      _
    %p474 = scmp.le.s32.totalorder 1, %s21
    %p475 = scmp.lt.s32.totalorder %s21, 3
    %p476 = pnand %p474, %p475
    %p477 = pneg %p476
    // Predicated region
    $region77: #{tpu_custom_call.1} parent=5 // pred_check
      _
    $region78: #{tpu_custom_call.1} parent=5 // pred_check_branch
      %479 = sbr.rel (%p476) target = $region80
    $region79: #{tpu_custom_call.1} parent=5 // pred_region
      %s480 = ssub.s32 %s21, 1
      %s481 = smul.u32 20, %s31
      %p482 = scmp.lt.s32.totalorder %s30, 1
      %s483 = scalar_select %p482, %s30, 1
      %p484 = scmp.lt.s32.totalorder %s481, 19
      %s485 = scalar_select %p484, %s481, 19
      %s486 = smul.addr %s483, 20
      %s487 = sadd.s32 %s485, %s486
      %s488 = smul.addr %s487, 8
      %s489 = scalar_lea.vmem %s0, %s488
      %p490 = pneg %p61
      %p491 = pneg %p58
      %s492 = smul.u32 20, %s31
      %p493 = scmp.lt.s32.totalorder %s30, 1
      %s494 = scalar_select %p493, %s30, 1
      %p495 = scmp.lt.s32.totalorder %s492, 19
      %s496 = scalar_select %p495, %s492, 19
      %s497 = smul.addr %s494, 20
      %s498 = sadd.s32 %s496, %s497
      %s499 = smul.addr %s498, 8
      %s500 = scalar_lea.vmem %s1, %s499
      %p501 = pneg %p89
      %p502 = pneg %p86
      %p503 = pneg %p110
      %p504 = pneg %p107
      %p505 = pneg %p131
      %p506 = pneg %p128
      %p507 = pneg %p152
      %p508 = pneg %p149
      %p509 = pneg %p173
      %p510 = pneg %p170
      %p511 = pneg %p194
      %p512 = pneg %p191
      %p513 = pneg %p215
      %p514 = pneg %p212
      %p515 = pneg %p236
      %p516 = pneg %p233
      %p517 = pneg %p257
      %p518 = pneg %p254
      %p519 = pneg %p278
      %p520 = pneg %p275
      %p521 = pneg %p299
      %p522 = pneg %p296
      %p523 = pneg %p320
      %p524 = pneg %p317
      %p525 = pneg %p341
      %p526 = pneg %p338
      %p527 = pneg %p362
      %p528 = pneg %p359
      %p529 = pneg %p390
      %p530 = pneg %p387
      %s531 = smul.u32 20, %s31
      %p532 = scmp.lt.s32.totalorder %s30, 1
      %s533 = scalar_select %p532, %s30, 1
      %p534 = scmp.lt.s32.totalorder %s531, 19
      %s535 = scalar_select %p534, %s531, 19
      %s536 = smul.addr %s533, 20
      %s537 = sadd.s32 %s535, %s536
      %s538 = smul.addr %s537, 8
      %s539 = scalar_lea.vmem %s15, %s538
      %s540 = smul.u32 20, %s31
      %p541 = scmp.lt.s32.totalorder %s30, 1
      %s542 = scalar_select %p541, %s30, 1
      %p543 = scmp.lt.s32.totalorder %s540, 19
      %s544 = scalar_select %p543, %s540, 19
      %s545 = smul.addr %s542, 20
      %s546 = sadd.s32 %s544, %s545
      %s547 = smul.addr %s546, 8
      %s548 = scalar_lea.vmem %s0, %s547
      %s549 = smul.u32 20, %s31
      %s550 = smul.u32 20, %s31
      %p551 = scmp.lt.s32.totalorder %s30, 1
      %s552 = scalar_select %p551, %s30, 1
      %p553 = scmp.lt.s32.totalorder %s550, 19
      %s554 = scalar_select %p553, %s550, 19
      %s555 = smul.addr %s552, 20
      %s556 = sadd.s32 %s554, %s555
      %s557 = smul.addr %s556, 8
      %s558 = scalar_lea.vmem %s1, %s557
      %s559 = smul.u32 20, %s31
      %s560 = smul.u32 20, %s31
      %p561 = scmp.lt.s32.totalorder %s30, 1
      %s562 = scalar_select %p561, %s30, 1
      %p563 = scmp.lt.s32.totalorder %s560, 19
      %s564 = scalar_select %p563, %s560, 19
      %s565 = smul.addr %s562, 20
      %s566 = sadd.s32 %s564, %s565
      %s567 = smul.addr %s566, 8
      %s568 = scalar_lea.vmem %s15, %s567
      %s569 = smul.u32 20, %s31
      %v570 = vld [vmem:[%s548] sm:$0xff]
      %v571 = vld [vmem:[%s548 + $0x8] sm:$0xff]
      %v572 = vld [vmem:[%s548 + $0x10] sm:$0xff]
      %v573 = vld [vmem:[%s548 + $0x18] sm:$0xff]
      %v574 = vld [vmem:[%s548 + $0x20] sm:$0xff]
      %v575 = vld [vmem:[%s548 + $0x28] sm:$0xff]
      %v576 = vld [vmem:[%s548 + $0x30] sm:$0xff]
      %v577 = vld [vmem:[%s548 + $0x38] sm:$0xff]
      %v578 = vld [vmem:[%s548 + $0x40] sm:$0xff]
      %v579 = vld [vmem:[%s548 + $0x48] sm:$0xff]
      %v580 = vld [vmem:[%s548 + $0x50] sm:$0xff]
      %v581 = vld [vmem:[%s548 + $0x58] sm:$0xff]
      %v582 = vld [vmem:[%s548 + $0x60] sm:$0xff]
      %v583 = vld [vmem:[%s548 + $0x68] sm:$0xff]
      %v584 = vld [vmem:[%s548 + $0x70] sm:$0xff]
      %v585 = vld [vmem:[%s548 + $0x78] sm:$0xff]
      %v586 = vld [vmem:[%s548 + $0x80] sm:$0xff]
      %v587 = vld [vmem:[%s548 + $0x88] sm:$0xff]
      %v588 = vld [vmem:[%s548 + $0x90] sm:$0xff]
      %v589 = vld [vmem:[%s548 + $0x98] sm:$0xff]
      %v590 = vld [vmem:[%s558] sm:$0xff]
      %v591 = vld [vmem:[%s558 + $0x8] sm:$0xff]
      %v592 = vld [vmem:[%s558 + $0x10] sm:$0xff]
      %v593 = vld [vmem:[%s558 + $0x18] sm:$0xff]
      %v594 = vld [vmem:[%s558 + $0x20] sm:$0xff]
      %v595 = vld [vmem:[%s558 + $0x28] sm:$0xff]
      %v596 = vld [vmem:[%s558 + $0x30] sm:$0xff]
      %v597 = vld [vmem:[%s558 + $0x38] sm:$0xff]
      %v598 = vld [vmem:[%s558 + $0x40] sm:$0xff]
      %v599 = vld [vmem:[%s558 + $0x48] sm:$0xff]
      %v600 = vld [vmem:[%s558 + $0x50] sm:$0xff]
      %v601 = vld [vmem:[%s558 + $0x58] sm:$0xff]
      %v602 = vld [vmem:[%s558 + $0x60] sm:$0xff]
      %v603 = vld [vmem:[%s558 + $0x68] sm:$0xff]
      %v604 = vld [vmem:[%s558 + $0x70] sm:$0xff]
      %v605 = vld [vmem:[%s558 + $0x78] sm:$0xff]
      %v606 = vld [vmem:[%s558 + $0x80] sm:$0xff]
      %v607 = vld [vmem:[%s558 + $0x88] sm:$0xff]
      %v608 = vld [vmem:[%s558 + $0x90] sm:$0xff]
      %v609 = vld [vmem:[%s558 + $0x98] sm:$0xff]
      %v610 = vadd.f32 %v570, %v590
      %v611 = vadd.f32 %v571, %v591
      %v612 = vadd.f32 %v572, %v592
      %v613 = vadd.f32 %v573, %v593
      %v614 = vadd.f32 %v574, %v594
      %v615 = vadd.f32 %v575, %v595
      %v616 = vadd.f32 %v576, %v596
      %v617 = vadd.f32 %v577, %v597
      %v618 = vadd.f32 %v578, %v598
      %v619 = vadd.f32 %v579, %v599
      %v620 = vadd.f32 %v580, %v600
      %v621 = vadd.f32 %v581, %v601
      %v622 = vadd.f32 %v582, %v602
      %v623 = vadd.f32 %v583, %v603
      %v624 = vadd.f32 %v584, %v604
      %v625 = vadd.f32 %v585, %v605
      %v626 = vadd.f32 %v586, %v606
      %v627 = vadd.f32 %v587, %v607
      %v628 = vadd.f32 %v588, %v608
      %v629 = vadd.f32 %v589, %v609
      %vm630 = vcmask 261120
      %v631 = vsel %vm630, %v610, 0.0
      %632 = vadd.xlane.f32.xlu0 %v631
      %v633 = vpop.xlane.xlu0 %632
      %v634 = vsel %vm630, %v611, 0.0
      %635 = vadd.xlane.f32.xlu0 %v634
      %v636 = vpop.xlane.xlu0 %635
      %v637 = vsel %vm630, %v612, 0.0
      %638 = vadd.xlane.f32.xlu0 %v637
      %v639 = vpop.xlane.xlu0 %638
      %v640 = vsel %vm630, %v613, 0.0
      %641 = vadd.xlane.f32.xlu0 %v640
      %v642 = vpop.xlane.xlu0 %641
      %v643 = vsel %vm630, %v614, 0.0
      %644 = vadd.xlane.f32.xlu0 %v643
      %v645 = vpop.xlane.xlu0 %644
      %v646 = vsel %vm630, %v615, 0.0
      %647 = vadd.xlane.f32.xlu0 %v646
      %v648 = vpop.xlane.xlu0 %647
      %v649 = vsel %vm630, %v616, 0.0
      %650 = vadd.xlane.f32.xlu0 %v649
      %v651 = vpop.xlane.xlu0 %650
      %v652 = vsel %vm630, %v617, 0.0
      %653 = vadd.xlane.f32.xlu0 %v652
      %v654 = vpop.xlane.xlu0 %653
      %v655 = vsel %vm630, %v618, 0.0
      %656 = vadd.xlane.f32.xlu0 %v655
      %v657 = vpop.xlane.xlu0 %656
      %v658 = vsel %vm630, %v619, 0.0
      %659 = vadd.xlane.f32.xlu0 %v658
      %v660 = vpop.xlane.xlu0 %659
      %v661 = vsel %vm630, %v620, 0.0
      %662 = vadd.xlane.f32.xlu0 %v661
      %v663 = vpop.xlane.xlu0 %662
      %v664 = vsel %vm630, %v621, 0.0
      %665 = vadd.xlane.f32.xlu0 %v664
      %v666 = vpop.xlane.xlu0 %665
      %v667 = vsel %vm630, %v622, 0.0
      %668 = vadd.xlane.f32.xlu0 %v667
      %v669 = vpop.xlane.xlu0 %668
      %v670 = vsel %vm630, %v623, 0.0
      %671 = vadd.xlane.f32.xlu0 %v670
      %v672 = vpop.xlane.xlu0 %671
      %v673 = vsel %vm630, %v624, 0.0
      %674 = vadd.xlane.f32.xlu0 %v673
      %v675 = vpop.xlane.xlu0 %674
      %v676 = vsel %vm630, %v625, 0.0
      %677 = vadd.xlane.f32.xlu0 %v676
      %v678 = vpop.xlane.xlu0 %677
      %v679 = vsel %vm630, %v626, 0.0
      %680 = vadd.xlane.f32.xlu0 %v679
      %v681 = vpop.xlane.xlu0 %680
      %v682 = vsel %vm630, %v627, 0.0
      %683 = vadd.xlane.f32.xlu0 %v682
      %v684 = vpop.xlane.xlu0 %683
      %v685 = vsel %vm630, %v628, 0.0
      %686 = vadd.xlane.f32.xlu0 %v685
      %v687 = vpop.xlane.xlu0 %686
      %v688 = vsel %vm630, %v629, 0.0
      %689 = vadd.xlane.f32.xlu0 %v688
      %v690 = vpop.xlane.xlu0 %689
      %v691 = vrcp.pop 32.0
      %v692 = vmul.f32 %v633, %v691
      %v693 = vmul.f32 %v636, %v691
      %v694 = vmul.f32 %v639, %v691
      %v695 = vmul.f32 %v642, %v691
      %v696 = vmul.f32 %v645, %v691
      %v697 = vmul.f32 %v648, %v691
      %v698 = vmul.f32 %v651, %v691
      %v699 = vmul.f32 %v654, %v691
      %v700 = vmul.f32 %v657, %v691
      %v701 = vmul.f32 %v660, %v691
      %v702 = vmul.f32 %v663, %v691
      %v703 = vmul.f32 %v666, %v691
      %v704 = vmul.f32 %v669, %v691
      %v705 = vmul.f32 %v672, %v691
      %v706 = vmul.f32 %v675, %v691
      %v707 = vmul.f32 %v678, %v691
      %v708 = vmul.f32 %v681, %v691
      %v709 = vmul.f32 %v684, %v691
      %v710 = vmul.f32 %v687, %v691
      %v711 = vmul.f32 %v690, %v691
      %v712 = vsub.f32 %v610, %v692
      %v713 = vsub.f32 %v611, %v693
      %v714 = vsub.f32 %v612, %v694
      %v715 = vsub.f32 %v613, %v695
      %v716 = vsub.f32 %v614, %v696
      %v717 = vsub.f32 %v615, %v697
      %v718 = vsub.f32 %v616, %v698
      %v719 = vsub.f32 %v617, %v699
      %v720 = vsub.f32 %v618, %v700
      %v721 = vsub.f32 %v619, %v701
      %v722 = vsub.f32 %v620, %v702
      %v723 = vsub.f32 %v621, %v703
      %v724 = vsub.f32 %v622, %v704
      %v725 = vsub.f32 %v623, %v705
      %v726 = vsub.f32 %v624, %v706
      %v727 = vsub.f32 %v625, %v707
      %v728 = vsub.f32 %v626, %v708
      %v729 = vsub.f32 %v627, %v709
      %v730 = vsub.f32 %v628, %v710
      %v731 = vsub.f32 %v629, %v711
      %v732 = vmul.f32 %v712, %v712
      %v733 = vmul.f32 %v713, %v713
      %v734 = vmul.f32 %v714, %v714
      %v735 = vmul.f32 %v715, %v715
      %v736 = vmul.f32 %v716, %v716
      %v737 = vmul.f32 %v717, %v717
      %v738 = vmul.f32 %v718, %v718
      %v739 = vmul.f32 %v719, %v719
      %v740 = vmul.f32 %v720, %v720
      %v741 = vmul.f32 %v721, %v721
      %v742 = vmul.f32 %v722, %v722
      %v743 = vmul.f32 %v723, %v723
      %v744 = vmul.f32 %v724, %v724
      %v745 = vmul.f32 %v725, %v725
      %v746 = vmul.f32 %v726, %v726
      %v747 = vmul.f32 %v727, %v727
      %v748 = vmul.f32 %v728, %v728
      %v749 = vmul.f32 %v729, %v729
      %v750 = vmul.f32 %v730, %v730
      %v751 = vmul.f32 %v731, %v731
      %v752 = vsel %vm630, %v732, 0.0
      %753 = vadd.xlane.f32.xlu0 %v752
      %v754 = vpop.xlane.xlu0 %753
      %v755 = vsel %vm630, %v733, 0.0
      %756 = vadd.xlane.f32.xlu0 %v755
      %v757 = vpop.xlane.xlu0 %756
      %v758 = vsel %vm630, %v734, 0.0
      %759 = vadd.xlane.f32.xlu0 %v758
      %v760 = vpop.xlane.xlu0 %759
      %v761 = vsel %vm630, %v735, 0.0
      %762 = vadd.xlane.f32.xlu0 %v761
      %v763 = vpop.xlane.xlu0 %762
      %v764 = vsel %vm630, %v736, 0.0
      %765 = vadd.xlane.f32.xlu0 %v764
      %v766 = vpop.xlane.xlu0 %765
      %v767 = vsel %vm630, %v737, 0.0
      %768 = vadd.xlane.f32.xlu0 %v767
      %v769 = vpop.xlane.xlu0 %768
      %v770 = vsel %vm630, %v738, 0.0
      %771 = vadd.xlane.f32.xlu0 %v770
      %v772 = vpop.xlane.xlu0 %771
      %v773 = vsel %vm630, %v739, 0.0
      %774 = vadd.xlane.f32.xlu0 %v773
      %v775 = vpop.xlane.xlu0 %774
      %v776 = vsel %vm630, %v740, 0.0
      %777 = vadd.xlane.f32.xlu0 %v776
      %v778 = vpop.xlane.xlu0 %777
      %v779 = vsel %vm630, %v741, 0.0
      %780 = vadd.xlane.f32.xlu0 %v779
      %v781 = vpop.xlane.xlu0 %780
      %v782 = vsel %vm630, %v742, 0.0
      %783 = vadd.xlane.f32.xlu0 %v782
      %v784 = vpop.xlane.xlu0 %783
      %v785 = vsel %vm630, %v743, 0.0
      %786 = vadd.xlane.f32.xlu0 %v785
      %v787 = vpop.xlane.xlu0 %786
      %v788 = vsel %vm630, %v744, 0.0
      %789 = vadd.xlane.f32.xlu0 %v788
      %v790 = vpop.xlane.xlu0 %789
      %v791 = vsel %vm630, %v745, 0.0
      %792 = vadd.xlane.f32.xlu0 %v791
      %v793 = vpop.xlane.xlu0 %792
      %v794 = vsel %vm630, %v746, 0.0
      %795 = vadd.xlane.f32.xlu0 %v794
      %v796 = vpop.xlane.xlu0 %795
      %v797 = vsel %vm630, %v747, 0.0
      %798 = vadd.xlane.f32.xlu0 %v797
      %v799 = vpop.xlane.xlu0 %798
      %v800 = vsel %vm630, %v748, 0.0
      %801 = vadd.xlane.f32.xlu0 %v800
      %v802 = vpop.xlane.xlu0 %801
      %v803 = vsel %vm630, %v749, 0.0
      %804 = vadd.xlane.f32.xlu0 %v803
      %v805 = vpop.xlane.xlu0 %804
      %v806 = vsel %vm630, %v750, 0.0
      %807 = vadd.xlane.f32.xlu0 %v806
      %v808 = vpop.xlane.xlu0 %807
      %v809 = vsel %vm630, %v751, 0.0
      %810 = vadd.xlane.f32.xlu0 %v809
      %v811 = vpop.xlane.xlu0 %810
      %v812 = vmul.f32 %v754, %v691
      %v813 = vmul.f32 %v757, %v691
      %v814 = vmul.f32 %v760, %v691
      %v815 = vmul.f32 %v763, %v691
      %v816 = vmul.f32 %v766, %v691
      %v817 = vmul.f32 %v769, %v691
      %v818 = vmul.f32 %v772, %v691
      %v819 = vmul.f32 %v775, %v691
      %v820 = vmul.f32 %v778, %v691
      %v821 = vmul.f32 %v781, %v691
      %v822 = vmul.f32 %v784, %v691
      %v823 = vmul.f32 %v787, %v691
      %v824 = vmul.f32 %v790, %v691
      %v825 = vmul.f32 %v793, %v691
      %v826 = vmul.f32 %v796, %v691
      %v827 = vmul.f32 %v799, %v691
      %v828 = vmul.f32 %v802, %v691
      %v829 = vmul.f32 %v805, %v691
      %v830 = vmul.f32 %v808, %v691
      %v831 = vmul.f32 %v811, %v691
      %v832 = vadd.f32 %v812, 1e-05
      %v833 = vadd.f32 %v813, 1e-05
      %v834 = vadd.f32 %v814, 1e-05
      %v835 = vadd.f32 %v815, 1e-05
      %v836 = vadd.f32 %v816, 1e-05
      %v837 = vadd.f32 %v817, 1e-05
      %v838 = vadd.f32 %v818, 1e-05
      %v839 = vadd.f32 %v819, 1e-05
      %v840 = vadd.f32 %v820, 1e-05
      %v841 = vadd.f32 %v821, 1e-05
      %v842 = vadd.f32 %v822, 1e-05
      %v843 = vadd.f32 %v823, 1e-05
      %v844 = vadd.f32 %v824, 1e-05
      %v845 = vadd.f32 %v825, 1e-05
      %v846 = vadd.f32 %v826, 1e-05
      %v847 = vadd.f32 %v827, 1e-05
      %v848 = vadd.f32 %v828, 1e-05
      %v849 = vadd.f32 %v829, 1e-05
      %v850 = vadd.f32 %v830, 1e-05
      %v851 = vadd.f32 %v831, 1e-05
      %v852 = vrsqrt.pop %v832
      %v853 = vrsqrt.pop %v833
      %v854 = vrsqrt.pop %v834
      %v855 = vrsqrt.pop %v835
      %v856 = vrsqrt.pop %v836
      %v857 = vrsqrt.pop %v837
      %v858 = vrsqrt.pop %v838
      %v859 = vrsqrt.pop %v839
      %v860 = vrsqrt.pop %v840
      %v861 = vrsqrt.pop %v841
      %v862 = vrsqrt.pop %v842
      %v863 = vrsqrt.pop %v843
      %v864 = vrsqrt.pop %v844
      %v865 = vrsqrt.pop %v845
      %v866 = vrsqrt.pop %v846
      %v867 = vrsqrt.pop %v847
      %v868 = vrsqrt.pop %v848
      %v869 = vrsqrt.pop %v849
      %v870 = vrsqrt.pop %v850
      %v871 = vrsqrt.pop %v851
      %v872 = vmul.f32 %v712, %v852
      %v873 = vmul.f32 %v713, %v853
      %v874 = vmul.f32 %v714, %v854
      %v875 = vmul.f32 %v715, %v855
      %v876 = vmul.f32 %v716, %v856
      %v877 = vmul.f32 %v717, %v857
      %v878 = vmul.f32 %v718, %v858
      %v879 = vmul.f32 %v719, %v859
      %v880 = vmul.f32 %v720, %v860
      %v881 = vmul.f32 %v721, %v861
      %v882 = vmul.f32 %v722, %v862
      %v883 = vmul.f32 %v723, %v863
      %v884 = vmul.f32 %v724, %v864
      %v885 = vmul.f32 %v725, %v865
      %v886 = vmul.f32 %v726, %v866
      %v887 = vmul.f32 %v727, %v867
      %v888 = vmul.f32 %v728, %v868
      %v889 = vmul.f32 %v729, %v869
      %v890 = vmul.f32 %v730, %v870
      %v891 = vmul.f32 %v731, %v871
      %v892 = vld [vmem:[%s2] sm:$0x1]
      %v894 = vlaneseq
      %v895 = vshrl.u32 %v894, 7
      %v896 = vsub.s32 0, %v895
      %v897 = vrot.slane %v892, %v896
      %v899 = vmul.f32 %v872, %v897
      %v900 = vmul.f32 %v873, %v897
      %v901 = vmul.f32 %v874, %v897
      %v902 = vmul.f32 %v875, %v897
      %v903 = vmul.f32 %v876, %v897
      %v904 = vmul.f32 %v877, %v897
      %v905 = vmul.f32 %v878, %v897
      %v906 = vmul.f32 %v879, %v897
      %v907 = vmul.f32 %v880, %v897
      %v908 = vmul.f32 %v881, %v897
      %v909 = vmul.f32 %v882, %v897
      %v910 = vmul.f32 %v883, %v897
      %v911 = vmul.f32 %v884, %v897
      %v912 = vmul.f32 %v885, %v897
      %v913 = vmul.f32 %v886, %v897
      %v914 = vmul.f32 %v887, %v897
      %v915 = vmul.f32 %v888, %v897
      %v916 = vmul.f32 %v889, %v897
      %v917 = vmul.f32 %v890, %v897
      %v918 = vmul.f32 %v891, %v897
      %v919 = vld [vmem:[%s3] sm:$0x1]
      %v921 = vlaneseq
      %v922 = vshrl.u32 %v921, 7
      %v923 = vsub.s32 0, %v922
      %v924 = vrot.slane %v919, %v923
      %v926 = vadd.f32 %v899, %v924
      %v927 = vadd.f32 %v900, %v924
      %v928 = vadd.f32 %v901, %v924
      %v929 = vadd.f32 %v902, %v924
      %v930 = vadd.f32 %v903, %v924
      %v931 = vadd.f32 %v904, %v924
      %v932 = vadd.f32 %v905, %v924
      %v933 = vadd.f32 %v906, %v924
      %v934 = vadd.f32 %v907, %v924
      %v935 = vadd.f32 %v908, %v924
      %v936 = vadd.f32 %v909, %v924
      %v937 = vadd.f32 %v910, %v924
      %v938 = vadd.f32 %v911, %v924
      %v939 = vadd.f32 %v912, %v924
      %v940 = vadd.f32 %v913, %v924
      %v941 = vadd.f32 %v914, %v924
      %v942 = vadd.f32 %v915, %v924
      %v943 = vadd.f32 %v916, %v924
      %v944 = vadd.f32 %v917, %v924
      %v945 = vadd.f32 %v918, %v924
      %p946 = scmp.eq.s32.totalorder %s31, 0
      // Predicated region
      $region81: #{tpu_custom_call.1} parent=79 // pred_check
        %p947 = pneg %p946
      $region82: #{tpu_custom_call.1} parent=79 // pred_check_branch
        %949 = sbr.rel (%p947) target = $region84
      $region83: #{tpu_custom_call.1} parent=79 // pred_region
        %950 = vst.msk [vmem:[#allocation2] sm:$0xff] %vm630, 0.0
      $region84: #{tpu_custom_call.1} parent=79 // pred_fallthru
        _
      %v951 = vld [vmem:[#allocation2] sm:$0xff]
      %952 = vst.msk [vmem:[#allocation2] sm:$0xff] %vm630, %v945
      %v953 = vld [vmem:[%s5] sm:$0x1]
      %v954 = vld [vmem:[%s4] sm:$0xff]
      %v955 = vld [vmem:[%s4 + $0x8] sm:$0xff]
      %v956 = vld [vmem:[%s4 + $0x10] sm:$0xff]
      %v957 = vld [vmem:[%s4 + $0x18] sm:$0xff]
      %vm979 = vcmask 1041408
      %v980 = vrot.slane %v951, 6
      %v981 = vrot.slane %v926, 6
      %v982 = vsel %vm979, %v980, %v981
      %v983 = vrot.slane %v927, 6
      %v984 = vsel %vm979, %v981, %v983
      %v985 = vrot.slane %v928, 6
      %v986 = vsel %vm979, %v983, %v985
      %v987 = vrot.slane %v929, 6
      %v988 = vsel %vm979, %v985, %v987
      %v989 = vrot.slane %v930, 6
      %v990 = vsel %vm979, %v987, %v989
      %v991 = vrot.slane %v931, 6
      %v992 = vsel %vm979, %v989, %v991
      %v993 = vrot.slane %v932, 6
      %v994 = vsel %vm979, %v991, %v993
      %v995 = vrot.slane %v933, 6
      %v996 = vsel %vm979, %v993, %v995
      %v997 = vrot.slane %v934, 6
      %v998 = vsel %vm979, %v995, %v997
      %v999 = vrot.slane %v935, 6
      %v1000 = vsel %vm979, %v997, %v999
      %v1001 = vrot.slane %v936, 6
      %v1002 = vsel %vm979, %v999, %v1001
      %v1003 = vrot.slane %v937, 6
      %v1004 = vsel %vm979, %v1001, %v1003
      %v1005 = vrot.slane %v938, 6
      %v1006 = vsel %vm979, %v1003, %v1005
      %v1007 = vrot.slane %v939, 6
      %v1008 = vsel %vm979, %v1005, %v1007
      %v1009 = vrot.slane %v940, 6
      %v1010 = vsel %vm979, %v1007, %v1009
      %v1011 = vrot.slane %v941, 6
      %v1012 = vsel %vm979, %v1009, %v1011
      %v1013 = vrot.slane %v942, 6
      %v1014 = vsel %vm979, %v1011, %v1013
      %v1015 = vrot.slane %v943, 6
      %v1016 = vsel %vm979, %v1013, %v1015
      %v1017 = vrot.slane %v944, 6
      %v1018 = vsel %vm979, %v1015, %v1017
      %v1019 = vrot.slane %v945, 6
      %v1020 = vsel %vm979, %v1017, %v1019
      %v1021 = vsel %vm630, %v982, 0
      %v1023 = vsel %vm630, %v984, 0
      %v1025 = vsel %vm630, %v986, 0
      %v1027 = vsel %vm630, %v988, 0
      %v1029 = vsel %vm630, %v990, 0
      %v1031 = vsel %vm630, %v992, 0
      %v1033 = vsel %vm630, %v994, 0
      %v1035 = vsel %vm630, %v996, 0
      %v1037 = vsel %vm630, %v998, 0
      %v1039 = vsel %vm630, %v1000, 0
      %v1041 = vsel %vm630, %v1002, 0
      %v1043 = vsel %vm630, %v1004, 0
      %v1045 = vsel %vm630, %v1006, 0
      %v1047 = vsel %vm630, %v1008, 0
      %v1049 = vsel %vm630, %v1010, 0
      %v1051 = vsel %vm630, %v1012, 0
      %v1053 = vsel %vm630, %v1014, 0
      %v1055 = vsel %vm630, %v1016, 0
      %v1057 = vsel %vm630, %v1018, 0
      %v1059 = vsel %vm630, %v1020, 0
      %1061 = vmatprep.subr.mxu0 0.0
      %1062 = vmatpush1.msra.mxu0 %v954
      %1063 = vmatprep.subr.mxu0 0.0
      %1064 = vmatpush1.msra.mxu0 %v955
      %1065 = vmatprep.subr.mxu0 0.0
      %1066 = vmatpush1.msra.mxu0 %v956
      %1067 = vmatprep.subr.mxu0 0.0
      %1068 = vmatpush1.msra.mxu0 %v957
      %1069 = vmatprep.subr.mxu0 0.0
      %1070 = vmatpush1.msra.mxu0 0.0
      %1071 = vmatprep.subr.mxu0 0.0
      %1072 = vmatpush1.msra.mxu0 0.0
      %1073 = vmatprep.subr.mxu0 0.0
      %1074 = vmatpush1.msra.mxu0 0.0
      %1075 = vmatprep.subr.mxu0 0.0
      %1076 = vmatpush1.msra.mxu0 0.0
      %1077 = vmatprep.subr.mxu0 0.0
      %1078 = vmatpush1.msra.mxu0 0.0
      %1079 = vmatprep.subr.mxu0 0.0
      %1080 = vmatpush1.msra.mxu0 0.0
      %1081 = vmatprep.subr.mxu0 0.0
      %1082 = vmatpush1.msra.mxu0 0.0
      %1083 = vmatprep.subr.mxu0 0.0
      %1084 = vmatpush1.msra.mxu0 0.0
      %1085 = vmatprep.subr.mxu0 0.0
      %1086 = vmatpush1.msra.mxu0 0.0
      %1087 = vmatprep.subr.mxu0 0.0
      %1088 = vmatpush1.msra.mxu0 0.0
      %1089 = vmatprep.subr.mxu0 0.0
      %1090 = vmatpush1.msra.mxu0 0.0
      %1091 = vmatprep.subr.mxu0 0.0
      %1092 = vmatpush1.msra.mxu0 0.0
      %1093 = vmatprep.subr.mxu0 0.0
      %1094 = vmatpush1.msra.mxu0 0.0
      %1095 = vmatprep.subr.mxu0 0.0
      %1096 = vmatpush1.msra.mxu0 0.0
      %1097 = vmatprep.subr.mxu0 0.0
      %1098 = vmatpush1.msra.mxu0 0.0
      %1099 = vmatprep.subr.mxu0 0.0
      %1100 = vmatpush1.msra.mxu0 0.0
      %1101 = vmatprep.subr.mxu0 0.0
      %1102 = vmatpush1.msra.mxu0 0.0
      %1103 = vmatprep.subr.mxu0 0.0
      %1104 = vmatpush1.msra.mxu0 0.0
      %1105 = vmatprep.subr.mxu0 0.0
      %1106 = vmatpush1.msra.mxu0 0.0
      %1107 = vmatprep.subr.mxu0 0.0
      %1108 = vmatpush1.msra.mxu0 0.0
      %1109 = vmatprep.subr.mxu0 0.0
      %1110 = vmatpush1.msra.mxu0 0.0
      %1111 = vmatprep.subr.mxu0 0.0
      %1112 = vmatpush1.msra.mxu0 0.0
      %1113 = vmatprep.subr.mxu0 0.0
      %1114 = vmatpush1.msra.mxu0 0.0
      %1115 = vmatprep.subr.mxu0 0.0
      %1116 = vmatpush1.msra.mxu0 0.0
      %1117 = vmatprep.subr.mxu0 0.0
      %1118 = vmatpush1.msra.mxu0 0.0
      %1119 = vmatprep.subr.mxu0 0.0
      %1120 = vmatpush1.msra.mxu0 0.0
      %1121 = vmatprep.subr.mxu0 0.0
      %1122 = vmatpush1.msra.mxu0 0.0
      %1123 = vmatprep.subr.mxu0 0.0
      %1124 = vmatpush1.msra.mxu0 0.0
      %1125 = vmatprep.mubr.f32.mxu0 0.0
      %1126 = vmatmul.mubr.f32.gmra.mrb[0].mxu0 %v1021
      %v1127 = vpop.f32.mrb[0].mxu0
      %v1128 = vadd.f32 0.0, %v1127
      %v1129 = vpop.f32.mrb[0].mxu0
      %1130 = vmatprep.mubr.f32.mxu0 0.0
      %1131 = vmatmul.mubr.f32.gmra.mrb[0].mxu0 %v1023
      %v1132 = vpop.f32.mrb[0].mxu0
      %v1133 = vadd.f32 0.0, %v1132
      %v1134 = vpop.f32.mrb[0].mxu0
      %1135 = vmatprep.mubr.f32.mxu0 0.0
      %1136 = vmatmul.mubr.f32.gmra.mrb[0].mxu0 %v1025
      %v1137 = vpop.f32.mrb[0].mxu0
      %v1138 = vadd.f32 0.0, %v1137
      %v1139 = vpop.f32.mrb[0].mxu0
      %1140 = vmatprep.mubr.f32.mxu0 0.0
      %1141 = vmatmul.mubr.f32.gmra.mrb[0].mxu0 %v1027
      %v1142 = vpop.f32.mrb[0].mxu0
      %v1143 = vadd.f32 0.0, %v1142
      %v1144 = vpop.f32.mrb[0].mxu0
      %1145 = vmatprep.mubr.f32.mxu0 0.0
      %1146 = vmatmul.mubr.f32.gmra.mrb[0].mxu0 %v1029
      %v1147 = vpop.f32.mrb[0].mxu0
      %v1148 = vadd.f32 0.0, %v1147
      %v1149 = vpop.f32.mrb[0].mxu0
      %1150 = vmatprep.mubr.f32.mxu0 0.0
      %1151 = vmatmul.mubr.f32.gmra.mrb[0].mxu0 %v1031
      %v1152 = vpop.f32.mrb[0].mxu0
      %v1153 = vadd.f32 0.0, %v1152
      %v1154 = vpop.f32.mrb[0].mxu0
      %1155 = vmatprep.mubr.f32.mxu0 0.0
      %1156 = vmatmul.mubr.f32.gmra.mrb[0].mxu0 %v1033
      %v1157 = vpop.f32.mrb[0].mxu0
      %v1158 = vadd.f32 0.0, %v1157
      %v1159 = vpop.f32.mrb[0].mxu0
      %1160 = vmatprep.mubr.f32.mxu0 0.0
      %1161 = vmatmul.mubr.f32.gmra.mrb[0].mxu0 %v1035
      %v1162 = vpop.f32.mrb[0].mxu0
      %v1163 = vadd.f32 0.0, %v1162
      %v1164 = vpop.f32.mrb[0].mxu0
      %1165 = vmatprep.mubr.f32.mxu0 0.0
      %1166 = vmatmul.mubr.f32.gmra.mrb[0].mxu0 %v1037
      %v1167 = vpop.f32.mrb[0].mxu0
      %v1168 = vadd.f32 0.0, %v1167
      %v1169 = vpop.f32.mrb[0].mxu0
      %1170 = vmatprep.mubr.f32.mxu0 0.0
      %1171 = vmatmul.mubr.f32.gmra.mrb[0].mxu0 %v1039
      %v1172 = vpop.f32.mrb[0].mxu0
      %v1173 = vadd.f32 0.0, %v1172
      %v1174 = vpop.f32.mrb[0].mxu0
      %1175 = vmatprep.mubr.f32.mxu0 0.0
      %1176 = vmatmul.mubr.f32.gmra.mrb[0].mxu0 %v1041
      %v1177 = vpop.f32.mrb[0].mxu0
      %v1178 = vadd.f32 0.0, %v1177
      %v1179 = vpop.f32.mrb[0].mxu0
      %1180 = vmatprep.mubr.f32.mxu0 0.0
      %1181 = vmatmul.mubr.f32.gmra.mrb[0].mxu0 %v1043
      %v1182 = vpop.f32.mrb[0].mxu0
      %v1183 = vadd.f32 0.0, %v1182
      %v1184 = vpop.f32.mrb[0].mxu0
      %1185 = vmatprep.mubr.f32.mxu0 0.0
      %1186 = vmatmul.mubr.f32.gmra.mrb[0].mxu0 %v1045
      %v1187 = vpop.f32.mrb[0].mxu0
      %v1188 = vadd.f32 0.0, %v1187
      %v1189 = vpop.f32.mrb[0].mxu0
      %1190 = vmatprep.mubr.f32.mxu0 0.0
      %1191 = vmatmul.mubr.f32.gmra.mrb[0].mxu0 %v1047
      %v1192 = vpop.f32.mrb[0].mxu0
      %v1193 = vadd.f32 0.0, %v1192
      %v1194 = vpop.f32.mrb[0].mxu0
      %1195 = vmatprep.mubr.f32.mxu0 0.0
      %1196 = vmatmul.mubr.f32.gmra.mrb[0].mxu0 %v1049
      %v1197 = vpop.f32.mrb[0].mxu0
      %v1198 = vadd.f32 0.0, %v1197
      %v1199 = vpop.f32.mrb[0].mxu0
      %1200 = vmatprep.mubr.f32.mxu0 0.0
      %1201 = vmatmul.mubr.f32.gmra.mrb[0].mxu0 %v1051
      %v1202 = vpop.f32.mrb[0].mxu0
      %v1203 = vadd.f32 0.0, %v1202
      %v1204 = vpop.f32.mrb[0].mxu0
      %1205 = vmatprep.mubr.f32.mxu0 0.0
      %1206 = vmatmul.mubr.f32.gmra.mrb[0].mxu0 %v1053
      %v1207 = vpop.f32.mrb[0].mxu0
      %v1208 = vadd.f32 0.0, %v1207
      %v1209 = vpop.f32.mrb[0].mxu0
      %1210 = vmatprep.mubr.f32.mxu0 0.0
      %1211 = vmatmul.mubr.f32.gmra.mrb[0].mxu0 %v1055
      %v1212 = vpop.f32.mrb[0].mxu0
      %v1213 = vadd.f32 0.0, %v1212
      %v1214 = vpop.f32.mrb[0].mxu0
      %1215 = vmatprep.mubr.f32.mxu0 0.0
      %1216 = vmatmul.mubr.f32.gmra.mrb[0].mxu0 %v1057
      %v1217 = vpop.f32.mrb[0].mxu0
      %v1218 = vadd.f32 0.0, %v1217
      %v1219 = vpop.f32.mrb[0].mxu0
      %1220 = vmatprep.mubr.f32.mxu0 0.0
      %1221 = vmatmul.mubr.f32.gmra.mrb[0].mxu0 %v1059
      %v1222 = vpop.f32.mrb[0].mxu0
      %v1223 = vadd.f32 0.0, %v1222
      %v1224 = vpop.f32.mrb[0].mxu0
      %1225 = vdwg.mxu0
      %v1227 = vlaneseq
      %v1228 = vshrl.u32 %v1227, 7
      %v1229 = vsub.s32 0, %v1228
      %v1230 = vrot.slane %v953, %v1229
      %v1232 = vadd.f32 %v1230, %v1128
      %v1233 = vadd.f32 %v1230, %v1133
      %v1234 = vadd.f32 %v1230, %v1138
      %v1235 = vadd.f32 %v1230, %v1143
      %v1236 = vadd.f32 %v1230, %v1148
      %v1237 = vadd.f32 %v1230, %v1153
      %v1238 = vadd.f32 %v1230, %v1158
      %v1239 = vadd.f32 %v1230, %v1163
      %v1240 = vadd.f32 %v1230, %v1168
      %v1241 = vadd.f32 %v1230, %v1173
      %v1242 = vadd.f32 %v1230, %v1178
      %v1243 = vadd.f32 %v1230, %v1183
      %v1244 = vadd.f32 %v1230, %v1188
      %v1245 = vadd.f32 %v1230, %v1193
      %v1246 = vadd.f32 %v1230, %v1198
      %v1247 = vadd.f32 %v1230, %v1203
      %v1248 = vadd.f32 %v1230, %v1208
      %v1249 = vadd.f32 %v1230, %v1213
      %v1250 = vadd.f32 %v1230, %v1218
      %v1251 = vadd.f32 %v1230, %v1223
      %s1252 = scalar_lea.vmem %s4, 32
      %v1253 = vld [vmem:[%s1252] sm:$0xff]
      %v1254 = vld [vmem:[%s1252 + $0x8] sm:$0xff]
      %v1255 = vld [vmem:[%s1252 + $0x10] sm:$0xff]
      %v1256 = vld [vmem:[%s1252 + $0x18] sm:$0xff]
      %vm1257 = vcmask 1040384
      %v1258 = vrot.slane %v951, 7
      %v1259 = vrot.slane %v926, 7
      %v1260 = vsel %vm1257, %v1258, %v1259
      %v1261 = vrot.slane %v927, 7
      %v1262 = vsel %vm1257, %v1259, %v1261
      %v1263 = vrot.slane %v928, 7
      %v1264 = vsel %vm1257, %v1261, %v1263
      %v1265 = vrot.slane %v929, 7
      %v1266 = vsel %vm1257, %v1263, %v1265
      %v1267 = vrot.slane %v930, 7
      %v1268 = vsel %vm1257, %v1265, %v1267
      %v1269 = vrot.slane %v931, 7
      %v1270 = vsel %vm1257, %v1267, %v1269
      %v1271 = vrot.slane %v932, 7
      %v1272 = vsel %vm1257, %v1269, %v1271
      %v1273 = vrot.slane %v933, 7
      %v1274 = vsel %vm1257, %v1271, %v1273
      %v1275 = vrot.slane %v934, 7
      %v1276 = vsel %vm1257, %v1273, %v1275
      %v1277 = vrot.slane %v935, 7
      %v1278 = vsel %vm1257, %v1275, %v1277
      %v1279 = vrot.slane %v936, 7
      %v1280 = vsel %vm1257, %v1277, %v1279
      %v1281 = vrot.slane %v937, 7
      %v1282 = vsel %vm1257, %v1279, %v1281
      %v1283 = vrot.slane %v938, 7
      %v1284 = vsel %vm1257, %v1281, %v1283
      %v1285 = vrot.slane %v939, 7
      %v1286 = vsel %vm1257, %v1283, %v1285
      %v1287 = vrot.slane %v940, 7
      %v1288 = vsel %vm1257, %v1285, %v1287
      %v1289 = vrot.slane %v941, 7
      %v1290 = vsel %vm1257, %v1287, %v1289
      %v1291 = vrot.slane %v942, 7
      %v1292 = vsel %vm1257, %v1289, %v1291
      %v1293 = vrot.slane %v943, 7
      %v1294 = vsel %vm1257, %v1291, %v1293
      %v1295 = vrot.slane %v944, 7
      %v1296 = vsel %vm1257, %v1293, %v1295
      %v1297 = vrot.slane %v945, 7
      %v1298 = vsel %vm1257, %v1295, %v1297
      %v1299 = vsel %vm630, %v1260, 0
      %v1301 = vsel %vm630, %v1262, 0
      %v1303 = vsel %vm630, %v1264, 0
      %v1305 = vsel %vm630, %v1266, 0
      %v1307 = vsel %vm630, %v1268, 0
      %v1309 = vsel %vm630, %v1270, 0
      %v1311 = vsel %vm630, %v1272, 0
      %v1313 = vsel %vm630, %v1274, 0
      %v1315 = vsel %vm630, %v1276, 0
      %v1317 = vsel %vm630, %v1278, 0
      %v1319 = vsel %vm630, %v1280, 0
      %v1321 = vsel %vm630, %v1282, 0
      %v1323 = vsel %vm630, %v1284, 0
      %v1325 = vsel %vm630, %v1286, 0
      %v1327 = vsel %vm630, %v1288, 0
      %v1329 = vsel %vm630, %v1290, 0
      %v1331 = vsel %vm630, %v1292, 0
      %v1333 = vsel %vm630, %v1294, 0
      %v1335 = vsel %vm630, %v1296, 0
      %v1337 = vsel %vm630, %v1298, 0
      %1339 = vmatprep.subr.mxu0 0.0
      %1340 = vmatpush1.msra.mxu0 %v1253
      %1341 = vmatprep.subr.mxu0 0.0
      %1342 = vmatpush1.msra.mxu0 %v1254
      %1343 = vmatprep.subr.mxu0 0.0
      %1344 = vmatpush1.msra.mxu0 %v1255
      %1345 = vmatprep.subr.mxu0 0.0
      %1346 = vmatpush1.msra.mxu0 %v1256
      %1347 = vmatprep.subr.mxu0 0.0
      %1348 = vmatpush1.msra.mxu0 0.0
      %1349 = vmatprep.subr.mxu0 0.0
      %1350 = vmatpush1.msra.mxu0 0.0
      %1351 = vmatprep.subr.mxu0 0.0
      %1352 = vmatpush1.msra.mxu0 0.0
      %1353 = vmatprep.subr.mxu0 0.0
      %1354 = vmatpush1.msra.mxu0 0.0
      %1355 = vmatprep.subr.mxu0 0.0
      %1356 = vmatpush1.msra.mxu0 0.0
      %1357 = vmatprep.subr.mxu0 0.0
      %1358 = vmatpush1.msra.mxu0 0.0
      %1359 = vmatprep.subr.mxu0 0.0
      %1360 = vmatpush1.msra.mxu0 0.0
      %1361 = vmatprep.subr.mxu0 0.0
      %1362 = vmatpush1.msra.mxu0 0.0
      %1363 = vmatprep.subr.mxu0 0.0
      %1364 = vmatpush1.msra.mxu0 0.0
      %1365 = vmatprep.subr.mxu0 0.0
      %1366 = vmatpush1.msra.mxu0 0.0
      %1367 = vmatprep.subr.mxu0 0.0
      %1368 = vmatpush1.msra.mxu0 0.0
      %1369 = vmatprep.subr.mxu0 0.0
      %1370 = vmatpush1.msra.mxu0 0.0
      %1371 = vmatprep.subr.mxu0 0.0
      %1372 = vmatpush1.msra.mxu0 0.0
      %1373 = vmatprep.subr.mxu0 0.0
      %1374 = vmatpush1.msra.mxu0 0.0
      %1375 = vmatprep.subr.mxu0 0.0
      %1376 = vmatpush1.msra.mxu0 0.0
      %1377 = vmatprep.subr.mxu0 0.0
      %1378 = vmatpush1.msra.mxu0 0.0
      %1379 = vmatprep.subr.mxu0 0.0
      %1380 = vmatpush1.msra.mxu0 0.0
      %1381 = vmatprep.subr.mxu0 0.0
      %1382 = vmatpush1.msra.mxu0 0.0
      %1383 = vmatprep.subr.mxu0 0.0
      %1384 = vmatpush1.msra.mxu0 0.0
      %1385 = vmatprep.subr.mxu0 0.0
      %1386 = vmatpush1.msra.mxu0 0.0
      %1387 = vmatprep.subr.mxu0 0.0
      %1388 = vmatpush1.msra.mxu0 0.0
      %1389 = vmatprep.subr.mxu0 0.0
      %1390 = vmatpush1.msra.mxu0 0.0
      %1391 = vmatprep.subr.mxu0 0.0
      %1392 = vmatpush1.msra.mxu0 0.0
      %1393 = vmatprep.subr.mxu0 0.0
      %1394 = vmatpush1.msra.mxu0 0.0
      %1395 = vmatprep.subr.mxu0 0.0
      %1396 = vmatpush1.msra.mxu0 0.0
      %1397 = vmatprep.subr.mxu0 0.0
      %1398 = vmatpush1.msra.mxu0 0.0
      %1399 = vmatprep.subr.mxu0 0.0
      %1400 = vmatpush1.msra.mxu0 0.0
      %1401 = vmatprep.subr.mxu0 0.0
      %1402 = vmatpush1.msra.mxu0 0.0
      %1403 = vmatprep.mubr.f32.mxu0 0.0
      %1404 = vmatmul.mubr.f32.gmra.mrb[0].mxu0 %v1299
      %v1405 = vpop.f32.mrb[0].mxu0
      %v1406 = vadd.f32 0.0, %v1405
      %v1407 = vpop.f32.mrb[0].mxu0
      %1408 = vmatprep.mubr.f32.mxu0 0.0
      %1409 = vmatmul.mubr.f32.gmra.mrb[0].mxu0 %v1301
      %v1410 = vpop.f32.mrb[0].mxu0
      %v1411 = vadd.f32 0.0, %v1410
      %v1412 = vpop.f32.mrb[0].mxu0
      %1413 = vmatprep.mubr.f32.mxu0 0.0
      %1414 = vmatmul.mubr.f32.gmra.mrb[0].mxu0 %v1303
      %v1415 = vpop.f32.mrb[0].mxu0
      %v1416 = vadd.f32 0.0, %v1415
      %v1417 = vpop.f32.mrb[0].mxu0
      %1418 = vmatprep.mubr.f32.mxu0 0.0
      %1419 = vmatmul.mubr.f32.gmra.mrb[0].mxu0 %v1305
      %v1420 = vpop.f32.mrb[0].mxu0
      %v1421 = vadd.f32 0.0, %v1420
      %v1422 = vpop.f32.mrb[0].mxu0
      %1423 = vmatprep.mubr.f32.mxu0 0.0
      %1424 = vmatmul.mubr.f32.gmra.mrb[0].mxu0 %v1307
      %v1425 = vpop.f32.mrb[0].mxu0
      %v1426 = vadd.f32 0.0, %v1425
      %v1427 = vpop.f32.mrb[0].mxu0
      %1428 = vmatprep.mubr.f32.mxu0 0.0
      %1429 = vmatmul.mubr.f32.gmra.mrb[0].mxu0 %v1309
      %v1430 = vpop.f32.mrb[0].mxu0
      %v1431 = vadd.f32 0.0, %v1430
      %v1432 = vpop.f32.mrb[0].mxu0
      %1433 = vmatprep.mubr.f32.mxu0 0.0
      %1434 = vmatmul.mubr.f32.gmra.mrb[0].mxu0 %v1311
      %v1435 = vpop.f32.mrb[0].mxu0
      %v1436 = vadd.f32 0.0, %v1435
      %v1437 = vpop.f32.mrb[0].mxu0
      %1438 = vmatprep.mubr.f32.mxu0 0.0
      %1439 = vmatmul.mubr.f32.gmra.mrb[0].mxu0 %v1313
      %v1440 = vpop.f32.mrb[0].mxu0
      %v1441 = vadd.f32 0.0, %v1440
      %v1442 = vpop.f32.mrb[0].mxu0
      %1443 = vmatprep.mubr.f32.mxu0 0.0
      %1444 = vmatmul.mubr.f32.gmra.mrb[0].mxu0 %v1315
      %v1445 = vpop.f32.mrb[0].mxu0
      %v1446 = vadd.f32 0.0, %v1445
      %v1447 = vpop.f32.mrb[0].mxu0
      %1448 = vmatprep.mubr.f32.mxu0 0.0
      %1449 = vmatmul.mubr.f32.gmra.mrb[0].mxu0 %v1317
      %v1450 = vpop.f32.mrb[0].mxu0
      %v1451 = vadd.f32 0.0, %v1450
      %v1452 = vpop.f32.mrb[0].mxu0
      %1453 = vmatprep.mubr.f32.mxu0 0.0
      %1454 = vmatmul.mubr.f32.gmra.mrb[0].mxu0 %v1319
      %v1455 = vpop.f32.mrb[0].mxu0
      %v1456 = vadd.f32 0.0, %v1455
      %v1457 = vpop.f32.mrb[0].mxu0
      %1458 = vmatprep.mubr.f32.mxu0 0.0
      %1459 = vmatmul.mubr.f32.gmra.mrb[0].mxu0 %v1321
      %v1460 = vpop.f32.mrb[0].mxu0
      %v1461 = vadd.f32 0.0, %v1460
      %v1462 = vpop.f32.mrb[0].mxu0
      %1463 = vmatprep.mubr.f32.mxu0 0.0
      %1464 = vmatmul.mubr.f32.gmra.mrb[0].mxu0 %v1323
      %v1465 = vpop.f32.mrb[0].mxu0
      %v1466 = vadd.f32 0.0, %v1465
      %v1467 = vpop.f32.mrb[0].mxu0
      %1468 = vmatprep.mubr.f32.mxu0 0.0
      %1469 = vmatmul.mubr.f32.gmra.mrb[0].mxu0 %v1325
      %v1470 = vpop.f32.mrb[0].mxu0
      %v1471 = vadd.f32 0.0, %v1470
      %v1472 = vpop.f32.mrb[0].mxu0
      %1473 = vmatprep.mubr.f32.mxu0 0.0
      %1474 = vmatmul.mubr.f32.gmra.mrb[0].mxu0 %v1327
      %v1475 = vpop.f32.mrb[0].mxu0
      %v1476 = vadd.f32 0.0, %v1475
      %v1477 = vpop.f32.mrb[0].mxu0
      %1478 = vmatprep.mubr.f32.mxu0 0.0
      %1479 = vmatmul.mubr.f32.gmra.mrb[0].mxu0 %v1329
      %v1480 = vpop.f32.mrb[0].mxu0
      %v1481 = vadd.f32 0.0, %v1480
      %v1482 = vpop.f32.mrb[0].mxu0
      %1483 = vmatprep.mubr.f32.mxu0 0.0
      %1484 = vmatmul.mubr.f32.gmra.mrb[0].mxu0 %v1331
      %v1485 = vpop.f32.mrb[0].mxu0
      %v1486 = vadd.f32 0.0, %v1485
      %v1487 = vpop.f32.mrb[0].mxu0
      %1488 = vmatprep.mubr.f32.mxu0 0.0
      %1489 = vmatmul.mubr.f32.gmra.mrb[0].mxu0 %v1333
      %v1490 = vpop.f32.mrb[0].mxu0
      %v1491 = vadd.f32 0.0, %v1490
      %v1492 = vpop.f32.mrb[0].mxu0
      %1493 = vmatprep.mubr.f32.mxu0 0.0
      %1494 = vmatmul.mubr.f32.gmra.mrb[0].mxu0 %v1335
      %v1495 = vpop.f32.mrb[0].mxu0
      %v1496 = vadd.f32 0.0, %v1495
      %v1497 = vpop.f32.mrb[0].mxu0
      %1498 = vmatprep.mubr.f32.mxu0 0.0
      %1499 = vmatmul.mubr.f32.gmra.mrb[0].mxu0 %v1337
      %v1500 = vpop.f32.mrb[0].mxu0
      %v1501 = vadd.f32 0.0, %v1500
      %v1502 = vpop.f32.mrb[0].mxu0
      %1503 = vdwg.mxu0
      %v1504 = vadd.f32 %v1232, %v1406
      %v1505 = vadd.f32 %v1233, %v1411
      %v1506 = vadd.f32 %v1234, %v1416
      %v1507 = vadd.f32 %v1235, %v1421
      %v1508 = vadd.f32 %v1236, %v1426
      %v1509 = vadd.f32 %v1237, %v1431
      %v1510 = vadd.f32 %v1238, %v1436
      %v1511 = vadd.f32 %v1239, %v1441
      %v1512 = vadd.f32 %v1240, %v1446
      %v1513 = vadd.f32 %v1241, %v1451
      %v1514 = vadd.f32 %v1242, %v1456
      %v1515 = vadd.f32 %v1243, %v1461
      %v1516 = vadd.f32 %v1244, %v1466
      %v1517 = vadd.f32 %v1245, %v1471
      %v1518 = vadd.f32 %v1246, %v1476
      %v1519 = vadd.f32 %v1247, %v1481
      %v1520 = vadd.f32 %v1248, %v1486
      %v1521 = vadd.f32 %v1249, %v1491
      %v1522 = vadd.f32 %v1250, %v1496
      %v1523 = vadd.f32 %v1251, %v1501
      %s1524 = scalar_lea.vmem %s4, 64
      %v1525 = vld [vmem:[%s1524] sm:$0xff]
      %v1526 = vld [vmem:[%s1524 + $0x8] sm:$0xff]
      %v1527 = vld [vmem:[%s1524 + $0x10] sm:$0xff]
      %v1528 = vld [vmem:[%s1524 + $0x18] sm:$0xff]
      %v1529 = vsel %vm630, %v926, 0
      %v1531 = vsel %vm630, %v927, 0
      %v1533 = vsel %vm630, %v928, 0
      %v1535 = vsel %vm630, %v929, 0
      %v1537 = vsel %vm630, %v930, 0
      %v1539 = vsel %vm630, %v931, 0
      %v1541 = vsel %vm630, %v932, 0
      %v1543 = vsel %vm630, %v933, 0
      %v1545 = vsel %vm630, %v934, 0
      %v1547 = vsel %vm630, %v935, 0
      %v1549 = vsel %vm630, %v936, 0
      %v1551 = vsel %vm630, %v937, 0
      %v1553 = vsel %vm630, %v938, 0
      %v1555 = vsel %vm630, %v939, 0
      %v1557 = vsel %vm630, %v940, 0
      %v1559 = vsel %vm630, %v941, 0
      %v1561 = vsel %vm630, %v942, 0
      %v1563 = vsel %vm630, %v943, 0
      %v1565 = vsel %vm630, %v944, 0
      %v1567 = vsel %vm630, %v945, 0
      %1569 = vmatprep.subr.mxu0 0.0
      %1570 = vmatpush1.msra.mxu0 %v1525
      %1571 = vmatprep.subr.mxu0 0.0
      %1572 = vmatpush1.msra.mxu0 %v1526
      %1573 = vmatprep.subr.mxu0 0.0
      %1574 = vmatpush1.msra.mxu0 %v1527
      %1575 = vmatprep.subr.mxu0 0.0
      %1576 = vmatpush1.msra.mxu0 %v1528
      %1577 = vmatprep.subr.mxu0 0.0
      %1578 = vmatpush1.msra.mxu0 0.0
      %1579 = vmatprep.subr.mxu0 0.0
      %1580 = vmatpush1.msra.mxu0 0.0
      %1581 = vmatprep.subr.mxu0 0.0
      %1582 = vmatpush1.msra.mxu0 0.0
      %1583 = vmatprep.subr.mxu0 0.0
      %1584 = vmatpush1.msra.mxu0 0.0
      %1585 = vmatprep.subr.mxu0 0.0
      %1586 = vmatpush1.msra.mxu0 0.0
      %1587 = vmatprep.subr.mxu0 0.0
      %1588 = vmatpush1.msra.mxu0 0.0
      %1589 = vmatprep.subr.mxu0 0.0
      %1590 = vmatpush1.msra.mxu0 0.0
      %1591 = vmatprep.subr.mxu0 0.0
      %1592 = vmatpush1.msra.mxu0 0.0
      %1593 = vmatprep.subr.mxu0 0.0
      %1594 = vmatpush1.msra.mxu0 0.0
      %1595 = vmatprep.subr.mxu0 0.0
      %1596 = vmatpush1.msra.mxu0 0.0
      %1597 = vmatprep.subr.mxu0 0.0
      %1598 = vmatpush1.msra.mxu0 0.0
      %1599 = vmatprep.subr.mxu0 0.0
      %1600 = vmatpush1.msra.mxu0 0.0
      %1601 = vmatprep.subr.mxu0 0.0
      %1602 = vmatpush1.msra.mxu0 0.0
      %1603 = vmatprep.subr.mxu0 0.0
      %1604 = vmatpush1.msra.mxu0 0.0
      %1605 = vmatprep.subr.mxu0 0.0
      %1606 = vmatpush1.msra.mxu0 0.0
      %1607 = vmatprep.subr.mxu0 0.0
      %1608 = vmatpush1.msra.mxu0 0.0
      %1609 = vmatprep.subr.mxu0 0.0
      %1610 = vmatpush1.msra.mxu0 0.0
      %1611 = vmatprep.subr.mxu0 0.0
      %1612 = vmatpush1.msra.mxu0 0.0
      %1613 = vmatprep.subr.mxu0 0.0
      %1614 = vmatpush1.msra.mxu0 0.0
      %1615 = vmatprep.subr.mxu0 0.0
      %1616 = vmatpush1.msra.mxu0 0.0
      %1617 = vmatprep.subr.mxu0 0.0
      %1618 = vmatpush1.msra.mxu0 0.0
      %1619 = vmatprep.subr.mxu0 0.0
      %1620 = vmatpush1.msra.mxu0 0.0
      %1621 = vmatprep.subr.mxu0 0.0
      %1622 = vmatpush1.msra.mxu0 0.0
      %1623 = vmatprep.subr.mxu0 0.0
      %1624 = vmatpush1.msra.mxu0 0.0
      %1625 = vmatprep.subr.mxu0 0.0
      %1626 = vmatpush1.msra.mxu0 0.0
      %1627 = vmatprep.subr.mxu0 0.0
      %1628 = vmatpush1.msra.mxu0 0.0
      %1629 = vmatprep.subr.mxu0 0.0
      %1630 = vmatpush1.msra.mxu0 0.0
      %1631 = vmatprep.subr.mxu0 0.0
      %1632 = vmatpush1.msra.mxu0 0.0
      %1633 = vmatprep.mubr.f32.mxu0 0.0
      %1634 = vmatmul.mubr.f32.gmra.mrb[0].mxu0 %v1529
      %v1635 = vpop.f32.mrb[0].mxu0
      %v1636 = vadd.f32 0.0, %v1635
      %v1637 = vpop.f32.mrb[0].mxu0
      %1638 = vmatprep.mubr.f32.mxu0 0.0
      %1639 = vmatmul.mubr.f32.gmra.mrb[0].mxu0 %v1531
      %v1640 = vpop.f32.mrb[0].mxu0
      %v1641 = vadd.f32 0.0, %v1640
      %v1642 = vpop.f32.mrb[0].mxu0
      %1643 = vmatprep.mubr.f32.mxu0 0.0
      %1644 = vmatmul.mubr.f32.gmra.mrb[0].mxu0 %v1533
      %v1645 = vpop.f32.mrb[0].mxu0
      %v1646 = vadd.f32 0.0, %v1645
      %v1647 = vpop.f32.mrb[0].mxu0
      %1648 = vmatprep.mubr.f32.mxu0 0.0
      %1649 = vmatmul.mubr.f32.gmra.mrb[0].mxu0 %v1535
      %v1650 = vpop.f32.mrb[0].mxu0
      %v1651 = vadd.f32 0.0, %v1650
      %v1652 = vpop.f32.mrb[0].mxu0
      %1653 = vmatprep.mubr.f32.mxu0 0.0
      %1654 = vmatmul.mubr.f32.gmra.mrb[0].mxu0 %v1537
      %v1655 = vpop.f32.mrb[0].mxu0
      %v1656 = vadd.f32 0.0, %v1655
      %v1657 = vpop.f32.mrb[0].mxu0
      %1658 = vmatprep.mubr.f32.mxu0 0.0
      %1659 = vmatmul.mubr.f32.gmra.mrb[0].mxu0 %v1539
      %v1660 = vpop.f32.mrb[0].mxu0
      %v1661 = vadd.f32 0.0, %v1660
      %v1662 = vpop.f32.mrb[0].mxu0
      %1663 = vmatprep.mubr.f32.mxu0 0.0
      %1664 = vmatmul.mubr.f32.gmra.mrb[0].mxu0 %v1541
      %v1665 = vpop.f32.mrb[0].mxu0
      %v1666 = vadd.f32 0.0, %v1665
      %v1667 = vpop.f32.mrb[0].mxu0
      %1668 = vmatprep.mubr.f32.mxu0 0.0
      %1669 = vmatmul.mubr.f32.gmra.mrb[0].mxu0 %v1543
      %v1670 = vpop.f32.mrb[0].mxu0
      %v1671 = vadd.f32 0.0, %v1670
      %v1672 = vpop.f32.mrb[0].mxu0
      %1673 = vmatprep.mubr.f32.mxu0 0.0
      %1674 = vmatmul.mubr.f32.gmra.mrb[0].mxu0 %v1545
      %v1675 = vpop.f32.mrb[0].mxu0
      %v1676 = vadd.f32 0.0, %v1675
      %v1677 = vpop.f32.mrb[0].mxu0
      %1678 = vmatprep.mubr.f32.mxu0 0.0
      %1679 = vmatmul.mubr.f32.gmra.mrb[0].mxu0 %v1547
      %v1680 = vpop.f32.mrb[0].mxu0
      %v1681 = vadd.f32 0.0, %v1680
      %v1682 = vpop.f32.mrb[0].mxu0
      %1683 = vmatprep.mubr.f32.mxu0 0.0
      %1684 = vmatmul.mubr.f32.gmra.mrb[0].mxu0 %v1549
      %v1685 = vpop.f32.mrb[0].mxu0
      %v1686 = vadd.f32 0.0, %v1685
      %v1687 = vpop.f32.mrb[0].mxu0
      %1688 = vmatprep.mubr.f32.mxu0 0.0
      %1689 = vmatmul.mubr.f32.gmra.mrb[0].mxu0 %v1551
      %v1690 = vpop.f32.mrb[0].mxu0
      %v1691 = vadd.f32 0.0, %v1690
      %v1692 = vpop.f32.mrb[0].mxu0
      %1693 = vmatprep.mubr.f32.mxu0 0.0
      %1694 = vmatmul.mubr.f32.gmra.mrb[0].mxu0 %v1553
      %v1695 = vpop.f32.mrb[0].mxu0
      %v1696 = vadd.f32 0.0, %v1695
      %v1697 = vpop.f32.mrb[0].mxu0
      %1698 = vmatprep.mubr.f32.mxu0 0.0
      %1699 = vmatmul.mubr.f32.gmra.mrb[0].mxu0 %v1555
      %v1700 = vpop.f32.mrb[0].mxu0
      %v1701 = vadd.f32 0.0, %v1700
      %v1702 = vpop.f32.mrb[0].mxu0
      %1703 = vmatprep.mubr.f32.mxu0 0.0
      %1704 = vmatmul.mubr.f32.gmra.mrb[0].mxu0 %v1557
      %v1705 = vpop.f32.mrb[0].mxu0
      %v1706 = vadd.f32 0.0, %v1705
      %v1707 = vpop.f32.mrb[0].mxu0
      %1708 = vmatprep.mubr.f32.mxu0 0.0
      %1709 = vmatmul.mubr.f32.gmra.mrb[0].mxu0 %v1559
      %v1710 = vpop.f32.mrb[0].mxu0
      %v1711 = vadd.f32 0.0, %v1710
      %v1712 = vpop.f32.mrb[0].mxu0
      %1713 = vmatprep.mubr.f32.mxu0 0.0
      %1714 = vmatmul.mubr.f32.gmra.mrb[0].mxu0 %v1561
      %v1715 = vpop.f32.mrb[0].mxu0
      %v1716 = vadd.f32 0.0, %v1715
      %v1717 = vpop.f32.mrb[0].mxu0
      %1718 = vmatprep.mubr.f32.mxu0 0.0
      %1719 = vmatmul.mubr.f32.gmra.mrb[0].mxu0 %v1563
      %v1720 = vpop.f32.mrb[0].mxu0
      %v1721 = vadd.f32 0.0, %v1720
      %v1722 = vpop.f32.mrb[0].mxu0
      %1723 = vmatprep.mubr.f32.mxu0 0.0
      %1724 = vmatmul.mubr.f32.gmra.mrb[0].mxu0 %v1565
      %v1725 = vpop.f32.mrb[0].mxu0
      %v1726 = vadd.f32 0.0, %v1725
      %v1727 = vpop.f32.mrb[0].mxu0
      %1728 = vmatprep.mubr.f32.mxu0 0.0
      %1729 = vmatmul.mubr.f32.gmra.mrb[0].mxu0 %v1567
      %v1730 = vpop.f32.mrb[0].mxu0
      %v1731 = vadd.f32 0.0, %v1730
      %v1732 = vpop.f32.mrb[0].mxu0
      %1733 = vdwg.mxu0
      %v1734 = vadd.f32 %v1504, %v1636
      %v1735 = vadd.f32 %v1505, %v1641
      %v1736 = vadd.f32 %v1506, %v1646
      %v1737 = vadd.f32 %v1507, %v1651
      %v1738 = vadd.f32 %v1508, %v1656
      %v1739 = vadd.f32 %v1509, %v1661
      %v1740 = vadd.f32 %v1510, %v1666
      %v1741 = vadd.f32 %v1511, %v1671
      %v1742 = vadd.f32 %v1512, %v1676
      %v1743 = vadd.f32 %v1513, %v1681
      %v1744 = vadd.f32 %v1514, %v1686
      %v1745 = vadd.f32 %v1515, %v1691
      %v1746 = vadd.f32 %v1516, %v1696
      %v1747 = vadd.f32 %v1517, %v1701
      %v1748 = vadd.f32 %v1518, %v1706
      %v1749 = vadd.f32 %v1519, %v1711
      %v1750 = vadd.f32 %v1520, %v1716
      %v1751 = vadd.f32 %v1521, %v1721
      %v1752 = vadd.f32 %v1522, %v1726
      %v1753 = vadd.f32 %v1523, %v1731
      %v1754 = vmax.f32 %v1734, 0.0
      %v1755 = vmax.f32 %v1735, 0.0
      %v1756 = vmax.f32 %v1736, 0.0
      %v1757 = vmax.f32 %v1737, 0.0
      %v1758 = vmax.f32 %v1738, 0.0
      %v1759 = vmax.f32 %v1739, 0.0
      %v1760 = vmax.f32 %v1740, 0.0
      %v1761 = vmax.f32 %v1741, 0.0
      %v1762 = vmax.f32 %v1742, 0.0
      %v1763 = vmax.f32 %v1743, 0.0
      %v1764 = vmax.f32 %v1744, 0.0
      %v1765 = vmax.f32 %v1745, 0.0
      %v1766 = vmax.f32 %v1746, 0.0
      %v1767 = vmax.f32 %v1747, 0.0
      %v1768 = vmax.f32 %v1748, 0.0
      %v1769 = vmax.f32 %v1749, 0.0
      %v1770 = vmax.f32 %v1750, 0.0
      %v1771 = vmax.f32 %v1751, 0.0
      %v1772 = vmax.f32 %v1752, 0.0
      %v1773 = vmax.f32 %v1753, 0.0
      %v1774 = vld [vmem:[%s6] sm:$0xff]
      %v1775 = vld [vmem:[%s6 + $0x8] sm:$0xff]
      %v1776 = vld [vmem:[%s6 + $0x10] sm:$0xff]
      %v1777 = vld [vmem:[%s6 + $0x18] sm:$0xff]
      %v1778 = vld [vmem:[%s6 + $0x20] sm:$0xff]
      %v1779 = vld [vmem:[%s6 + $0x28] sm:$0xff]
      %v1780 = vld [vmem:[%s6 + $0x30] sm:$0xff]
      %v1781 = vld [vmem:[%s6 + $0x38] sm:$0xff]
      %v1782 = vld [vmem:[%s6 + $0x40] sm:$0xff]
      %v1783 = vld [vmem:[%s6 + $0x48] sm:$0xff]
      %v1784 = vld [vmem:[%s6 + $0x50] sm:$0xff]
      %v1785 = vld [vmem:[%s6 + $0x58] sm:$0xff]
      %v1786 = vld [vmem:[%s6 + $0x60] sm:$0xff]
      %v1787 = vld [vmem:[%s6 + $0x68] sm:$0xff]
      %v1788 = vld [vmem:[%s6 + $0x70] sm:$0xff]
      %v1789 = vld [vmem:[%s6 + $0x78] sm:$0xff]
      %v1790 = vld [vmem:[%s7] sm:$0x1]
      %v1792 = vlaneseq
      %v1793 = vshrl.u32 %v1792, 7
      %v1794 = vsub.s32 0, %v1793
      %v1795 = vrot.slane %v1790, %v1794
      %1797 = vmatprep.subr.mxu0 0.0
      %1798 = vmatpush1.msra.mxu0 %v1774
      %1799 = vmatprep.subr.mxu0 0.0
      %1800 = vmatpush1.msra.mxu0 %v1775
      %1801 = vmatprep.subr.mxu0 0.0
      %1802 = vmatpush1.msra.mxu0 %v1776
      %1803 = vmatprep.subr.mxu0 0.0
      %1804 = vmatpush1.msra.mxu0 %v1777
      %1805 = vmatprep.subr.mxu0 0.0
      %1806 = vmatpush1.msra.mxu0 %v1778
      %1807 = vmatprep.subr.mxu0 0.0
      %1808 = vmatpush1.msra.mxu0 %v1779
      %1809 = vmatprep.subr.mxu0 0.0
      %1810 = vmatpush1.msra.mxu0 %v1780
      %1811 = vmatprep.subr.mxu0 0.0
      %1812 = vmatpush1.msra.mxu0 %v1781
      %1813 = vmatprep.subr.mxu0 0.0
      %1814 = vmatpush1.msra.mxu0 %v1782
      %1815 = vmatprep.subr.mxu0 0.0
      %1816 = vmatpush1.msra.mxu0 %v1783
      %1817 = vmatprep.subr.mxu0 0.0
      %1818 = vmatpush1.msra.mxu0 %v1784
      %1819 = vmatprep.subr.mxu0 0.0
      %1820 = vmatpush1.msra.mxu0 %v1785
      %1821 = vmatprep.subr.mxu0 0.0
      %1822 = vmatpush1.msra.mxu0 %v1786
      %1823 = vmatprep.subr.mxu0 0.0
      %1824 = vmatpush1.msra.mxu0 %v1787
      %1825 = vmatprep.subr.mxu0 0.0
      %1826 = vmatpush1.msra.mxu0 %v1788
      %1827 = vmatprep.subr.mxu0 0.0
      %1828 = vmatpush1.msra.mxu0 %v1789
      %1829 = vmatprep.subr.mxu0 0.0
      %1830 = vmatpush1.msra.mxu0 0.0
      %1831 = vmatprep.subr.mxu0 0.0
      %1832 = vmatpush1.msra.mxu0 0.0
      %1833 = vmatprep.subr.mxu0 0.0
      %1834 = vmatpush1.msra.mxu0 0.0
      %1835 = vmatprep.subr.mxu0 0.0
      %1836 = vmatpush1.msra.mxu0 0.0
      %1837 = vmatprep.subr.mxu0 0.0
      %1838 = vmatpush1.msra.mxu0 0.0
      %1839 = vmatprep.subr.mxu0 0.0
      %1840 = vmatpush1.msra.mxu0 0.0
      %1841 = vmatprep.subr.mxu0 0.0
      %1842 = vmatpush1.msra.mxu0 0.0
      %1843 = vmatprep.subr.mxu0 0.0
      %1844 = vmatpush1.msra.mxu0 0.0
      %1845 = vmatprep.subr.mxu0 0.0
      %1846 = vmatpush1.msra.mxu0 0.0
      %1847 = vmatprep.subr.mxu0 0.0
      %1848 = vmatpush1.msra.mxu0 0.0
      %1849 = vmatprep.subr.mxu0 0.0
      %1850 = vmatpush1.msra.mxu0 0.0
      %1851 = vmatprep.subr.mxu0 0.0
      %1852 = vmatpush1.msra.mxu0 0.0
      %1853 = vmatprep.subr.mxu0 0.0
      %1854 = vmatpush1.msra.mxu0 0.0
      %1855 = vmatprep.subr.mxu0 0.0
      %1856 = vmatpush1.msra.mxu0 0.0
      %1857 = vmatprep.subr.mxu0 0.0
      %1858 = vmatpush1.msra.mxu0 0.0
      %1859 = vmatprep.subr.mxu0 0.0
      %1860 = vmatpush1.msra.mxu0 0.0
      %1861 = vmatprep.mubr.f32.mxu0 0.0
      %1862 = vmatmul.mubr.f32.gmra.mrb[0].mxu0 %v1754
      %v1863 = vpop.f32.mrb[0].mxu0
      %v1864 = vadd.f32 %v1795, %v1863
      %v1865 = vpop.f32.mrb[0].mxu0
      %1866 = vmatprep.mubr.f32.mxu0 0.0
      %1867 = vmatmul.mubr.f32.gmra.mrb[0].mxu0 %v1755
      %v1868 = vpop.f32.mrb[0].mxu0
      %v1869 = vadd.f32 %v1795, %v1868
      %v1870 = vpop.f32.mrb[0].mxu0
      %1871 = vmatprep.mubr.f32.mxu0 0.0
      %1872 = vmatmul.mubr.f32.gmra.mrb[0].mxu0 %v1756
      %v1873 = vpop.f32.mrb[0].mxu0
      %v1874 = vadd.f32 %v1795, %v1873
      %v1875 = vpop.f32.mrb[0].mxu0
      %1876 = vmatprep.mubr.f32.mxu0 0.0
      %1877 = vmatmul.mubr.f32.gmra.mrb[0].mxu0 %v1757
      %v1878 = vpop.f32.mrb[0].mxu0
      %v1879 = vadd.f32 %v1795, %v1878
      %v1880 = vpop.f32.mrb[0].mxu0
      %1881 = vmatprep.mubr.f32.mxu0 0.0
      %1882 = vmatmul.mubr.f32.gmra.mrb[0].mxu0 %v1758
      %v1883 = vpop.f32.mrb[0].mxu0
      %v1884 = vadd.f32 %v1795, %v1883
      %v1885 = vpop.f32.mrb[0].mxu0
      %1886 = vmatprep.mubr.f32.mxu0 0.0
      %1887 = vmatmul.mubr.f32.gmra.mrb[0].mxu0 %v1759
      %v1888 = vpop.f32.mrb[0].mxu0
      %v1889 = vadd.f32 %v1795, %v1888
      %v1890 = vpop.f32.mrb[0].mxu0
      %1891 = vmatprep.mubr.f32.mxu0 0.0
      %1892 = vmatmul.mubr.f32.gmra.mrb[0].mxu0 %v1760
      %v1893 = vpop.f32.mrb[0].mxu0
      %v1894 = vadd.f32 %v1795, %v1893
      %v1895 = vpop.f32.mrb[0].mxu0
      %1896 = vmatprep.mubr.f32.mxu0 0.0
      %1897 = vmatmul.mubr.f32.gmra.mrb[0].mxu0 %v1761
      %v1898 = vpop.f32.mrb[0].mxu0
      %v1899 = vadd.f32 %v1795, %v1898
      %v1900 = vpop.f32.mrb[0].mxu0
      %1901 = vmatprep.mubr.f32.mxu0 0.0
      %1902 = vmatmul.mubr.f32.gmra.mrb[0].mxu0 %v1762
      %v1903 = vpop.f32.mrb[0].mxu0
      %v1904 = vadd.f32 %v1795, %v1903
      %v1905 = vpop.f32.mrb[0].mxu0
      %1906 = vmatprep.mubr.f32.mxu0 0.0
      %1907 = vmatmul.mubr.f32.gmra.mrb[0].mxu0 %v1763
      %v1908 = vpop.f32.mrb[0].mxu0
      %v1909 = vadd.f32 %v1795, %v1908
      %v1910 = vpop.f32.mrb[0].mxu0
      %1911 = vmatprep.mubr.f32.mxu0 0.0
      %1912 = vmatmul.mubr.f32.gmra.mrb[0].mxu0 %v1764
      %v1913 = vpop.f32.mrb[0].mxu0
      %v1914 = vadd.f32 %v1795, %v1913
      %v1915 = vpop.f32.mrb[0].mxu0
      %1916 = vmatprep.mubr.f32.mxu0 0.0
      %1917 = vmatmul.mubr.f32.gmra.mrb[0].mxu0 %v1765
      %v1918 = vpop.f32.mrb[0].mxu0
      %v1919 = vadd.f32 %v1795, %v1918
      %v1920 = vpop.f32.mrb[0].mxu0
      %1921 = vmatprep.mubr.f32.mxu0 0.0
      %1922 = vmatmul.mubr.f32.gmra.mrb[0].mxu0 %v1766
      %v1923 = vpop.f32.mrb[0].mxu0
      %v1924 = vadd.f32 %v1795, %v1923
      %v1925 = vpop.f32.mrb[0].mxu0
      %1926 = vmatprep.mubr.f32.mxu0 0.0
      %1927 = vmatmul.mubr.f32.gmra.mrb[0].mxu0 %v1767
      %v1928 = vpop.f32.mrb[0].mxu0
      %v1929 = vadd.f32 %v1795, %v1928
      %v1930 = vpop.f32.mrb[0].mxu0
      %1931 = vmatprep.mubr.f32.mxu0 0.0
      %1932 = vmatmul.mubr.f32.gmra.mrb[0].mxu0 %v1768
      %v1933 = vpop.f32.mrb[0].mxu0
      %v1934 = vadd.f32 %v1795, %v1933
      %v1935 = vpop.f32.mrb[0].mxu0
      %1936 = vmatprep.mubr.f32.mxu0 0.0
      %1937 = vmatmul.mubr.f32.gmra.mrb[0].mxu0 %v1769
      %v1938 = vpop.f32.mrb[0].mxu0
      %v1939 = vadd.f32 %v1795, %v1938
      %v1940 = vpop.f32.mrb[0].mxu0
      %1941 = vmatprep.mubr.f32.mxu0 0.0
      %1942 = vmatmul.mubr.f32.gmra.mrb[0].mxu0 %v1770
      %v1943 = vpop.f32.mrb[0].mxu0
      %v1944 = vadd.f32 %v1795, %v1943
      %v1945 = vpop.f32.mrb[0].mxu0
      %1946 = vmatprep.mubr.f32.mxu0 0.0
      %1947 = vmatmul.mubr.f32.gmra.mrb[0].mxu0 %v1771
      %v1948 = vpop.f32.mrb[0].mxu0
      %v1949 = vadd.f32 %v1795, %v1948
      %v1950 = vpop.f32.mrb[0].mxu0
      %1951 = vmatprep.mubr.f32.mxu0 0.0
      %1952 = vmatmul.mubr.f32.gmra.mrb[0].mxu0 %v1772
      %v1953 = vpop.f32.mrb[0].mxu0
      %v1954 = vadd.f32 %v1795, %v1953
      %v1955 = vpop.f32.mrb[0].mxu0
      %1956 = vmatprep.mubr.f32.mxu0 0.0
      %1957 = vmatmul.mubr.f32.gmra.mrb[0].mxu0 %v1773
      %v1958 = vpop.f32.mrb[0].mxu0
      %v1959 = vadd.f32 %v1795, %v1958
      %v1960 = vpop.f32.mrb[0].mxu0
      %1961 = vdwg.mxu0
      %v1962 = vld [vmem:[%s8] sm:$0xff]
      %v1963 = vld [vmem:[%s8 + $0x8] sm:$0xff]
      %v1964 = vld [vmem:[%s8 + $0x10] sm:$0xff]
      %v1965 = vld [vmem:[%s8 + $0x18] sm:$0xff]
      %v1966 = vld [vmem:[%s9] sm:$0xff]
      %v1967 = vld [vmem:[%s9 + $0x8] sm:$0xff]
      %v1968 = vld [vmem:[%s9 + $0x10] sm:$0xff]
      %v1969 = vld [vmem:[%s9 + $0x18] sm:$0xff]
      %1970 = vmatprep.subr.mxu0 0.0
      %1971 = vmatpush1.msra.mxu0 %v1966
      %1972 = vmatprep.subr.mxu0 0.0
      %1973 = vmatpush1.msra.mxu0 %v1967
      %1974 = vmatprep.subr.mxu0 0.0
      %1975 = vmatpush1.msra.mxu0 %v1968
      %1976 = vmatprep.subr.mxu0 0.0
      %1977 = vmatpush1.msra.mxu0 %v1969
      %1978 = vmatprep.subr.mxu0 0.0
      %1979 = vmatpush1.msra.mxu0 0.0
      %1980 = vmatprep.subr.mxu0 0.0
      %1981 = vmatpush1.msra.mxu0 0.0
      %1982 = vmatprep.subr.mxu0 0.0
      %1983 = vmatpush1.msra.mxu0 0.0
      %1984 = vmatprep.subr.mxu0 0.0
      %1985 = vmatpush1.msra.mxu0 0.0
      %1986 = vmatprep.subr.mxu0 0.0
      %1987 = vmatpush1.msra.mxu0 0.0
      %1988 = vmatprep.subr.mxu0 0.0
      %1989 = vmatpush1.msra.mxu0 0.0
      %1990 = vmatprep.subr.mxu0 0.0
      %1991 = vmatpush1.msra.mxu0 0.0
      %1992 = vmatprep.subr.mxu0 0.0
      %1993 = vmatpush1.msra.mxu0 0.0
      %1994 = vmatprep.subr.mxu0 0.0
      %1995 = vmatpush1.msra.mxu0 0.0
      %1996 = vmatprep.subr.mxu0 0.0
      %1997 = vmatpush1.msra.mxu0 0.0
      %1998 = vmatprep.subr.mxu0 0.0
      %1999 = vmatpush1.msra.mxu0 0.0
      %2000 = vmatprep.subr.mxu0 0.0
      %2001 = vmatpush1.msra.mxu0 0.0
      %2002 = vmatprep.subr.mxu0 0.0
      %2003 = vmatpush1.msra.mxu0 0.0
      %2004 = vmatprep.subr.mxu0 0.0
      %2005 = vmatpush1.msra.mxu0 0.0
      %2006 = vmatprep.subr.mxu0 0.0
      %2007 = vmatpush1.msra.mxu0 0.0
      %2008 = vmatprep.subr.mxu0 0.0
      %2009 = vmatpush1.msra.mxu0 0.0
      %2010 = vmatprep.subr.mxu0 0.0
      %2011 = vmatpush1.msra.mxu0 0.0
      %2012 = vmatprep.subr.mxu0 0.0
      %2013 = vmatpush1.msra.mxu0 0.0
      %2014 = vmatprep.subr.mxu0 0.0
      %2015 = vmatpush1.msra.mxu0 0.0
      %2016 = vmatprep.subr.mxu0 0.0
      %2017 = vmatpush1.msra.mxu0 0.0
      %2018 = vmatprep.subr.mxu0 0.0
      %2019 = vmatpush1.msra.mxu0 0.0
      %2020 = vmatprep.subr.mxu0 0.0
      %2021 = vmatpush1.msra.mxu0 0.0
      %2022 = vmatprep.subr.mxu0 0.0
      %2023 = vmatpush1.msra.mxu0 0.0
      %2024 = vmatprep.subr.mxu0 0.0
      %2025 = vmatpush1.msra.mxu0 0.0
      %2026 = vmatprep.subr.mxu0 0.0
      %2027 = vmatpush1.msra.mxu0 0.0
      %2028 = vmatprep.subr.mxu0 0.0
      %2029 = vmatpush1.msra.mxu0 0.0
      %2030 = vmatprep.subr.mxu0 0.0
      %2031 = vmatpush1.msra.mxu0 0.0
      %2032 = vmatprep.subr.mxu0 0.0
      %2033 = vmatpush1.msra.mxu0 0.0
      %2034 = vmatprep.mubr.f32.mxu0 0.0
      %2035 = vmatmul.mubr.f32.gmra.mrb[0].mxu0 %v1529
      %v2036 = vpop.f32.mrb[0].mxu0
      %v2037 = vadd.f32 0.0, %v2036
      %v2038 = vpop.f32.mrb[0].mxu0
      %2039 = vmatprep.mubr.f32.mxu0 0.0
      %2040 = vmatmul.mubr.f32.gmra.mrb[0].mxu0 %v1531
      %v2041 = vpop.f32.mrb[0].mxu0
      %v2042 = vadd.f32 0.0, %v2041
      %v2043 = vpop.f32.mrb[0].mxu0
      %2044 = vmatprep.mubr.f32.mxu0 0.0
      %2045 = vmatmul.mubr.f32.gmra.mrb[0].mxu0 %v1533
      %v2046 = vpop.f32.mrb[0].mxu0
      %v2047 = vadd.f32 0.0, %v2046
      %v2048 = vpop.f32.mrb[0].mxu0
      %2049 = vmatprep.mubr.f32.mxu0 0.0
      %2050 = vmatmul.mubr.f32.gmra.mrb[0].mxu0 %v1535
      %v2051 = vpop.f32.mrb[0].mxu0
      %v2052 = vadd.f32 0.0, %v2051
      %v2053 = vpop.f32.mrb[0].mxu0
      %2054 = vmatprep.mubr.f32.mxu0 0.0
      %2055 = vmatmul.mubr.f32.gmra.mrb[0].mxu0 %v1537
      %v2056 = vpop.f32.mrb[0].mxu0
      %v2057 = vadd.f32 0.0, %v2056
      %v2058 = vpop.f32.mrb[0].mxu0
      %2059 = vmatprep.mubr.f32.mxu0 0.0
      %2060 = vmatmul.mubr.f32.gmra.mrb[0].mxu0 %v1539
      %v2061 = vpop.f32.mrb[0].mxu0
      %v2062 = vadd.f32 0.0, %v2061
      %v2063 = vpop.f32.mrb[0].mxu0
      %2064 = vmatprep.mubr.f32.mxu0 0.0
      %2065 = vmatmul.mubr.f32.gmra.mrb[0].mxu0 %v1541
      %v2066 = vpop.f32.mrb[0].mxu0
      %v2067 = vadd.f32 0.0, %v2066
      %v2068 = vpop.f32.mrb[0].mxu0
      %2069 = vmatprep.mubr.f32.mxu0 0.0
      %2070 = vmatmul.mubr.f32.gmra.mrb[0].mxu0 %v1543
      %v2071 = vpop.f32.mrb[0].mxu0
      %v2072 = vadd.f32 0.0, %v2071
      %v2073 = vpop.f32.mrb[0].mxu0
      %2074 = vmatprep.mubr.f32.mxu0 0.0
      %2075 = vmatmul.mubr.f32.gmra.mrb[0].mxu0 %v1545
      %v2076 = vpop.f32.mrb[0].mxu0
      %v2077 = vadd.f32 0.0, %v2076
      %v2078 = vpop.f32.mrb[0].mxu0
      %2079 = vmatprep.mubr.f32.mxu0 0.0
      %2080 = vmatmul.mubr.f32.gmra.mrb[0].mxu0 %v1547
      %v2081 = vpop.f32.mrb[0].mxu0
      %v2082 = vadd.f32 0.0, %v2081
      %v2083 = vpop.f32.mrb[0].mxu0
      %2084 = vmatprep.mubr.f32.mxu0 0.0
      %2085 = vmatmul.mubr.f32.gmra.mrb[0].mxu0 %v1549
      %v2086 = vpop.f32.mrb[0].mxu0
      %v2087 = vadd.f32 0.0, %v2086
      %v2088 = vpop.f32.mrb[0].mxu0
      %2089 = vmatprep.mubr.f32.mxu0 0.0
      %2090 = vmatmul.mubr.f32.gmra.mrb[0].mxu0 %v1551
      %v2091 = vpop.f32.mrb[0].mxu0
      %v2092 = vadd.f32 0.0, %v2091
      %v2093 = vpop.f32.mrb[0].mxu0
      %2094 = vmatprep.mubr.f32.mxu0 0.0
      %2095 = vmatmul.mubr.f32.gmra.mrb[0].mxu0 %v1553
      %v2096 = vpop.f32.mrb[0].mxu0
      %v2097 = vadd.f32 0.0, %v2096
      %v2098 = vpop.f32.mrb[0].mxu0
      %2099 = vmatprep.mubr.f32.mxu0 0.0
      %2100 = vmatmul.mubr.f32.gmra.mrb[0].mxu0 %v1555
      %v2101 = vpop.f32.mrb[0].mxu0
      %v2102 = vadd.f32 0.0, %v2101
      %v2103 = vpop.f32.mrb[0].mxu0
      %2104 = vmatprep.mubr.f32.mxu0 0.0
      %2105 = vmatmul.mubr.f32.gmra.mrb[0].mxu0 %v1557
      %v2106 = vpop.f32.mrb[0].mxu0
      %v2107 = vadd.f32 0.0, %v2106
      %v2108 = vpop.f32.mrb[0].mxu0
      %2109 = vmatprep.mubr.f32.mxu0 0.0
      %2110 = vmatmul.mubr.f32.gmra.mrb[0].mxu0 %v1559
      %v2111 = vpop.f32.mrb[0].mxu0
      %v2112 = vadd.f32 0.0, %v2111
      %v2113 = vpop.f32.mrb[0].mxu0
      %2114 = vmatprep.mubr.f32.mxu0 0.0
      %2115 = vmatmul.mubr.f32.gmra.mrb[0].mxu0 %v1561
      %v2116 = vpop.f32.mrb[0].mxu0
      %v2117 = vadd.f32 0.0, %v2116
      %v2118 = vpop.f32.mrb[0].mxu0
      %2119 = vmatprep.mubr.f32.mxu0 0.0
      %2120 = vmatmul.mubr.f32.gmra.mrb[0].mxu0 %v1563
      %v2121 = vpop.f32.mrb[0].mxu0
      %v2122 = vadd.f32 0.0, %v2121
      %v2123 = vpop.f32.mrb[0].mxu0
      %2124 = vmatprep.mubr.f32.mxu0 0.0
      %2125 = vmatmul.mubr.f32.gmra.mrb[0].mxu0 %v1565
      %v2126 = vpop.f32.mrb[0].mxu0
      %v2127 = vadd.f32 0.0, %v2126
      %v2128 = vpop.f32.mrb[0].mxu0
      %2129 = vmatprep.mubr.f32.mxu0 0.0
      %2130 = vmatmul.mubr.f32.gmra.mrb[0].mxu0 %v1567
      %v2131 = vpop.f32.mrb[0].mxu0
      %v2132 = vadd.f32 0.0, %v2131
      %v2133 = vpop.f32.mrb[0].mxu0
      %2134 = vdwg.mxu0
      %v2136 = vsel %vm630, %v1864, 0
      %v2139 = vsel %vm630, %v1869, 0
      %v2142 = vsel %vm630, %v1874, 0
      %v2145 = vsel %vm630, %v1879, 0
      %v2148 = vsel %vm630, %v1884, 0
      %v2151 = vsel %vm630, %v1889, 0
      %v2154 = vsel %vm630, %v1894, 0
      %v2157 = vsel %vm630, %v1899, 0
      %v2160 = vsel %vm630, %v1904, 0
      %v2163 = vsel %vm630, %v1909, 0
      %v2166 = vsel %vm630, %v1914, 0
      %v2169 = vsel %vm630, %v1919, 0
      %v2172 = vsel %vm630, %v1924, 0
      %v2175 = vsel %vm630, %v1929, 0
      %v2178 = vsel %vm630, %v1934, 0
      %v2181 = vsel %vm630, %v1939, 0
      %v2184 = vsel %vm630, %v1944, 0
      %v2187 = vsel %vm630, %v1949, 0
      %v2190 = vsel %vm630, %v1954, 0
      %v2193 = vsel %vm630, %v1959, 0
      %2195 = vmatprep.subr.mxu0 0.0
      %2196 = vmatpush1.msra.mxu0 %v1962
      %2197 = vmatprep.subr.mxu0 0.0
      %2198 = vmatpush1.msra.mxu0 %v1963
      %2199 = vmatprep.subr.mxu0 0.0
      %2200 = vmatpush1.msra.mxu0 %v1964
      %2201 = vmatprep.subr.mxu0 0.0
      %2202 = vmatpush1.msra.mxu0 %v1965
      %2203 = vmatprep.subr.mxu0 0.0
      %2204 = vmatpush1.msra.mxu0 0.0
      %2205 = vmatprep.subr.mxu0 0.0
      %2206 = vmatpush1.msra.mxu0 0.0
      %2207 = vmatprep.subr.mxu0 0.0
      %2208 = vmatpush1.msra.mxu0 0.0
      %2209 = vmatprep.subr.mxu0 0.0
      %2210 = vmatpush1.msra.mxu0 0.0
      %2211 = vmatprep.subr.mxu0 0.0
      %2212 = vmatpush1.msra.mxu0 0.0
      %2213 = vmatprep.subr.mxu0 0.0
      %2214 = vmatpush1.msra.mxu0 0.0
      %2215 = vmatprep.subr.mxu0 0.0
      %2216 = vmatpush1.msra.mxu0 0.0
      %2217 = vmatprep.subr.mxu0 0.0
      %2218 = vmatpush1.msra.mxu0 0.0
      %2219 = vmatprep.subr.mxu0 0.0
      %2220 = vmatpush1.msra.mxu0 0.0
      %2221 = vmatprep.subr.mxu0 0.0
      %2222 = vmatpush1.msra.mxu0 0.0
      %2223 = vmatprep.subr.mxu0 0.0
      %2224 = vmatpush1.msra.mxu0 0.0
      %2225 = vmatprep.subr.mxu0 0.0
      %2226 = vmatpush1.msra.mxu0 0.0
      %2227 = vmatprep.subr.mxu0 0.0
      %2228 = vmatpush1.msra.mxu0 0.0
      %2229 = vmatprep.subr.mxu0 0.0
      %2230 = vmatpush1.msra.mxu0 0.0
      %2231 = vmatprep.subr.mxu0 0.0
      %2232 = vmatpush1.msra.mxu0 0.0
      %2233 = vmatprep.subr.mxu0 0.0
      %2234 = vmatpush1.msra.mxu0 0.0
      %2235 = vmatprep.subr.mxu0 0.0
      %2236 = vmatpush1.msra.mxu0 0.0
      %2237 = vmatprep.subr.mxu0 0.0
      %2238 = vmatpush1.msra.mxu0 0.0
      %2239 = vmatprep.subr.mxu0 0.0
      %2240 = vmatpush1.msra.mxu0 0.0
      %2241 = vmatprep.subr.mxu0 0.0
      %2242 = vmatpush1.msra.mxu0 0.0
      %2243 = vmatprep.subr.mxu0 0.0
      %2244 = vmatpush1.msra.mxu0 0.0
      %2245 = vmatprep.subr.mxu0 0.0
      %2246 = vmatpush1.msra.mxu0 0.0
      %2247 = vmatprep.subr.mxu0 0.0
      %2248 = vmatpush1.msra.mxu0 0.0
      %2249 = vmatprep.subr.mxu0 0.0
      %2250 = vmatpush1.msra.mxu0 0.0
      %2251 = vmatprep.subr.mxu0 0.0
      %2252 = vmatpush1.msra.mxu0 0.0
      %2253 = vmatprep.subr.mxu0 0.0
      %2254 = vmatpush1.msra.mxu0 0.0
      %2255 = vmatprep.subr.mxu0 0.0
      %2256 = vmatpush1.msra.mxu0 0.0
      %2257 = vmatprep.subr.mxu0 0.0
      %2258 = vmatpush1.msra.mxu0 0.0
      %2259 = vmatprep.mubr.f32.mxu0 0.0
      %2260 = vmatmul.mubr.f32.gmra.mrb[0].mxu0 %v2136
      %v2261 = vpop.f32.mrb[0].mxu0
      %v2262 = vadd.f32 %v2037, %v2261
      %v2263 = vpop.f32.mrb[0].mxu0
      %2264 = vmatprep.mubr.f32.mxu0 0.0
      %2265 = vmatmul.mubr.f32.gmra.mrb[0].mxu0 %v2139
      %v2266 = vpop.f32.mrb[0].mxu0
      %v2267 = vadd.f32 %v2042, %v2266
      %v2268 = vpop.f32.mrb[0].mxu0
      %2269 = vmatprep.mubr.f32.mxu0 0.0
      %2270 = vmatmul.mubr.f32.gmra.mrb[0].mxu0 %v2142
      %v2271 = vpop.f32.mrb[0].mxu0
      %v2272 = vadd.f32 %v2047, %v2271
      %v2273 = vpop.f32.mrb[0].mxu0
      %2274 = vmatprep.mubr.f32.mxu0 0.0
      %2275 = vmatmul.mubr.f32.gmra.mrb[0].mxu0 %v2145
      %v2276 = vpop.f32.mrb[0].mxu0
      %v2277 = vadd.f32 %v2052, %v2276
      %v2278 = vpop.f32.mrb[0].mxu0
      %2279 = vmatprep.mubr.f32.mxu0 0.0
      %2280 = vmatmul.mubr.f32.gmra.mrb[0].mxu0 %v2148
      %v2281 = vpop.f32.mrb[0].mxu0
      %v2282 = vadd.f32 %v2057, %v2281
      %v2283 = vpop.f32.mrb[0].mxu0
      %2284 = vmatprep.mubr.f32.mxu0 0.0
      %2285 = vmatmul.mubr.f32.gmra.mrb[0].mxu0 %v2151
      %v2286 = vpop.f32.mrb[0].mxu0
      %v2287 = vadd.f32 %v2062, %v2286
      %v2288 = vpop.f32.mrb[0].mxu0
      %2289 = vmatprep.mubr.f32.mxu0 0.0
      %2290 = vmatmul.mubr.f32.gmra.mrb[0].mxu0 %v2154
      %v2291 = vpop.f32.mrb[0].mxu0
      %v2292 = vadd.f32 %v2067, %v2291
      %v2293 = vpop.f32.mrb[0].mxu0
      %2294 = vmatprep.mubr.f32.mxu0 0.0
      %2295 = vmatmul.mubr.f32.gmra.mrb[0].mxu0 %v2157
      %v2296 = vpop.f32.mrb[0].mxu0
      %v2297 = vadd.f32 %v2072, %v2296
      %v2298 = vpop.f32.mrb[0].mxu0
      %2299 = vmatprep.mubr.f32.mxu0 0.0
      %2300 = vmatmul.mubr.f32.gmra.mrb[0].mxu0 %v2160
      %v2301 = vpop.f32.mrb[0].mxu0
      %v2302 = vadd.f32 %v2077, %v2301
      %v2303 = vpop.f32.mrb[0].mxu0
      %2304 = vmatprep.mubr.f32.mxu0 0.0
      %2305 = vmatmul.mubr.f32.gmra.mrb[0].mxu0 %v2163
      %v2306 = vpop.f32.mrb[0].mxu0
      %v2307 = vadd.f32 %v2082, %v2306
      %v2308 = vpop.f32.mrb[0].mxu0
      %2309 = vmatprep.mubr.f32.mxu0 0.0
      %2310 = vmatmul.mubr.f32.gmra.mrb[0].mxu0 %v2166
      %v2311 = vpop.f32.mrb[0].mxu0
      %v2312 = vadd.f32 %v2087, %v2311
      %v2313 = vpop.f32.mrb[0].mxu0
      %2314 = vmatprep.mubr.f32.mxu0 0.0
      %2315 = vmatmul.mubr.f32.gmra.mrb[0].mxu0 %v2169
      %v2316 = vpop.f32.mrb[0].mxu0
      %v2317 = vadd.f32 %v2092, %v2316
      %v2318 = vpop.f32.mrb[0].mxu0
      %2319 = vmatprep.mubr.f32.mxu0 0.0
      %2320 = vmatmul.mubr.f32.gmra.mrb[0].mxu0 %v2172
      %v2321 = vpop.f32.mrb[0].mxu0
      %v2322 = vadd.f32 %v2097, %v2321
      %v2323 = vpop.f32.mrb[0].mxu0
      %2324 = vmatprep.mubr.f32.mxu0 0.0
      %2325 = vmatmul.mubr.f32.gmra.mrb[0].mxu0 %v2175
      %v2326 = vpop.f32.mrb[0].mxu0
      %v2327 = vadd.f32 %v2102, %v2326
      %v2328 = vpop.f32.mrb[0].mxu0
      %2329 = vmatprep.mubr.f32.mxu0 0.0
      %2330 = vmatmul.mubr.f32.gmra.mrb[0].mxu0 %v2178
      %v2331 = vpop.f32.mrb[0].mxu0
      %v2332 = vadd.f32 %v2107, %v2331
      %v2333 = vpop.f32.mrb[0].mxu0
      %2334 = vmatprep.mubr.f32.mxu0 0.0
      %2335 = vmatmul.mubr.f32.gmra.mrb[0].mxu0 %v2181
      %v2336 = vpop.f32.mrb[0].mxu0
      %v2337 = vadd.f32 %v2112, %v2336
      %v2338 = vpop.f32.mrb[0].mxu0
      %2339 = vmatprep.mubr.f32.mxu0 0.0
      %2340 = vmatmul.mubr.f32.gmra.mrb[0].mxu0 %v2184
      %v2341 = vpop.f32.mrb[0].mxu0
      %v2342 = vadd.f32 %v2117, %v2341
      %v2343 = vpop.f32.mrb[0].mxu0
      %2344 = vmatprep.mubr.f32.mxu0 0.0
      %2345 = vmatmul.mubr.f32.gmra.mrb[0].mxu0 %v2187
      %v2346 = vpop.f32.mrb[0].mxu0
      %v2347 = vadd.f32 %v2122, %v2346
      %v2348 = vpop.f32.mrb[0].mxu0
      %2349 = vmatprep.mubr.f32.mxu0 0.0
      %2350 = vmatmul.mubr.f32.gmra.mrb[0].mxu0 %v2190
      %v2351 = vpop.f32.mrb[0].mxu0
      %v2352 = vadd.f32 %v2127, %v2351
      %v2353 = vpop.f32.mrb[0].mxu0
      %2354 = vmatprep.mubr.f32.mxu0 0.0
      %2355 = vmatmul.mubr.f32.gmra.mrb[0].mxu0 %v2193
      %v2356 = vpop.f32.mrb[0].mxu0
      %v2357 = vadd.f32 %v2132, %v2356
      %v2358 = vpop.f32.mrb[0].mxu0
      %2359 = vdwg.mxu0
      %v2360 = vld [vmem:[%s10] sm:$0x1]
      %v2362 = vlaneseq
      %v2363 = vshrl.u32 %v2362, 7
      %v2364 = vsub.s32 0, %v2363
      %v2365 = vrot.slane %v2360, %v2364
      %v2367 = vadd.f32 %v2262, %v2365
      %v2368 = vadd.f32 %v2267, %v2365
      %v2369 = vadd.f32 %v2272, %v2365
      %v2370 = vadd.f32 %v2277, %v2365
      %v2371 = vadd.f32 %v2282, %v2365
      %v2372 = vadd.f32 %v2287, %v2365
      %v2373 = vadd.f32 %v2292, %v2365
      %v2374 = vadd.f32 %v2297, %v2365
      %v2375 = vadd.f32 %v2302, %v2365
      %v2376 = vadd.f32 %v2307, %v2365
      %v2377 = vadd.f32 %v2312, %v2365
      %v2378 = vadd.f32 %v2317, %v2365
      %v2379 = vadd.f32 %v2322, %v2365
      %v2380 = vadd.f32 %v2327, %v2365
      %v2381 = vadd.f32 %v2332, %v2365
      %v2382 = vadd.f32 %v2337, %v2365
      %v2383 = vadd.f32 %v2342, %v2365
      %v2384 = vadd.f32 %v2347, %v2365
      %v2385 = vadd.f32 %v2352, %v2365
      %v2386 = vadd.f32 %v2357, %v2365
      %v2387 = vxor.u32 %v2367, 2147483648
      %v2388 = vxor.u32 %v2368, 2147483648
      %v2389 = vxor.u32 %v2369, 2147483648
      %v2390 = vxor.u32 %v2370, 2147483648
      %v2391 = vxor.u32 %v2371, 2147483648
      %v2392 = vxor.u32 %v2372, 2147483648
      %v2393 = vxor.u32 %v2373, 2147483648
      %v2394 = vxor.u32 %v2374, 2147483648
      %v2395 = vxor.u32 %v2375, 2147483648
      %v2396 = vxor.u32 %v2376, 2147483648
      %v2397 = vxor.u32 %v2377, 2147483648
      %v2398 = vxor.u32 %v2378, 2147483648
      %v2399 = vxor.u32 %v2379, 2147483648
      %v2400 = vxor.u32 %v2380, 2147483648
      %v2401 = vxor.u32 %v2381, 2147483648
      %v2402 = vxor.u32 %v2382, 2147483648
      %v2403 = vxor.u32 %v2383, 2147483648
      %v2404 = vxor.u32 %v2384, 2147483648
      %v2405 = vxor.u32 %v2385, 2147483648
      %v2406 = vxor.u32 %v2386, 2147483648
      %v2407 = vmul.f32 %v2387, 1.442695
      %v2408 = vpow.pop %v2407
      %v2409 = vmul.f32 %v2388, 1.442695
      %v2410 = vpow.pop %v2409
      %v2411 = vmul.f32 %v2389, 1.442695
      %v2412 = vpow.pop %v2411
      %v2413 = vmul.f32 %v2390, 1.442695
      %v2414 = vpow.pop %v2413
      %v2415 = vmul.f32 %v2391, 1.442695
      %v2416 = vpow.pop %v2415
      %v2417 = vmul.f32 %v2392, 1.442695
      %v2418 = vpow.pop %v2417
      %v2419 = vmul.f32 %v2393, 1.442695
      %v2420 = vpow.pop %v2419
      %v2421 = vmul.f32 %v2394, 1.442695
      %v2422 = vpow.pop %v2421
      %v2423 = vmul.f32 %v2395, 1.442695
      %v2424 = vpow.pop %v2423
      %v2425 = vmul.f32 %v2396, 1.442695
      %v2426 = vpow.pop %v2425
      %v2427 = vmul.f32 %v2397, 1.442695
      %v2428 = vpow.pop %v2427
      %v2429 = vmul.f32 %v2398, 1.442695
      %v2430 = vpow.pop %v2429
      %v2431 = vmul.f32 %v2399, 1.442695
      %v2432 = vpow.pop %v2431
      %v2433 = vmul.f32 %v2400, 1.442695
      %v2434 = vpow.pop %v2433
      %v2435 = vmul.f32 %v2401, 1.442695
      %v2436 = vpow.pop %v2435
      %v2437 = vmul.f32 %v2402, 1.442695
      %v2438 = vpow.pop %v2437
      %v2439 = vmul.f32 %v2403, 1.442695
      %v2440 = vpow.pop %v2439
      %v2441 = vmul.f32 %v2404, 1.442695
      %v2442 = vpow.pop %v2441
      %v2443 = vmul.f32 %v2405, 1.442695
      %v2444 = vpow.pop %v2443
      %v2445 = vmul.f32 %v2406, 1.442695
      %v2446 = vpow.pop %v2445
      %v2447 = vadd.f32 %v2408, 1.0
      %v2448 = vadd.f32 %v2410, 1.0
      %v2449 = vadd.f32 %v2412, 1.0
      %v2450 = vadd.f32 %v2414, 1.0
      %v2451 = vadd.f32 %v2416, 1.0
      %v2452 = vadd.f32 %v2418, 1.0
      %v2453 = vadd.f32 %v2420, 1.0
      %v2454 = vadd.f32 %v2422, 1.0
      %v2455 = vadd.f32 %v2424, 1.0
      %v2456 = vadd.f32 %v2426, 1.0
      %v2457 = vadd.f32 %v2428, 1.0
      %v2458 = vadd.f32 %v2430, 1.0
      %v2459 = vadd.f32 %v2432, 1.0
      %v2460 = vadd.f32 %v2434, 1.0
      %v2461 = vadd.f32 %v2436, 1.0
      %v2462 = vadd.f32 %v2438, 1.0
      %v2463 = vadd.f32 %v2440, 1.0
      %v2464 = vadd.f32 %v2442, 1.0
      %v2465 = vadd.f32 %v2444, 1.0
      %v2466 = vadd.f32 %v2446, 1.0
      %v2467 = vrcp.pop %v2447
      %v2468 = vmul.f32 1.0, %v2467
      %v2469 = vrcp.pop %v2448
      %v2470 = vmul.f32 1.0, %v2469
      %v2471 = vrcp.pop %v2449
      %v2472 = vmul.f32 1.0, %v2471
      %v2473 = vrcp.pop %v2450
      %v2474 = vmul.f32 1.0, %v2473
      %v2475 = vrcp.pop %v2451
      %v2476 = vmul.f32 1.0, %v2475
      %v2477 = vrcp.pop %v2452
      %v2478 = vmul.f32 1.0, %v2477
      %v2479 = vrcp.pop %v2453
      %v2480 = vmul.f32 1.0, %v2479
      %v2481 = vrcp.pop %v2454
      %v2482 = vmul.f32 1.0, %v2481
      %v2483 = vrcp.pop %v2455
      %v2484 = vmul.f32 1.0, %v2483
      %v2485 = vrcp.pop %v2456
      %v2486 = vmul.f32 1.0, %v2485
      %v2487 = vrcp.pop %v2457
      %v2488 = vmul.f32 1.0, %v2487
      %v2489 = vrcp.pop %v2458
      %v2490 = vmul.f32 1.0, %v2489
      %v2491 = vrcp.pop %v2459
      %v2492 = vmul.f32 1.0, %v2491
      %v2493 = vrcp.pop %v2460
      %v2494 = vmul.f32 1.0, %v2493
      %v2495 = vrcp.pop %v2461
      %v2496 = vmul.f32 1.0, %v2495
      %v2497 = vrcp.pop %v2462
      %v2498 = vmul.f32 1.0, %v2497
      %v2499 = vrcp.pop %v2463
      %v2500 = vmul.f32 1.0, %v2499
      %v2501 = vrcp.pop %v2464
      %v2502 = vmul.f32 1.0, %v2501
      %v2503 = vrcp.pop %v2465
      %v2504 = vmul.f32 1.0, %v2503
      %v2505 = vrcp.pop %v2466
      %v2506 = vmul.f32 1.0, %v2505
      %v2507 = vld [vmem:[%s11] sm:$0xff]
      %v2508 = vld [vmem:[%s11 + $0x8] sm:$0xff]
      %v2509 = vld [vmem:[%s11 + $0x10] sm:$0xff]
      %v2510 = vld [vmem:[%s11 + $0x18] sm:$0xff]
      %v2511 = vld [vmem:[%s12] sm:$0x1]
      %v2513 = vlaneseq
      %v2514 = vshrl.u32 %v2513, 7
      %v2515 = vsub.s32 0, %v2514
      %v2516 = vrot.slane %v2511, %v2515
      %2518 = vmatprep.subr.mxu0 0.0
      %2519 = vmatpush1.msra.mxu0 %v2507
      %2520 = vmatprep.subr.mxu0 0.0
      %2521 = vmatpush1.msra.mxu0 %v2508
      %2522 = vmatprep.subr.mxu0 0.0
      %2523 = vmatpush1.msra.mxu0 %v2509
      %2524 = vmatprep.subr.mxu0 0.0
      %2525 = vmatpush1.msra.mxu0 %v2510
      %2526 = vmatprep.subr.mxu0 0.0
      %2527 = vmatpush1.msra.mxu0 0.0
      %2528 = vmatprep.subr.mxu0 0.0
      %2529 = vmatpush1.msra.mxu0 0.0
      %2530 = vmatprep.subr.mxu0 0.0
      %2531 = vmatpush1.msra.mxu0 0.0
      %2532 = vmatprep.subr.mxu0 0.0
      %2533 = vmatpush1.msra.mxu0 0.0
      %2534 = vmatprep.subr.mxu0 0.0
      %2535 = vmatpush1.msra.mxu0 0.0
      %2536 = vmatprep.subr.mxu0 0.0
      %2537 = vmatpush1.msra.mxu0 0.0
      %2538 = vmatprep.subr.mxu0 0.0
      %2539 = vmatpush1.msra.mxu0 0.0
      %2540 = vmatprep.subr.mxu0 0.0
      %2541 = vmatpush1.msra.mxu0 0.0
      %2542 = vmatprep.subr.mxu0 0.0
      %2543 = vmatpush1.msra.mxu0 0.0
      %2544 = vmatprep.subr.mxu0 0.0
      %2545 = vmatpush1.msra.mxu0 0.0
      %2546 = vmatprep.subr.mxu0 0.0
      %2547 = vmatpush1.msra.mxu0 0.0
      %2548 = vmatprep.subr.mxu0 0.0
      %2549 = vmatpush1.msra.mxu0 0.0
      %2550 = vmatprep.subr.mxu0 0.0
      %2551 = vmatpush1.msra.mxu0 0.0
      %2552 = vmatprep.subr.mxu0 0.0
      %2553 = vmatpush1.msra.mxu0 0.0
      %2554 = vmatprep.subr.mxu0 0.0
      %2555 = vmatpush1.msra.mxu0 0.0
      %2556 = vmatprep.subr.mxu0 0.0
      %2557 = vmatpush1.msra.mxu0 0.0
      %2558 = vmatprep.subr.mxu0 0.0
      %2559 = vmatpush1.msra.mxu0 0.0
      %2560 = vmatprep.subr.mxu0 0.0
      %2561 = vmatpush1.msra.mxu0 0.0
      %2562 = vmatprep.subr.mxu0 0.0
      %2563 = vmatpush1.msra.mxu0 0.0
      %2564 = vmatprep.subr.mxu0 0.0
      %2565 = vmatpush1.msra.mxu0 0.0
      %2566 = vmatprep.subr.mxu0 0.0
      %2567 = vmatpush1.msra.mxu0 0.0
      %2568 = vmatprep.subr.mxu0 0.0
      %2569 = vmatpush1.msra.mxu0 0.0
      %2570 = vmatprep.subr.mxu0 0.0
      %2571 = vmatpush1.msra.mxu0 0.0
      %2572 = vmatprep.subr.mxu0 0.0
      %2573 = vmatpush1.msra.mxu0 0.0
      %2574 = vmatprep.subr.mxu0 0.0
      %2575 = vmatpush1.msra.mxu0 0.0
      %2576 = vmatprep.subr.mxu0 0.0
      %2577 = vmatpush1.msra.mxu0 0.0
      %2578 = vmatprep.subr.mxu0 0.0
      %2579 = vmatpush1.msra.mxu0 0.0
      %2580 = vmatprep.subr.mxu0 0.0
      %2581 = vmatpush1.msra.mxu0 0.0
      %2582 = vmatprep.mubr.f32.mxu0 0.0
      %2583 = vmatmul.mubr.f32.gmra.mrb[0].mxu0 %v2136
      %v2584 = vpop.f32.mrb[0].mxu0
      %v2585 = vadd.f32 %v2516, %v2584
      %v2586 = vpop.f32.mrb[0].mxu0
      %2587 = vmatprep.mubr.f32.mxu0 0.0
      %2588 = vmatmul.mubr.f32.gmra.mrb[0].mxu0 %v2139
      %v2589 = vpop.f32.mrb[0].mxu0
      %v2590 = vadd.f32 %v2516, %v2589
      %v2591 = vpop.f32.mrb[0].mxu0
      %2592 = vmatprep.mubr.f32.mxu0 0.0
      %2593 = vmatmul.mubr.f32.gmra.mrb[0].mxu0 %v2142
      %v2594 = vpop.f32.mrb[0].mxu0
      %v2595 = vadd.f32 %v2516, %v2594
      %v2596 = vpop.f32.mrb[0].mxu0
      %2597 = vmatprep.mubr.f32.mxu0 0.0
      %2598 = vmatmul.mubr.f32.gmra.mrb[0].mxu0 %v2145
      %v2599 = vpop.f32.mrb[0].mxu0
      %v2600 = vadd.f32 %v2516, %v2599
      %v2601 = vpop.f32.mrb[0].mxu0
      %2602 = vmatprep.mubr.f32.mxu0 0.0
      %2603 = vmatmul.mubr.f32.gmra.mrb[0].mxu0 %v2148
      %v2604 = vpop.f32.mrb[0].mxu0
      %v2605 = vadd.f32 %v2516, %v2604
      %v2606 = vpop.f32.mrb[0].mxu0
      %2607 = vmatprep.mubr.f32.mxu0 0.0
      %2608 = vmatmul.mubr.f32.gmra.mrb[0].mxu0 %v2151
      %v2609 = vpop.f32.mrb[0].mxu0
      %v2610 = vadd.f32 %v2516, %v2609
      %v2611 = vpop.f32.mrb[0].mxu0
      %2612 = vmatprep.mubr.f32.mxu0 0.0
      %2613 = vmatmul.mubr.f32.gmra.mrb[0].mxu0 %v2154
      %v2614 = vpop.f32.mrb[0].mxu0
      %v2615 = vadd.f32 %v2516, %v2614
      %v2616 = vpop.f32.mrb[0].mxu0
      %2617 = vmatprep.mubr.f32.mxu0 0.0
      %2618 = vmatmul.mubr.f32.gmra.mrb[0].mxu0 %v2157
      %v2619 = vpop.f32.mrb[0].mxu0
      %v2620 = vadd.f32 %v2516, %v2619
      %v2621 = vpop.f32.mrb[0].mxu0
      %2622 = vmatprep.mubr.f32.mxu0 0.0
      %2623 = vmatmul.mubr.f32.gmra.mrb[0].mxu0 %v2160
      %v2624 = vpop.f32.mrb[0].mxu0
      %v2625 = vadd.f32 %v2516, %v2624
      %v2626 = vpop.f32.mrb[0].mxu0
      %2627 = vmatprep.mubr.f32.mxu0 0.0
      %2628 = vmatmul.mubr.f32.gmra.mrb[0].mxu0 %v2163
      %v2629 = vpop.f32.mrb[0].mxu0
      %v2630 = vadd.f32 %v2516, %v2629
      %v2631 = vpop.f32.mrb[0].mxu0
      %2632 = vmatprep.mubr.f32.mxu0 0.0
      %2633 = vmatmul.mubr.f32.gmra.mrb[0].mxu0 %v2166
      %v2634 = vpop.f32.mrb[0].mxu0
      %v2635 = vadd.f32 %v2516, %v2634
      %v2636 = vpop.f32.mrb[0].mxu0
      %2637 = vmatprep.mubr.f32.mxu0 0.0
      %2638 = vmatmul.mubr.f32.gmra.mrb[0].mxu0 %v2169
      %v2639 = vpop.f32.mrb[0].mxu0
      %v2640 = vadd.f32 %v2516, %v2639
      %v2641 = vpop.f32.mrb[0].mxu0
      %2642 = vmatprep.mubr.f32.mxu0 0.0
      %2643 = vmatmul.mubr.f32.gmra.mrb[0].mxu0 %v2172
      %v2644 = vpop.f32.mrb[0].mxu0
      %v2645 = vadd.f32 %v2516, %v2644
      %v2646 = vpop.f32.mrb[0].mxu0
      %2647 = vmatprep.mubr.f32.mxu0 0.0
      %2648 = vmatmul.mubr.f32.gmra.mrb[0].mxu0 %v2175
      %v2649 = vpop.f32.mrb[0].mxu0
      %v2650 = vadd.f32 %v2516, %v2649
      %v2651 = vpop.f32.mrb[0].mxu0
      %2652 = vmatprep.mubr.f32.mxu0 0.0
      %2653 = vmatmul.mubr.f32.gmra.mrb[0].mxu0 %v2178
      %v2654 = vpop.f32.mrb[0].mxu0
      %v2655 = vadd.f32 %v2516, %v2654
      %v2656 = vpop.f32.mrb[0].mxu0
      %2657 = vmatprep.mubr.f32.mxu0 0.0
      %2658 = vmatmul.mubr.f32.gmra.mrb[0].mxu0 %v2181
      %v2659 = vpop.f32.mrb[0].mxu0
      %v2660 = vadd.f32 %v2516, %v2659
      %v2661 = vpop.f32.mrb[0].mxu0
      %2662 = vmatprep.mubr.f32.mxu0 0.0
      %2663 = vmatmul.mubr.f32.gmra.mrb[0].mxu0 %v2184
      %v2664 = vpop.f32.mrb[0].mxu0
      %v2665 = vadd.f32 %v2516, %v2664
      %v2666 = vpop.f32.mrb[0].mxu0
      %2667 = vmatprep.mubr.f32.mxu0 0.0
      %2668 = vmatmul.mubr.f32.gmra.mrb[0].mxu0 %v2187
      %v2669 = vpop.f32.mrb[0].mxu0
      %v2670 = vadd.f32 %v2516, %v2669
      %v2671 = vpop.f32.mrb[0].mxu0
      %2672 = vmatprep.mubr.f32.mxu0 0.0
      %2673 = vmatmul.mubr.f32.gmra.mrb[0].mxu0 %v2190
      %v2674 = vpop.f32.mrb[0].mxu0
      %v2675 = vadd.f32 %v2516, %v2674
      %v2676 = vpop.f32.mrb[0].mxu0
      %2677 = vmatprep.mubr.f32.mxu0 0.0
      %2678 = vmatmul.mubr.f32.gmra.mrb[0].mxu0 %v2193
      %v2679 = vpop.f32.mrb[0].mxu0
      %v2680 = vadd.f32 %v2516, %v2679
      %v2681 = vpop.f32.mrb[0].mxu0
      %2682 = vdwg.mxu0
      %v2683 = vtanh.pop %v2585
      %v2684 = vtanh.pop %v2590
      %v2685 = vtanh.pop %v2595
      %v2686 = vtanh.pop %v2600
      %v2687 = vtanh.pop %v2605
      %v2688 = vtanh.pop %v2610
      %v2689 = vtanh.pop %v2615
      %v2690 = vtanh.pop %v2620
      %v2691 = vtanh.pop %v2625
      %v2692 = vtanh.pop %v2630
      %v2693 = vtanh.pop %v2635
      %v2694 = vtanh.pop %v2640
      %v2695 = vtanh.pop %v2645
      %v2696 = vtanh.pop %v2650
      %v2697 = vtanh.pop %v2655
      %v2698 = vtanh.pop %v2660
      %v2699 = vtanh.pop %v2665
      %v2700 = vtanh.pop %v2670
      %v2701 = vtanh.pop %v2675
      %v2702 = vtanh.pop %v2680
      %v2703 = vmul.f32 %v2468, %v926
      %v2704 = vmul.f32 %v2470, %v927
      %v2705 = vmul.f32 %v2472, %v928
      %v2706 = vmul.f32 %v2474, %v929
      %v2707 = vmul.f32 %v2476, %v930
      %v2708 = vmul.f32 %v2478, %v931
      %v2709 = vmul.f32 %v2480, %v932
      %v2710 = vmul.f32 %v2482, %v933
      %v2711 = vmul.f32 %v2484, %v934
      %v2712 = vmul.f32 %v2486, %v935
      %v2713 = vmul.f32 %v2488, %v936
      %v2714 = vmul.f32 %v2490, %v937
      %v2715 = vmul.f32 %v2492, %v938
      %v2716 = vmul.f32 %v2494, %v939
      %v2717 = vmul.f32 %v2496, %v940
      %v2718 = vmul.f32 %v2498, %v941
      %v2719 = vmul.f32 %v2500, %v942
      %v2720 = vmul.f32 %v2502, %v943
      %v2721 = vmul.f32 %v2504, %v944
      %v2722 = vmul.f32 %v2506, %v945
      %v2723 = vsub.f32 1.0, %v2468
      %v2724 = vsub.f32 1.0, %v2470
      %v2725 = vsub.f32 1.0, %v2472
      %v2726 = vsub.f32 1.0, %v2474
      %v2727 = vsub.f32 1.0, %v2476
      %v2728 = vsub.f32 1.0, %v2478
      %v2729 = vsub.f32 1.0, %v2480
      %v2730 = vsub.f32 1.0, %v2482
      %v2731 = vsub.f32 1.0, %v2484
      %v2732 = vsub.f32 1.0, %v2486
      %v2733 = vsub.f32 1.0, %v2488
      %v2734 = vsub.f32 1.0, %v2490
      %v2735 = vsub.f32 1.0, %v2492
      %v2736 = vsub.f32 1.0, %v2494
      %v2737 = vsub.f32 1.0, %v2496
      %v2738 = vsub.f32 1.0, %v2498
      %v2739 = vsub.f32 1.0, %v2500
      %v2740 = vsub.f32 1.0, %v2502
      %v2741 = vsub.f32 1.0, %v2504
      %v2742 = vsub.f32 1.0, %v2506
      %v2743 = vmul.f32 %v2723, %v2683
      %v2744 = vmul.f32 %v2724, %v2684
      %v2745 = vmul.f32 %v2725, %v2685
      %v2746 = vmul.f32 %v2726, %v2686
      %v2747 = vmul.f32 %v2727, %v2687
      %v2748 = vmul.f32 %v2728, %v2688
      %v2749 = vmul.f32 %v2729, %v2689
      %v2750 = vmul.f32 %v2730, %v2690
      %v2751 = vmul.f32 %v2731, %v2691
      %v2752 = vmul.f32 %v2732, %v2692
      %v2753 = vmul.f32 %v2733, %v2693
      %v2754 = vmul.f32 %v2734, %v2694
      %v2755 = vmul.f32 %v2735, %v2695
      %v2756 = vmul.f32 %v2736, %v2696
      %v2757 = vmul.f32 %v2737, %v2697
      %v2758 = vmul.f32 %v2738, %v2698
      %v2759 = vmul.f32 %v2739, %v2699
      %v2760 = vmul.f32 %v2740, %v2700
      %v2761 = vmul.f32 %v2741, %v2701
      %v2762 = vmul.f32 %v2742, %v2702
      %v2763 = vadd.f32 %v2703, %v2743
      %v2764 = vadd.f32 %v2704, %v2744
      %v2765 = vadd.f32 %v2705, %v2745
      %v2766 = vadd.f32 %v2706, %v2746
      %v2767 = vadd.f32 %v2707, %v2747
      %v2768 = vadd.f32 %v2708, %v2748
      %v2769 = vadd.f32 %v2709, %v2749
      %v2770 = vadd.f32 %v2710, %v2750
      %v2771 = vadd.f32 %v2711, %v2751
      %v2772 = vadd.f32 %v2712, %v2752
      %v2773 = vadd.f32 %v2713, %v2753
      %v2774 = vadd.f32 %v2714, %v2754
      %v2775 = vadd.f32 %v2715, %v2755
      %v2776 = vadd.f32 %v2716, %v2756
      %v2777 = vadd.f32 %v2717, %v2757
      %v2778 = vadd.f32 %v2718, %v2758
      %v2779 = vadd.f32 %v2719, %v2759
      %v2780 = vadd.f32 %v2720, %v2760
      %v2781 = vadd.f32 %v2721, %v2761
      %v2782 = vadd.f32 %v2722, %v2762
      %v2783 = vadd.f32 %v2763, %v1864
      %v2784 = vadd.f32 %v2764, %v1869
      %v2785 = vadd.f32 %v2765, %v1874
      %v2786 = vadd.f32 %v2766, %v1879
      %v2787 = vadd.f32 %v2767, %v1884
      %v2788 = vadd.f32 %v2768, %v1889
      %v2789 = vadd.f32 %v2769, %v1894
      %v2790 = vadd.f32 %v2770, %v1899
      %v2791 = vadd.f32 %v2771, %v1904
      %v2792 = vadd.f32 %v2772, %v1909
      %v2793 = vadd.f32 %v2773, %v1914
      %v2794 = vadd.f32 %v2774, %v1919
      %v2795 = vadd.f32 %v2775, %v1924
      %v2796 = vadd.f32 %v2776, %v1929
      %v2797 = vadd.f32 %v2777, %v1934
      %v2798 = vadd.f32 %v2778, %v1939
      %v2799 = vadd.f32 %v2779, %v1944
      %v2800 = vadd.f32 %v2780, %v1949
      %v2801 = vadd.f32 %v2781, %v1954
      %v2802 = vadd.f32 %v2782, %v1959
      %v2803 = vsel %vm630, %v2783, 0.0
      %2804 = vadd.xlane.f32.xlu0 %v2803
      %v2805 = vpop.xlane.xlu0 %2804
      %v2806 = vsel %vm630, %v2784, 0.0
      %2807 = vadd.xlane.f32.xlu0 %v2806
      %v2808 = vpop.xlane.xlu0 %2807
      %v2809 = vsel %vm630, %v2785, 0.0
      %2810 = vadd.xlane.f32.xlu0 %v2809
      %v2811 = vpop.xlane.xlu0 %2810
      %v2812 = vsel %vm630, %v2786, 0.0
      %2813 = vadd.xlane.f32.xlu0 %v2812
      %v2814 = vpop.xlane.xlu0 %2813
      %v2815 = vsel %vm630, %v2787, 0.0
      %2816 = vadd.xlane.f32.xlu0 %v2815
      %v2817 = vpop.xlane.xlu0 %2816
      %v2818 = vsel %vm630, %v2788, 0.0
      %2819 = vadd.xlane.f32.xlu0 %v2818
      %v2820 = vpop.xlane.xlu0 %2819
      %v2821 = vsel %vm630, %v2789, 0.0
      %2822 = vadd.xlane.f32.xlu0 %v2821
      %v2823 = vpop.xlane.xlu0 %2822
      %v2824 = vsel %vm630, %v2790, 0.0
      %2825 = vadd.xlane.f32.xlu0 %v2824
      %v2826 = vpop.xlane.xlu0 %2825
      %v2827 = vsel %vm630, %v2791, 0.0
      %2828 = vadd.xlane.f32.xlu0 %v2827
      %v2829 = vpop.xlane.xlu0 %2828
      %v2830 = vsel %vm630, %v2792, 0.0
      %2831 = vadd.xlane.f32.xlu0 %v2830
      %v2832 = vpop.xlane.xlu0 %2831
      %v2833 = vsel %vm630, %v2793, 0.0
      %2834 = vadd.xlane.f32.xlu0 %v2833
      %v2835 = vpop.xlane.xlu0 %2834
      %v2836 = vsel %vm630, %v2794, 0.0
      %2837 = vadd.xlane.f32.xlu0 %v2836
      %v2838 = vpop.xlane.xlu0 %2837
      %v2839 = vsel %vm630, %v2795, 0.0
      %2840 = vadd.xlane.f32.xlu0 %v2839
      %v2841 = vpop.xlane.xlu0 %2840
      %v2842 = vsel %vm630, %v2796, 0.0
      %2843 = vadd.xlane.f32.xlu0 %v2842
      %v2844 = vpop.xlane.xlu0 %2843
      %v2845 = vsel %vm630, %v2797, 0.0
      %2846 = vadd.xlane.f32.xlu0 %v2845
      %v2847 = vpop.xlane.xlu0 %2846
      %v2848 = vsel %vm630, %v2798, 0.0
      %2849 = vadd.xlane.f32.xlu0 %v2848
      %v2850 = vpop.xlane.xlu0 %2849
      %v2851 = vsel %vm630, %v2799, 0.0
      %2852 = vadd.xlane.f32.xlu0 %v2851
      %v2853 = vpop.xlane.xlu0 %2852
      %v2854 = vsel %vm630, %v2800, 0.0
      %2855 = vadd.xlane.f32.xlu0 %v2854
      %v2856 = vpop.xlane.xlu0 %2855
      %v2857 = vsel %vm630, %v2801, 0.0
      %2858 = vadd.xlane.f32.xlu0 %v2857
      %v2859 = vpop.xlane.xlu0 %2858
      %v2860 = vsel %vm630, %v2802, 0.0
      %2861 = vadd.xlane.f32.xlu0 %v2860
      %v2862 = vpop.xlane.xlu0 %2861
      %v2863 = vmul.f32 %v2805, %v691
      %v2864 = vmul.f32 %v2808, %v691
      %v2865 = vmul.f32 %v2811, %v691
      %v2866 = vmul.f32 %v2814, %v691
      %v2867 = vmul.f32 %v2817, %v691
      %v2868 = vmul.f32 %v2820, %v691
      %v2869 = vmul.f32 %v2823, %v691
      %v2870 = vmul.f32 %v2826, %v691
      %v2871 = vmul.f32 %v2829, %v691
      %v2872 = vmul.f32 %v2832, %v691
      %v2873 = vmul.f32 %v2835, %v691
      %v2874 = vmul.f32 %v2838, %v691
      %v2875 = vmul.f32 %v2841, %v691
      %v2876 = vmul.f32 %v2844, %v691
      %v2877 = vmul.f32 %v2847, %v691
      %v2878 = vmul.f32 %v2850, %v691
      %v2879 = vmul.f32 %v2853, %v691
      %v2880 = vmul.f32 %v2856, %v691
      %v2881 = vmul.f32 %v2859, %v691
      %v2882 = vmul.f32 %v2862, %v691
      %v2883 = vsub.f32 %v2783, %v2863
      %v2884 = vsub.f32 %v2784, %v2864
      %v2885 = vsub.f32 %v2785, %v2865
      %v2886 = vsub.f32 %v2786, %v2866
      %v2887 = vsub.f32 %v2787, %v2867
      %v2888 = vsub.f32 %v2788, %v2868
      %v2889 = vsub.f32 %v2789, %v2869
      %v2890 = vsub.f32 %v2790, %v2870
      %v2891 = vsub.f32 %v2791, %v2871
      %v2892 = vsub.f32 %v2792, %v2872
      %v2893 = vsub.f32 %v2793, %v2873
      %v2894 = vsub.f32 %v2794, %v2874
      %v2895 = vsub.f32 %v2795, %v2875
      %v2896 = vsub.f32 %v2796, %v2876
      %v2897 = vsub.f32 %v2797, %v2877
      %v2898 = vsub.f32 %v2798, %v2878
      %v2899 = vsub.f32 %v2799, %v2879
      %v2900 = vsub.f32 %v2800, %v2880
      %v2901 = vsub.f32 %v2801, %v2881
      %v2902 = vsub.f32 %v2802, %v2882
      %v2903 = vmul.f32 %v2883, %v2883
      %v2904 = vmul.f32 %v2884, %v2884
      %v2905 = vmul.f32 %v2885, %v2885
      %v2906 = vmul.f32 %v2886, %v2886
      %v2907 = vmul.f32 %v2887, %v2887
      %v2908 = vmul.f32 %v2888, %v2888
      %v2909 = vmul.f32 %v2889, %v2889
      %v2910 = vmul.f32 %v2890, %v2890
      %v2911 = vmul.f32 %v2891, %v2891
      %v2912 = vmul.f32 %v2892, %v2892
      %v2913 = vmul.f32 %v2893, %v2893
      %v2914 = vmul.f32 %v2894, %v2894
      %v2915 = vmul.f32 %v2895, %v2895
      %v2916 = vmul.f32 %v2896, %v2896
      %v2917 = vmul.f32 %v2897, %v2897
      %v2918 = vmul.f32 %v2898, %v2898
      %v2919 = vmul.f32 %v2899, %v2899
      %v2920 = vmul.f32 %v2900, %v2900
      %v2921 = vmul.f32 %v2901, %v2901
      %v2922 = vmul.f32 %v2902, %v2902
      %v2923 = vsel %vm630, %v2903, 0.0
      %2924 = vadd.xlane.f32.xlu0 %v2923
      %v2925 = vpop.xlane.xlu0 %2924
      %v2926 = vsel %vm630, %v2904, 0.0
      %2927 = vadd.xlane.f32.xlu0 %v2926
      %v2928 = vpop.xlane.xlu0 %2927
      %v2929 = vsel %vm630, %v2905, 0.0
      %2930 = vadd.xlane.f32.xlu0 %v2929
      %v2931 = vpop.xlane.xlu0 %2930
      %v2932 = vsel %vm630, %v2906, 0.0
      %2933 = vadd.xlane.f32.xlu0 %v2932
      %v2934 = vpop.xlane.xlu0 %2933
      %v2935 = vsel %vm630, %v2907, 0.0
      %2936 = vadd.xlane.f32.xlu0 %v2935
      %v2937 = vpop.xlane.xlu0 %2936
      %v2938 = vsel %vm630, %v2908, 0.0
      %2939 = vadd.xlane.f32.xlu0 %v2938
      %v2940 = vpop.xlane.xlu0 %2939
      %v2941 = vsel %vm630, %v2909, 0.0
      %2942 = vadd.xlane.f32.xlu0 %v2941
      %v2943 = vpop.xlane.xlu0 %2942
      %v2944 = vsel %vm630, %v2910, 0.0
      %2945 = vadd.xlane.f32.xlu0 %v2944
      %v2946 = vpop.xlane.xlu0 %2945
      %v2947 = vsel %vm630, %v2911, 0.0
      %2948 = vadd.xlane.f32.xlu0 %v2947
      %v2949 = vpop.xlane.xlu0 %2948
      %v2950 = vsel %vm630, %v2912, 0.0
      %2951 = vadd.xlane.f32.xlu0 %v2950
      %v2952 = vpop.xlane.xlu0 %2951
      %v2953 = vsel %vm630, %v2913, 0.0
      %2954 = vadd.xlane.f32.xlu0 %v2953
      %v2955 = vpop.xlane.xlu0 %2954
      %v2956 = vsel %vm630, %v2914, 0.0
      %2957 = vadd.xlane.f32.xlu0 %v2956
      %v2958 = vpop.xlane.xlu0 %2957
      %v2959 = vsel %vm630, %v2915, 0.0
      %2960 = vadd.xlane.f32.xlu0 %v2959
      %v2961 = vpop.xlane.xlu0 %2960
      %v2962 = vsel %vm630, %v2916, 0.0
      %2963 = vadd.xlane.f32.xlu0 %v2962
      %v2964 = vpop.xlane.xlu0 %2963
      %v2965 = vsel %vm630, %v2917, 0.0
      %2966 = vadd.xlane.f32.xlu0 %v2965
      %v2967 = vpop.xlane.xlu0 %2966
      %v2968 = vsel %vm630, %v2918, 0.0
      %2969 = vadd.xlane.f32.xlu0 %v2968
      %v2970 = vpop.xlane.xlu0 %2969
      %v2971 = vsel %vm630, %v2919, 0.0
      %2972 = vadd.xlane.f32.xlu0 %v2971
      %v2973 = vpop.xlane.xlu0 %2972
      %v2974 = vsel %vm630, %v2920, 0.0
      %2975 = vadd.xlane.f32.xlu0 %v2974
      %v2976 = vpop.xlane.xlu0 %2975
      %v2977 = vsel %vm630, %v2921, 0.0
      %2978 = vadd.xlane.f32.xlu0 %v2977
      %v2979 = vpop.xlane.xlu0 %2978
      %v2980 = vsel %vm630, %v2922, 0.0
      %2981 = vadd.xlane.f32.xlu0 %v2980
      %v2982 = vpop.xlane.xlu0 %2981
      %v2983 = vmul.f32 %v2925, %v691
      %v2984 = vmul.f32 %v2928, %v691
      %v2985 = vmul.f32 %v2931, %v691
      %v2986 = vmul.f32 %v2934, %v691
      %v2987 = vmul.f32 %v2937, %v691
      %v2988 = vmul.f32 %v2940, %v691
      %v2989 = vmul.f32 %v2943, %v691
      %v2990 = vmul.f32 %v2946, %v691
      %v2991 = vmul.f32 %v2949, %v691
      %v2992 = vmul.f32 %v2952, %v691
      %v2993 = vmul.f32 %v2955, %v691
      %v2994 = vmul.f32 %v2958, %v691
      %v2995 = vmul.f32 %v2961, %v691
      %v2996 = vmul.f32 %v2964, %v691
      %v2997 = vmul.f32 %v2967, %v691
      %v2998 = vmul.f32 %v2970, %v691
      %v2999 = vmul.f32 %v2973, %v691
      %v3000 = vmul.f32 %v2976, %v691
      %v3001 = vmul.f32 %v2979, %v691
      %v3002 = vmul.f32 %v2982, %v691
      %v3003 = vadd.f32 %v2983, 1e-05
      %v3004 = vadd.f32 %v2984, 1e-05
      %v3005 = vadd.f32 %v2985, 1e-05
      %v3006 = vadd.f32 %v2986, 1e-05
      %v3007 = vadd.f32 %v2987, 1e-05
      %v3008 = vadd.f32 %v2988, 1e-05
      %v3009 = vadd.f32 %v2989, 1e-05
      %v3010 = vadd.f32 %v2990, 1e-05
      %v3011 = vadd.f32 %v2991, 1e-05
      %v3012 = vadd.f32 %v2992, 1e-05
      %v3013 = vadd.f32 %v2993, 1e-05
      %v3014 = vadd.f32 %v2994, 1e-05
      %v3015 = vadd.f32 %v2995, 1e-05
      %v3016 = vadd.f32 %v2996, 1e-05
      %v3017 = vadd.f32 %v2997, 1e-05
      %v3018 = vadd.f32 %v2998, 1e-05
      %v3019 = vadd.f32 %v2999, 1e-05
      %v3020 = vadd.f32 %v3000, 1e-05
      %v3021 = vadd.f32 %v3001, 1e-05
      %v3022 = vadd.f32 %v3002, 1e-05
      %v3023 = vrsqrt.pop %v3003
      %v3024 = vrsqrt.pop %v3004
      %v3025 = vrsqrt.pop %v3005
      %v3026 = vrsqrt.pop %v3006
      %v3027 = vrsqrt.pop %v3007
      %v3028 = vrsqrt.pop %v3008
      %v3029 = vrsqrt.pop %v3009
      %v3030 = vrsqrt.pop %v3010
      %v3031 = vrsqrt.pop %v3011
      %v3032 = vrsqrt.pop %v3012
      %v3033 = vrsqrt.pop %v3013
      %v3034 = vrsqrt.pop %v3014
      %v3035 = vrsqrt.pop %v3015
      %v3036 = vrsqrt.pop %v3016
      %v3037 = vrsqrt.pop %v3017
      %v3038 = vrsqrt.pop %v3018
      %v3039 = vrsqrt.pop %v3019
      %v3040 = vrsqrt.pop %v3020
      %v3041 = vrsqrt.pop %v3021
      %v3042 = vrsqrt.pop %v3022
      %v3043 = vmul.f32 %v2883, %v3023
      %v3044 = vmul.f32 %v2884, %v3024
      %v3045 = vmul.f32 %v2885, %v3025
      %v3046 = vmul.f32 %v2886, %v3026
      %v3047 = vmul.f32 %v2887, %v3027
      %v3048 = vmul.f32 %v2888, %v3028
      %v3049 = vmul.f32 %v2889, %v3029
      %v3050 = vmul.f32 %v2890, %v3030
      %v3051 = vmul.f32 %v2891, %v3031
      %v3052 = vmul.f32 %v2892, %v3032
      %v3053 = vmul.f32 %v2893, %v3033
      %v3054 = vmul.f32 %v2894, %v3034
      %v3055 = vmul.f32 %v2895, %v3035
      %v3056 = vmul.f32 %v2896, %v3036
      %v3057 = vmul.f32 %v2897, %v3037
      %v3058 = vmul.f32 %v2898, %v3038
      %v3059 = vmul.f32 %v2899, %v3039
      %v3060 = vmul.f32 %v2900, %v3040
      %v3061 = vmul.f32 %v2901, %v3041
      %v3062 = vmul.f32 %v2902, %v3042
      %v3063 = vld [vmem:[%s13] sm:$0x1]
      %v3065 = vlaneseq
      %v3066 = vshrl.u32 %v3065, 7
      %v3067 = vsub.s32 0, %v3066
      %v3068 = vrot.slane %v3063, %v3067
      %v3070 = vmul.f32 %v3043, %v3068
      %v3071 = vmul.f32 %v3044, %v3068
      %v3072 = vmul.f32 %v3045, %v3068
      %v3073 = vmul.f32 %v3046, %v3068
      %v3074 = vmul.f32 %v3047, %v3068
      %v3075 = vmul.f32 %v3048, %v3068
      %v3076 = vmul.f32 %v3049, %v3068
      %v3077 = vmul.f32 %v3050, %v3068
      %v3078 = vmul.f32 %v3051, %v3068
      %v3079 = vmul.f32 %v3052, %v3068
      %v3080 = vmul.f32 %v3053, %v3068
      %v3081 = vmul.f32 %v3054, %v3068
      %v3082 = vmul.f32 %v3055, %v3068
      %v3083 = vmul.f32 %v3056, %v3068
      %v3084 = vmul.f32 %v3057, %v3068
      %v3085 = vmul.f32 %v3058, %v3068
      %v3086 = vmul.f32 %v3059, %v3068
      %v3087 = vmul.f32 %v3060, %v3068
      %v3088 = vmul.f32 %v3061, %v3068
      %v3089 = vmul.f32 %v3062, %v3068
      %v3090 = vld [vmem:[%s14] sm:$0x1]
      %v3092 = vlaneseq
      %v3093 = vshrl.u32 %v3092, 7
      %v3094 = vsub.s32 0, %v3093
      %v3095 = vrot.slane %v3090, %v3094
      %v3097 = vadd.f32 %v3070, %v3095
      %v3098 = vadd.f32 %v3071, %v3095
      %v3099 = vadd.f32 %v3072, %v3095
      %v3100 = vadd.f32 %v3073, %v3095
      %v3101 = vadd.f32 %v3074, %v3095
      %v3102 = vadd.f32 %v3075, %v3095
      %v3103 = vadd.f32 %v3076, %v3095
      %v3104 = vadd.f32 %v3077, %v3095
      %v3105 = vadd.f32 %v3078, %v3095
      %v3106 = vadd.f32 %v3079, %v3095
      %v3107 = vadd.f32 %v3080, %v3095
      %v3108 = vadd.f32 %v3081, %v3095
      %v3109 = vadd.f32 %v3082, %v3095
      %v3110 = vadd.f32 %v3083, %v3095
      %v3111 = vadd.f32 %v3084, %v3095
      %v3112 = vadd.f32 %v3085, %v3095
      %v3113 = vadd.f32 %v3086, %v3095
      %v3114 = vadd.f32 %v3087, %v3095
      %v3115 = vadd.f32 %v3088, %v3095
      %v3116 = vadd.f32 %v3089, %v3095
      %3117 = vst.msk [vmem:[%s568] sm:$0xff] %vm630, %v3097
      %3118 = vst.msk [vmem:[%s568 + $0x8] sm:$0xff] %vm630, %v3098
      %3119 = vst.msk [vmem:[%s568 + $0x10] sm:$0xff] %vm630, %v3099
      %3120 = vst.msk [vmem:[%s568 + $0x18] sm:$0xff] %vm630, %v3100
      %3121 = vst.msk [vmem:[%s568 + $0x20] sm:$0xff] %vm630, %v3101
      %3122 = vst.msk [vmem:[%s568 + $0x28] sm:$0xff] %vm630, %v3102
      %3123 = vst.msk [vmem:[%s568 + $0x30] sm:$0xff] %vm630, %v3103
      %3124 = vst.msk [vmem:[%s568 + $0x38] sm:$0xff] %vm630, %v3104
      %3125 = vst.msk [vmem:[%s568 + $0x40] sm:$0xff] %vm630, %v3105
      %3126 = vst.msk [vmem:[%s568 + $0x48] sm:$0xff] %vm630, %v3106
      %3127 = vst.msk [vmem:[%s568 + $0x50] sm:$0xff] %vm630, %v3107
      %3128 = vst.msk [vmem:[%s568 + $0x58] sm:$0xff] %vm630, %v3108
      %3129 = vst.msk [vmem:[%s568 + $0x60] sm:$0xff] %vm630, %v3109
      %3130 = vst.msk [vmem:[%s568 + $0x68] sm:$0xff] %vm630, %v3110
      %3131 = vst.msk [vmem:[%s568 + $0x70] sm:$0xff] %vm630, %v3111
      %3132 = vst.msk [vmem:[%s568 + $0x78] sm:$0xff] %vm630, %v3112
      %3133 = vst.msk [vmem:[%s568 + $0x80] sm:$0xff] %vm630, %v3113
      %3134 = vst.msk [vmem:[%s568 + $0x88] sm:$0xff] %vm630, %v3114
      %3135 = vst.msk [vmem:[%s568 + $0x90] sm:$0xff] %vm630, %v3115
      %3136 = vst.msk [vmem:[%s568 + $0x98] sm:$0xff] %vm630, %v3116
      %s3137 = smul.u32 20, %s31
      %p3138 = scmp.lt.s32.totalorder %s30, 1
      %s3139 = scalar_select %p3138, %s30, 1
      %p3140 = scmp.lt.s32.totalorder %s3137, 19
      %s3141 = scalar_select %p3140, %s3137, 19
      %s3142 = smul.addr %s3139, 20
      %s3143 = sadd.s32 %s3141, %s3142
      %s3144 = smul.addr %s3143, 8
      %s3145 = scalar_lea.vmem %s15, %s3144
      // Predicated region
      $region85: #{tpu_custom_call.1} parent=79 // pred_check
        %p3146 = pneg %p387
      $region86: #{tpu_custom_call.1} parent=79 // pred_check_branch
        %3148 = sbr.rel (%p3146) target = $region88
      $region87: #{tpu_custom_call.1} parent=79 // pred_region
        %s3149 = smul.u32 20, %s31
      $region88: #{tpu_custom_call.1} parent=79 // pred_fallthru
        _
    $region80: #{tpu_custom_call.1} parent=5 // pred_fallthru
      _
    %p3150 = scmp.le.s32.totalorder 2, %s21
    // Predicated region
    $region89: #{tpu_custom_call.1} parent=5 // pred_check
      %p3151 = pneg %p3150
    $region90: #{tpu_custom_call.1} parent=5 // pred_check_branch
      %3153 = sbr.rel (%p3151) target = $region92
    $region91: #{tpu_custom_call.1} parent=5 // pred_region
      %s3154 = ssub.s32 %s21, 2
      // Predicated region
      $region93: #{tpu_custom_call.1} parent=91 // pred_check
        %p3155 = pneg %p393
      $region94: #{tpu_custom_call.1} parent=91 // pred_check_branch
        %3157 = sbr.rel (%p3155) target = $region96
      $region95: #{tpu_custom_call.1} parent=91 // pred_region
        %s3158 = smul.u32 20, %s33
        %p3159 = scmp.lt.s32.totalorder %s32, 1
        %s3160 = scalar_select %p3159, %s32, 1
        %p3161 = scmp.lt.s32.totalorder %s3158, 19
        %s3162 = scalar_select %p3161, %s3158, 19
        %s3163 = smul.addr %s3160, 20
        %s3164 = sadd.s32 %s3162, %s3163
        %s3165 = smul.addr %s3164, 8
        %s3166 = scalar_lea.vmem %s15, %s3165
      $region96: #{tpu_custom_call.1} parent=91 // pred_fallthru
        _
    $region92: #{tpu_custom_call.1} parent=5 // pred_fallthru
      _
  $region6: #{tpu_custom_call.1} parent=0 // loop_footer
    %s25 = sadd.s32 1, %s21
  $region7: #{tpu_custom_call.1} parent=0 // loop_footer_branch
    %20 = sbr.rel target = $region3
  $region8: #{tpu_custom_call.1} parent=0 // loop_exit
    _

</llo_original>
